<compile_context>
chip_gen: v5e
topology: v5e:2x2
jax: 0.10.0
libtpu: 0.0.40
codegen_flags: <defaults>
</compile_context>

<pallas_src>
import numpy as np
import jax
import jax.numpy as jnp
from jax.experimental import pallas as pl
from jax.experimental.pallas import tpu as pltpu

BN_EPS = 1e-5
PI = 3.141592658          # matches the constant hard-coded in the PyTorch module


# ------------------------ host-side constant builders ------------------------

def _upsample_matrix(t_in):
    """Bilinear x2 along T (align_corners=True), as a (2*t_in, t_in) matrix."""
    t_out = 2 * t_in
    m = np.zeros((t_out, t_in), np.float32)
    if t_in == 1:
        m[:, 0] = 1.0
    else:
        scale = (t_in - 1) / (t_out - 1)
        for i in range(t_out):
            src = i * scale
            i0 = int(np.floor(src))
            i1 = min(i0 + 1, t_in - 1)
            frac = src - i0
            m[i, i0] += 1.0 - frac
            m[i, i1] += frac
    return m


def _shift_matrix_np(t_out, t_in, stride, offset):
    """A[i, j] = 1 iff j == stride*i + offset (out-of-range -> implicit 0-pad)."""
    a = np.zeros((t_out, t_in), np.float32)
    for i in range(t_out):
        j = stride * i + offset
        if 0 <= j < t_in:
            a[i, j] = 1.0
    return a


def _round16(n):
    return max(16, ((n + 15) // 16) * 16)


# ---------------------- parameters (synthetic, deterministic) ----------------

def _bn_fold(key, cout, w, conv_bias=None):
    """Fold eval-mode BatchNorm (synthetic gamma/beta/mean/var) into conv w/b."""
    k1, k2, k3, k4 = jax.random.split(key, 4)
    gamma = 1.0 + 0.1 * jax.random.normal(k1, (cout,), jnp.float32)
    beta = 0.1 * jax.random.normal(k2, (cout,), jnp.float32)
    mean = 0.1 * jax.random.normal(k3, (cout,), jnp.float32)
    var = 0.5 + jnp.abs(jax.random.normal(k4, (cout,), jnp.float32))
    scale = gamma / jnp.sqrt(var + BN_EPS)
    if conv_bias is None:
        conv_bias = jnp.zeros((cout,), jnp.float32)
    return np.asarray(w * scale), np.asarray((conv_bias - mean) * scale + beta)


def make_qir_params(key, n_in, n_out, expand):
    hidden = int(round(n_in * expand))
    keys = jax.random.split(key, 6)
    params = {}
    w1 = 0.3 * jax.random.normal(keys[0], (n_in, hidden), jnp.float32)
    params['expand'] = _bn_fold(keys[1], hidden, w1)                  # (ci,h),(h,)
    w2 = 0.3 * jax.random.normal(keys[2], (3, hidden), jnp.float32)   # depthwise k=3
    params['dw'] = _bn_fold(keys[3], hidden, w2)                      # (3,h),(h,)
    w3 = 0.3 * jax.random.normal(keys[4], (hidden, n_out), jnp.float32)
    params['proj'] = _bn_fold(keys[5], n_out, w3)                     # (h,co),(co,)
    return params


def make_convt_params(key, n_in, n_out, K=5):
    k1, k2, k3 = jax.random.split(key, 3)
    w = 0.2 * jax.random.normal(k1, (K, n_in, n_out), jnp.float32)
    conv_bias = 0.1 * jax.random.normal(k2, (n_out,), jnp.float32)
    return _bn_fold(k3, n_out, w, conv_bias)                          # (5,ci,co),(co,)


def make_params(key, layer_io, n_channel):
    keys = jax.random.split(key, 4)
    params = {}
    lkeys = jax.random.split(keys[0], len(layer_io))
    params['layers'] = [make_qir_params(lkeys[i], ni, no, 2)
                        for i, (ni, no) in enumerate(layer_io)]
    c = n_channel * 5
    ekeys = jax.random.split(keys[1], 3)
    params['enc_qir'] = [make_qir_params(ekeys[i], c, c, 2) for i in range(3)]
    ukeys = jax.random.split(keys[2], 3)
    params['enc_up'] = [make_convt_params(ukeys[i], c, c) for i in range(3)]
    hk = jax.random.split(keys[3], 4)
    params['cl'] = (np.asarray(0.2 * jax.random.normal(hk[0], (2 * c, 3), jnp.float32)),
                    np.asarray(0.1 * jax.random.normal(hk[1], (3,), jnp.float32)))
    params['tm'] = (np.asarray(0.2 * jax.random.normal(hk[2], (2 * c, 1), jnp.float32)),
                    np.asarray(0.1 * jax.random.normal(hk[3], (1,), jnp.float32)))
    return params


# ------------------- operand packing (host, channels-first) ------------------

def build_operands_and_cfg(key, T, n_channel=4, n_stride=8):
    assert n_stride == 8, "this script instantiates the n_stride=8 config"
    base = n_channel
    layer_io = [(3, base), (base, base * 2), (base * 2, base * 2),
                (base * 2, base * 3), (base * 3, base * 3),
                (base * 3, base * 4), (base * 4, base * 5)]
    strides = [1, 1, 2, 1, 2, 1, 2]
    enc_strides = [2, 2, 2]
    c_last = base * 5
    params = make_params(key, layer_io, n_channel)

    qir_io = layer_io + [(c_last, c_last)] * 3
    qir_strides = strides + enc_strides
    expand = 2

    # static per-layer bookkeeping + tap-slab row layout
    qir_cfg, t_cur, tap_off = [], T, 0
    for (ci, co), s in zip(qir_io, qir_strides):
        t_in, t_out = t_cur, t_cur // s
        hid = int(round(ci * expand))
        qir_cfg.append(dict(ci=ci, co=co, hid=hid, t_in=t_in, t_out=t_out,
                            s=s, use_res=(s == 1 and ci == co), off=tap_off))
        tap_off += _round16(t_in)
        t_cur = t_out
    n_backbone = len(layer_io)
    T1 = T // n_stride

    dec_cfg, doff = [], 0
    while t_cur < T1:
        dec_cfg.append(dict(t_in=t_cur, t_out=2 * t_cur, off=doff))
        doff += 16
        t_cur *= 2
    assert t_cur == T1 and len(dec_cfg) == 3

    n_qir = len(qir_cfg)
    H = max(c['hid'] for c in qir_cfg)
    CI = max(c['ci'] for c in qir_cfg)
    CO = max(c['co'] for c in qir_cfg)

    # stacked (zero-padded) QIR weights, channels-first orientation
    we_all = np.zeros((n_qir, H, CI), np.float32)
    be_all = np.zeros((n_qir, H, 1), np.float32)
    wd_all = np.zeros((n_qir, 3, H, 1), np.float32)
    bd_all = np.zeros((n_qir, H, 1), np.float32)
    wp_all = np.zeros((n_qir, CO, H), np.float32)
    bp_all = np.zeros((n_qir, CO, 1), np.float32)
    for li, (c, pr) in enumerate(zip(qir_cfg, params['layers'] + params['enc_qir'])):
        ci, co, hid = c['ci'], c['co'], c['hid']
        we, be = pr['expand']
        wd, bd = pr['dw']
        wp, bp = pr['proj']
        we_all[li, :hid, :ci] = we.T
        be_all[li, :hid, 0] = be
        wd_all[li, :, :hid, 0] = wd
        bd_all[li, :hid, 0] = bd
        wp_all[li, :co, :hid] = wp.T
        bp_all[li, :co, 0] = bp

    # backbone tap slab: per layer, the 3 depthwise taps (pad+stride folded)
    # concatenated along columns -> one (t_in, 3*t_out) matrix per layer.
    tap_rows = sum(_round16(c['t_in']) for c in qir_cfg)
    tap_w = max(3 * c['t_out'] for c in qir_cfg)
    taps = np.zeros((tap_rows, tap_w), np.float32)
    for c in qir_cfg:
        t_in, t_out, s, off = c['t_in'], c['t_out'], c['s'], c['off']
        for k in range(3):
            A = _shift_matrix_np(t_out, t_in, s, k - 1)          # (t_out, t_in)
            taps[off:off + t_in, k * t_out:(k + 1) * t_out] = A.T

    # decoder tap slab: x2 bilinear upsample folded into the 5 conv taps.
    dtap_rows = 16 * len(dec_cfg)
    dtap_w = max(5 * c['t_out'] for c in dec_cfg)
    dtaps = np.zeros((dtap_rows, dtap_w), np.float32)
    wct_all = np.zeros((len(dec_cfg), 5, CO, CO), np.float32)
    bct_all = np.zeros((len(dec_cfg), CO, 1), np.float32)
    for di, (c, (w, b)) in enumerate(zip(dec_cfg, params['enc_up'])):
        t_in, t_out, off = c['t_in'], c['t_out'], c['off']
        M = _upsample_matrix(t_in)                               # (t_out, t_in)
        for k in range(5):
            A = _shift_matrix_np(t_out, t_out, 1, k - 2)
            dtaps[off:off + t_in, k * t_out:(k + 1) * t_out] = (A @ M).T
            wct_all[di, k] = w[k].T                              # (co, ci)
        bct_all[di, :, 0] = b

    # merged heads (cl + tm), split by which half of cat([x1, x2]) they consume
    w_cl, b_cl = params['cl']
    w_tm, b_tm = params['tm']
    Whead = np.concatenate([w_cl, w_tm], axis=1).T               # (4, 2c)
    wh_all = np.stack([Whead[:, :c_last], Whead[:, c_last:]], axis=0)  # (2,4,c)
    bh_all = np.concatenate([b_cl, b_tm]).reshape(4, 1)

    # positional encoding table (host constant)
    tt = np.arange(T, dtype=np.float32) * (2.0 * PI / 4.0)
    pos = np.stack([np.sin(tt), np.sin(2.0 * tt), np.sin(4.0 * tt)], axis=0)

    ops = dict(
        pos=jnp.asarray(pos, jnp.float32),
        we=jnp.asarray(we_all, jnp.bfloat16),
        be=jnp.asarray(be_all, jnp.float32),
        wd=jnp.asarray(wd_all, jnp.float32),
        bd=jnp.asarray(bd_all, jnp.float32),
        wp=jnp.asarray(wp_all, jnp.bfloat16),
        bp=jnp.asarray(bp_all, jnp.float32),
        taps=jnp.asarray(taps, jnp.bfloat16),     # 0/1 entries: exact in bf16
        dtaps=jnp.asarray(dtaps, jnp.float32),
        wct=jnp.asarray(wct_all, jnp.float32),
        bct=jnp.asarray(bct_all, jnp.float32),
        wh=jnp.asarray(wh_all, jnp.float32),
        bh=jnp.asarray(bh_all, jnp.float32),
    )
    static = dict(qir_cfg=qir_cfg, dec_cfg=dec_cfg, n_backbone=n_backbone,
                  c_last=c_last, T1=T1, n_stride=n_stride)
    return ops, static


# ------------------------------ fused forward --------------------------------

def make_forward(ops, st):
    qir_cfg, dec_cfg = st['qir_cfg'], st['dec_cfg']
    n_backbone, c_last = st['n_backbone'], st['c_last']
    T1, n_stride = st['T1'], st['n_stride']
    op_names = ['pos', 'we', 'be', 'wd', 'bd', 'wp', 'bp',
                'taps', 'dtaps', 'wct', 'bct', 'wh', 'bh']
    op_list = [ops[k] for k in op_names]

    def kernel(x_ref, pos_ref, we_ref, be_ref, wd_ref, bd_ref, wp_ref, bp_ref,
               taps_ref, dtaps_ref, wct_ref, bct_ref, wh_ref, bh_ref, out_ref):
        bf16 = jnp.bfloat16
        h = x_ref[0] + pos_ref[...]                      # (3, T) f32, channels-first
        x1 = None

        # backbone + encoder inverted-residual blocks
        for li, c in enumerate(qir_cfg):
            ci, co, hid = c['ci'], c['co'], c['hid']
            t_in, t_out, off = c['t_in'], c['t_out'], c['off']
            # 1x1 expand + BN + ReLU
            we = we_ref[li, 0:hid, 0:ci]                 # (hid, ci) bf16
            y = jnp.dot(we, h.astype(bf16), preferred_element_type=jnp.float32)
            y = jnp.maximum(y + be_ref[li, 0:hid, :], 0.0)        # (hid, t_in)
            # depthwise k=3 (zero-pad + stride folded into one wide tap matmul)
            S = taps_ref[off:off + t_in, 0:3 * t_out]    # (t_in, 3*t_out) bf16
            Z = jnp.dot(y.astype(bf16), S, preferred_element_type=jnp.float32)
            acc = bd_ref[li, 0:hid, :]
            for k in range(3):
                acc = acc + wd_ref[li, k, 0:hid, :] * Z[:, k * t_out:(k + 1) * t_out]
            y = jnp.maximum(acc, 0.0)                    # (hid, t_out)
            # 1x1 project + BN (linear)
            wp = wp_ref[li, 0:co, 0:hid]                 # (co, hid) bf16
            y = jnp.dot(wp, y.astype(bf16), preferred_element_type=jnp.float32)
            y = y + bp_ref[li, 0:co, :]
            h = (h + y) if c['use_res'] else y
            if li == n_backbone - 1:
                x1 = h                                   # (c_last, T1)

        # decoder: x2 bilinear upsample folded into the 5 conv taps + BN + ReLU
        for di, c in enumerate(dec_cfg):
            t_in, t_out, off = c['t_in'], c['t_out'], c['off']
            S = dtaps_ref[off:off + t_in, 0:5 * t_out]   # (t_in, 5*t_out)
            Z = jnp.dot(h, S, preferred_element_type=jnp.float32)   # (c, 5*t_out)
            acc = bct_ref[di]                            # (c, 1)
            for k in range(5):
                acc = acc + jnp.dot(wct_ref[di, k], Z[:, k * t_out:(k + 1) * t_out],
                                    preferred_element_type=jnp.float32)
            h = jnp.maximum(acc, 0.0)
        x2 = h                                           # (c_last, T1)

        # fused heads (cl + tm) + channel softmax; channels-first (4, T1) output
        logits = (jnp.dot(wh_ref[0], x1, preferred_element_type=jnp.float32)
                  + jnp.dot(wh_ref[1], x2, preferred_element_type=jnp.float32)
                  + bh_ref[...])                         # (4, T1)
        cls = logits[0:3, :]
        mx = jnp.max(cls, axis=0, keepdims=True)
        e = jnp.exp(cls - mx)
        prob = e / jnp.sum(e, axis=0, keepdims=True)
        out_ref[0, 0:3, :] = prob
        out_ref[0, 3:4, :] = logits[3:4, :] * float(n_stride)

    def _const_spec(a):
        zeros = (0,) * a.ndim
        return pl.BlockSpec(tuple(a.shape), lambda b, _z=zeros: _z)

    def forward(x):
        B, C, T = x.shape
        out = pl.pallas_call(
            kernel,
            out_shape=jax.ShapeDtypeStruct((B, 4, T1), jnp.float32),
            grid=(B,),
            in_specs=[pl.BlockSpec((1, C, T), lambda b: (b, 0, 0))]
                     + [_const_spec(a) for a in op_list],
            out_specs=pl.BlockSpec((1, 4, T1), lambda b: (b, 0, 0)),
            compiler_params=pltpu.CompilerParams(
                dimension_semantics=("parallel",)),
        )(x, *op_list)
        prob = out[:, 0:3, :]                            # (B, 3, T1)
        out_time = out[:, 3, :]                          # (B, T1)
        return prob, out_time

    return forward


# ----------------------------------- main ------------------------------------

if __name__ == "__main__":
    key = jax.random.PRNGKey(0)
    kx, kp = jax.random.split(key)

    B, C, T = 2, 3, 128                                  # small shapes; T % 8 == 0
    n_stride = 8
    x = jax.random.normal(kx, (B, C, T), jnp.float32)

    ops, static = build_operands_and_cfg(kp, T, n_channel=4, n_stride=n_stride)
    fwd = jax.jit(make_forward(ops, static))

    prob, out_time = fwd(x)
    prob = jax.block_until_ready(prob)
    out_time = jax.block_until_ready(out_time)

    T1 = T // n_stride
    assert prob.shape == (B, 3, T1)
    assert out_time.shape == (B, T1)
    assert bool(jnp.all(jnp.isfinite(prob))) and bool(jnp.all(jnp.isfinite(out_time)))
    # softmax over channel dim must sum to 1
    assert bool(jnp.allclose(jnp.sum(prob, axis=1), 1.0, atol=1e-5))

    print("KERNEL_OK")
</pallas_src>

<mosaic_0001>
module attributes {stable_mosaic.version = 11 : i64} {
  func.func @kernel(%arg0: i32, %arg1: memref<1x3x128xf32, #tpu.memory_space<vmem>>, %arg2: memref<3x128xf32, #tpu.memory_space<vmem>>, %arg3: memref<10x40x20xbf16, #tpu.memory_space<vmem>>, %arg4: memref<10x40x1xf32, #tpu.memory_space<vmem>>, %arg5: memref<10x3x40x1xf32, #tpu.memory_space<vmem>>, %arg6: memref<10x40x1xf32, #tpu.memory_space<vmem>>, %arg7: memref<10x20x40xbf16, #tpu.memory_space<vmem>>, %arg8: memref<10x20x1xf32, #tpu.memory_space<vmem>>, %arg9: memref<624x384xbf16, #tpu.memory_space<vmem>>, %arg10: memref<48x80xf32, #tpu.memory_space<vmem>>, %arg11: memref<3x5x20x20xf32, #tpu.memory_space<vmem>>, %arg12: memref<3x20x1xf32, #tpu.memory_space<vmem>>, %arg13: memref<2x4x20xf32, #tpu.memory_space<vmem>>, %arg14: memref<4x1xf32, #tpu.memory_space<vmem>>, %arg15: memref<1x4x16xf32, #tpu.memory_space<vmem>>) attributes {dimension_semantics = [#tpu.dimension_semantics<parallel>], iteration_bounds = array<i64: 2>, scalar_prefetch = 0 : i64, scratch_operands = 0 : i64, tpu.core_type = #tpu.core_type<tc>, window_params = [{transform_indices = @transform_0, window_bounds = array<i64: 1, 3, 128>}, {pipeline_mode = #tpu.pipeline_mode<synchronous>, transform_indices = @transform_1, window_bounds = array<i64: 3, 128>}, {pipeline_mode = #tpu.pipeline_mode<synchronous>, transform_indices = @transform_2, window_bounds = array<i64: 10, 40, 20>}, {pipeline_mode = #tpu.pipeline_mode<synchronous>, transform_indices = @transform_3, window_bounds = array<i64: 10, 40, 1>}, {pipeline_mode = #tpu.pipeline_mode<synchronous>, transform_indices = @transform_4, window_bounds = array<i64: 10, 3, 40, 1>}, {pipeline_mode = #tpu.pipeline_mode<synchronous>, transform_indices = @transform_5, window_bounds = array<i64: 10, 40, 1>}, {pipeline_mode = #tpu.pipeline_mode<synchronous>, transform_indices = @transform_6, window_bounds = array<i64: 10, 20, 40>}, {pipeline_mode = #tpu.pipeline_mode<synchronous>, transform_indices = @transform_7, window_bounds = array<i64: 10, 20, 1>}, {pipeline_mode = #tpu.pipeline_mode<synchronous>, transform_indices = @transform_8, window_bounds = array<i64: 624, 384>}, {pipeline_mode = #tpu.pipeline_mode<synchronous>, transform_indices = @transform_9, window_bounds = array<i64: 48, 80>}, {pipeline_mode = #tpu.pipeline_mode<synchronous>, transform_indices = @transform_10, window_bounds = array<i64: 3, 5, 20, 20>}, {pipeline_mode = #tpu.pipeline_mode<synchronous>, transform_indices = @transform_11, window_bounds = array<i64: 3, 20, 1>}, {pipeline_mode = #tpu.pipeline_mode<synchronous>, transform_indices = @transform_12, window_bounds = array<i64: 2, 4, 20>}, {pipeline_mode = #tpu.pipeline_mode<synchronous>, transform_indices = @transform_13, window_bounds = array<i64: 4, 1>}, {transform_indices = @transform_14, window_bounds = array<i64: 1, 4, 16>}]} {
    %c0 = arith.constant 0 : index
    %c0_0 = arith.constant 0 : index
    %c0_1 = arith.constant 0 : index
    %0 = vector.load %arg1[%c0, %c0_0, %c0_1] : memref<1x3x128xf32, #tpu.memory_space<vmem>>, vector<1x3x128xf32>
    %1 = vector.shape_cast %0 : vector<1x3x128xf32> to vector<3x128xf32>
    %c0_2 = arith.constant 0 : index
    %c0_3 = arith.constant 0 : index
    %2 = vector.load %arg2[%c0_2, %c0_3] : memref<3x128xf32, #tpu.memory_space<vmem>>, vector<3x128xf32>
    %3 = arith.addf %1, %2 : vector<3x128xf32>
    %c0_4 = arith.constant 0 : index
    %c0_5 = arith.constant 0 : index
    %c0_6 = arith.constant 0 : index
    %4 = vector.load %arg3[%c0_4, %c0_5, %c0_6] : memref<10x40x20xbf16, #tpu.memory_space<vmem>>, vector<1x6x3xbf16>
    %5 = vector.shape_cast %4 : vector<1x6x3xbf16> to vector<6x3xbf16>
    %6 = arith.truncf %3 : vector<3x128xf32> to vector<3x128xbf16>
    %cst = arith.constant dense<0.000000e+00> : vector<6x128xf32>
    %7 = tpu.matmul %5, %6, %cst {dimension_numbers = #tpu.dot_dimension_numbers<[1], [0], [0], [1], [0, 0, 1, 1], [], []>} : vector<6x3xbf16>, vector<3x128xbf16>, vector<6x128xf32> -> vector<6x128xf32>
    %c0_7 = arith.constant 0 : index
    %c0_8 = arith.constant 0 : index
    %c0_9 = arith.constant 0 : index
    %8 = vector.load %arg4[%c0_7, %c0_8, %c0_9] : memref<10x40x1xf32, #tpu.memory_space<vmem>>, vector<1x6x1xf32>
    %9 = vector.shape_cast %8 : vector<1x6x1xf32> to vector<6x1xf32>
    %10 = vector.broadcast %9 : vector<6x1xf32> to vector<6x128xf32>
    %11 = arith.addf %7, %10 : vector<6x128xf32>
    %cst_10 = arith.constant 0.000000e+00 : f32
    %12 = vector.broadcast %cst_10 : f32 to vector<6x128xf32>
    %13 = arith.maximumf %11, %12 : vector<6x128xf32>
    %c0_11 = arith.constant 0 : index
    %c0_12 = arith.constant 0 : index
    %14 = vector.load %arg9[%c0_11, %c0_12] : memref<624x384xbf16, #tpu.memory_space<vmem>>, vector<128x384xbf16>
    %15 = arith.truncf %13 : vector<6x128xf32> to vector<6x128xbf16>
    %cst_13 = arith.constant dense<0.000000e+00> : vector<6x384xf32>
    %16 = tpu.matmul %15, %14, %cst_13 {dimension_numbers = #tpu.dot_dimension_numbers<[1], [0], [0], [1], [0, 0, 1, 1], [], []>} : vector<6x128xbf16>, vector<128x384xbf16>, vector<6x384xf32> -> vector<6x384xf32>
    %c0_14 = arith.constant 0 : index
    %c0_15 = arith.constant 0 : index
    %c0_16 = arith.constant 0 : index
    %17 = vector.load %arg6[%c0_14, %c0_15, %c0_16] : memref<10x40x1xf32, #tpu.memory_space<vmem>>, vector<1x6x1xf32>
    %18 = vector.shape_cast %17 : vector<1x6x1xf32> to vector<6x1xf32>
    %c0_17 = arith.constant 0 : index
    %c0_18 = arith.constant 0 : index
    %c0_19 = arith.constant 0 : index
    %c0_20 = arith.constant 0 : index
    %19 = vector.load %arg5[%c0_17, %c0_18, %c0_19, %c0_20] : memref<10x3x40x1xf32, #tpu.memory_space<vmem>>, vector<1x1x6x1xf32>
    %20 = vector.shape_cast %19 : vector<1x1x6x1xf32> to vector<6x1xf32>
    %21 = vector.extract_strided_slice %16 {offsets = [0, 0], sizes = [6, 128], strides = [1, 1]} : vector<6x384xf32> to vector<6x128xf32>
    %22 = vector.broadcast %20 : vector<6x1xf32> to vector<6x128xf32>
    %23 = arith.mulf %22, %21 : vector<6x128xf32>
    %24 = vector.broadcast %18 : vector<6x1xf32> to vector<6x128xf32>
    %25 = arith.addf %24, %23 : vector<6x128xf32>
    %c0_21 = arith.constant 0 : index
    %c1 = arith.constant 1 : index
    %c0_22 = arith.constant 0 : index
    %c0_23 = arith.constant 0 : index
    %26 = vector.load %arg5[%c0_21, %c1, %c0_22, %c0_23] : memref<10x3x40x1xf32, #tpu.memory_space<vmem>>, vector<1x1x6x1xf32>
    %27 = vector.shape_cast %26 : vector<1x1x6x1xf32> to vector<6x1xf32>
    %28 = vector.extract_strided_slice %16 {offsets = [0, 128], sizes = [6, 128], strides = [1, 1]} : vector<6x384xf32> to vector<6x128xf32>
    %29 = vector.broadcast %27 : vector<6x1xf32> to vector<6x128xf32>
    %30 = arith.mulf %29, %28 : vector<6x128xf32>
    %31 = arith.addf %25, %30 : vector<6x128xf32>
    %c0_24 = arith.constant 0 : index
    %c2 = arith.constant 2 : index
    %c0_25 = arith.constant 0 : index
    %c0_26 = arith.constant 0 : index
    %32 = vector.load %arg5[%c0_24, %c2, %c0_25, %c0_26] : memref<10x3x40x1xf32, #tpu.memory_space<vmem>>, vector<1x1x6x1xf32>
    %33 = vector.shape_cast %32 : vector<1x1x6x1xf32> to vector<6x1xf32>
    %34 = vector.extract_strided_slice %16 {offsets = [0, 256], sizes = [6, 128], strides = [1, 1]} : vector<6x384xf32> to vector<6x128xf32>
    %35 = vector.broadcast %33 : vector<6x1xf32> to vector<6x128xf32>
    %36 = arith.mulf %35, %34 : vector<6x128xf32>
    %37 = arith.addf %31, %36 : vector<6x128xf32>
    %cst_27 = arith.constant 0.000000e+00 : f32
    %38 = vector.broadcast %cst_27 : f32 to vector<6x128xf32>
    %39 = arith.maximumf %37, %38 : vector<6x128xf32>
    %c0_28 = arith.constant 0 : index
    %c0_29 = arith.constant 0 : index
    %c0_30 = arith.constant 0 : index
    %40 = vector.load %arg7[%c0_28, %c0_29, %c0_30] : memref<10x20x40xbf16, #tpu.memory_space<vmem>>, vector<1x4x6xbf16>
    %41 = vector.shape_cast %40 : vector<1x4x6xbf16> to vector<4x6xbf16>
    %42 = arith.truncf %39 : vector<6x128xf32> to vector<6x128xbf16>
    %cst_31 = arith.constant dense<0.000000e+00> : vector<4x128xf32>
    %43 = tpu.matmul %41, %42, %cst_31 {dimension_numbers = #tpu.dot_dimension_numbers<[1], [0], [0], [1], [0, 0, 1, 1], [], []>} : vector<4x6xbf16>, vector<6x128xbf16>, vector<4x128xf32> -> vector<4x128xf32>
    %c0_32 = arith.constant 0 : index
    %c0_33 = arith.constant 0 : index
    %c0_34 = arith.constant 0 : index
    %44 = vector.load %arg8[%c0_32, %c0_33, %c0_34] : memref<10x20x1xf32, #tpu.memory_space<vmem>>, vector<1x4x1xf32>
    %45 = vector.shape_cast %44 : vector<1x4x1xf32> to vector<4x1xf32>
    %46 = vector.broadcast %45 : vector<4x1xf32> to vector<4x128xf32>
    %47 = arith.addf %43, %46 : vector<4x128xf32>
    %c1_35 = arith.constant 1 : index
    %c0_36 = arith.constant 0 : index
    %c0_37 = arith.constant 0 : index
    %48 = vector.load %arg3[%c1_35, %c0_36, %c0_37] : memref<10x40x20xbf16, #tpu.memory_space<vmem>>, vector<1x8x4xbf16>
    %49 = vector.shape_cast %48 : vector<1x8x4xbf16> to vector<8x4xbf16>
    %50 = arith.truncf %47 : vector<4x128xf32> to vector<4x128xbf16>
    %cst_38 = arith.constant dense<0.000000e+00> : vector<8x128xf32>
    %51 = tpu.matmul %49, %50, %cst_38 {dimension_numbers = #tpu.dot_dimension_numbers<[1], [0], [0], [1], [0, 0, 1, 1], [], []>} : vector<8x4xbf16>, vector<4x128xbf16>, vector<8x128xf32> -> vector<8x128xf32>
    %c1_39 = arith.constant 1 : index
    %c0_40 = arith.constant 0 : index
    %c0_41 = arith.constant 0 : index
    %52 = vector.load %arg4[%c1_39, %c0_40, %c0_41] : memref<10x40x1xf32, #tpu.memory_space<vmem>>, vector<1x8x1xf32>
    %53 = vector.shape_cast %52 : vector<1x8x1xf32> to vector<8x1xf32>
    %54 = vector.broadcast %53 : vector<8x1xf32> to vector<8x128xf32>
    %55 = arith.addf %51, %54 : vector<8x128xf32>
    %cst_42 = arith.constant 0.000000e+00 : f32
    %56 = vector.broadcast %cst_42 : f32 to vector<8x128xf32>
    %57 = arith.maximumf %55, %56 : vector<8x128xf32>
    %c128 = arith.constant 128 : index
    %c0_43 = arith.constant 0 : index
    %58 = vector.load %arg9[%c128, %c0_43] : memref<624x384xbf16, #tpu.memory_space<vmem>>, vector<128x384xbf16>
    %59 = arith.truncf %57 : vector<8x128xf32> to vector<8x128xbf16>
    %cst_44 = arith.constant dense<0.000000e+00> : vector<8x384xf32>
    %60 = tpu.matmul %59, %58, %cst_44 {dimension_numbers = #tpu.dot_dimension_numbers<[1], [0], [0], [1], [0, 0, 1, 1], [], []>} : vector<8x128xbf16>, vector<128x384xbf16>, vector<8x384xf32> -> vector<8x384xf32>
    %c1_45 = arith.constant 1 : index
    %c0_46 = arith.constant 0 : index
    %c0_47 = arith.constant 0 : index
    %61 = vector.load %arg6[%c1_45, %c0_46, %c0_47] : memref<10x40x1xf32, #tpu.memory_space<vmem>>, vector<1x8x1xf32>
    %62 = vector.shape_cast %61 : vector<1x8x1xf32> to vector<8x1xf32>
    %c1_48 = arith.constant 1 : index
    %c0_49 = arith.constant 0 : index
    %c0_50 = arith.constant 0 : index
    %c0_51 = arith.constant 0 : index
    %63 = vector.load %arg5[%c1_48, %c0_49, %c0_50, %c0_51] : memref<10x3x40x1xf32, #tpu.memory_space<vmem>>, vector<1x1x8x1xf32>
    %64 = vector.shape_cast %63 : vector<1x1x8x1xf32> to vector<8x1xf32>
    %65 = vector.extract_strided_slice %60 {offsets = [0, 0], sizes = [8, 128], strides = [1, 1]} : vector<8x384xf32> to vector<8x128xf32>
    %66 = vector.broadcast %64 : vector<8x1xf32> to vector<8x128xf32>
    %67 = arith.mulf %66, %65 : vector<8x128xf32>
    %68 = vector.broadcast %62 : vector<8x1xf32> to vector<8x128xf32>
    %69 = arith.addf %68, %67 : vector<8x128xf32>
    %c1_52 = arith.constant 1 : index
    %c1_53 = arith.constant 1 : index
    %c0_54 = arith.constant 0 : index
    %c0_55 = arith.constant 0 : index
    %70 = vector.load %arg5[%c1_52, %c1_53, %c0_54, %c0_55] : memref<10x3x40x1xf32, #tpu.memory_space<vmem>>, vector<1x1x8x1xf32>
    %71 = vector.shape_cast %70 : vector<1x1x8x1xf32> to vector<8x1xf32>
    %72 = vector.extract_strided_slice %60 {offsets = [0, 128], sizes = [8, 128], strides = [1, 1]} : vector<8x384xf32> to vector<8x128xf32>
    %73 = vector.broadcast %71 : vector<8x1xf32> to vector<8x128xf32>
    %74 = arith.mulf %73, %72 : vector<8x128xf32>
    %75 = arith.addf %69, %74 : vector<8x128xf32>
    %c1_56 = arith.constant 1 : index
    %c2_57 = arith.constant 2 : index
    %c0_58 = arith.constant 0 : index
    %c0_59 = arith.constant 0 : index
    %76 = vector.load %arg5[%c1_56, %c2_57, %c0_58, %c0_59] : memref<10x3x40x1xf32, #tpu.memory_space<vmem>>, vector<1x1x8x1xf32>
    %77 = vector.shape_cast %76 : vector<1x1x8x1xf32> to vector<8x1xf32>
    %78 = vector.extract_strided_slice %60 {offsets = [0, 256], sizes = [8, 128], strides = [1, 1]} : vector<8x384xf32> to vector<8x128xf32>
    %79 = vector.broadcast %77 : vector<8x1xf32> to vector<8x128xf32>
    %80 = arith.mulf %79, %78 : vector<8x128xf32>
    %81 = arith.addf %75, %80 : vector<8x128xf32>
    %cst_60 = arith.constant 0.000000e+00 : f32
    %82 = vector.broadcast %cst_60 : f32 to vector<8x128xf32>
    %83 = arith.maximumf %81, %82 : vector<8x128xf32>
    %c1_61 = arith.constant 1 : index
    %c0_62 = arith.constant 0 : index
    %c0_63 = arith.constant 0 : index
    %84 = vector.load %arg7[%c1_61, %c0_62, %c0_63] : memref<10x20x40xbf16, #tpu.memory_space<vmem>>, vector<1x8x8xbf16>
    %85 = vector.shape_cast %84 : vector<1x8x8xbf16> to vector<8x8xbf16>
    %86 = arith.truncf %83 : vector<8x128xf32> to vector<8x128xbf16>
    %cst_64 = arith.constant dense<0.000000e+00> : vector<8x128xf32>
    %87 = tpu.matmul %85, %86, %cst_64 {dimension_numbers = #tpu.dot_dimension_numbers<[1], [0], [0], [1], [0, 0, 1, 1], [], []>} : vector<8x8xbf16>, vector<8x128xbf16>, vector<8x128xf32> -> vector<8x128xf32>
    %c1_65 = arith.constant 1 : index
    %c0_66 = arith.constant 0 : index
    %c0_67 = arith.constant 0 : index
    %88 = vector.load %arg8[%c1_65, %c0_66, %c0_67] : memref<10x20x1xf32, #tpu.memory_space<vmem>>, vector<1x8x1xf32>
    %89 = vector.shape_cast %88 : vector<1x8x1xf32> to vector<8x1xf32>
    %90 = vector.broadcast %89 : vector<8x1xf32> to vector<8x128xf32>
    %91 = arith.addf %87, %90 : vector<8x128xf32>
    %c2_68 = arith.constant 2 : index
    %c0_69 = arith.constant 0 : index
    %c0_70 = arith.constant 0 : index
    %92 = vector.load %arg3[%c2_68, %c0_69, %c0_70] : memref<10x40x20xbf16, #tpu.memory_space<vmem>>, vector<1x16x8xbf16>
    %93 = vector.shape_cast %92 : vector<1x16x8xbf16> to vector<16x8xbf16>
    %94 = arith.truncf %91 : vector<8x128xf32> to vector<8x128xbf16>
    %cst_71 = arith.constant dense<0.000000e+00> : vector<16x128xf32>
    %95 = tpu.matmul %93, %94, %cst_71 {dimension_numbers = #tpu.dot_dimension_numbers<[1], [0], [0], [1], [0, 0, 1, 1], [], []>} : vector<16x8xbf16>, vector<8x128xbf16>, vector<16x128xf32> -> vector<16x128xf32>
    %c2_72 = arith.constant 2 : index
    %c0_73 = arith.constant 0 : index
    %c0_74 = arith.constant 0 : index
    %96 = vector.load %arg4[%c2_72, %c0_73, %c0_74] : memref<10x40x1xf32, #tpu.memory_space<vmem>>, vector<1x16x1xf32>
    %97 = vector.shape_cast %96 : vector<1x16x1xf32> to vector<16x1xf32>
    %98 = vector.broadcast %97 : vector<16x1xf32> to vector<16x128xf32>
    %99 = arith.addf %95, %98 : vector<16x128xf32>
    %cst_75 = arith.constant 0.000000e+00 : f32
    %100 = vector.broadcast %cst_75 : f32 to vector<16x128xf32>
    %101 = arith.maximumf %99, %100 : vector<16x128xf32>
    %c256 = arith.constant 256 : index
    %c0_76 = arith.constant 0 : index
    %102 = vector.load %arg9[%c256, %c0_76] : memref<624x384xbf16, #tpu.memory_space<vmem>>, vector<128x192xbf16>
    %103 = arith.truncf %101 : vector<16x128xf32> to vector<16x128xbf16>
    %cst_77 = arith.constant dense<0.000000e+00> : vector<16x192xf32>
    %104 = tpu.matmul %103, %102, %cst_77 {dimension_numbers = #tpu.dot_dimension_numbers<[1], [0], [0], [1], [0, 0, 1, 1], [], []>} : vector<16x128xbf16>, vector<128x192xbf16>, vector<16x192xf32> -> vector<16x192xf32>
    %c2_78 = arith.constant 2 : index
    %c0_79 = arith.constant 0 : index
    %c0_80 = arith.constant 0 : index
    %105 = vector.load %arg6[%c2_78, %c0_79, %c0_80] : memref<10x40x1xf32, #tpu.memory_space<vmem>>, vector<1x16x1xf32>
    %106 = vector.shape_cast %105 : vector<1x16x1xf32> to vector<16x1xf32>
    %c2_81 = arith.constant 2 : index
    %c0_82 = arith.constant 0 : index
    %c0_83 = arith.constant 0 : index
    %c0_84 = arith.constant 0 : index
    %107 = vector.load %arg5[%c2_81, %c0_82, %c0_83, %c0_84] : memref<10x3x40x1xf32, #tpu.memory_space<vmem>>, vector<1x1x16x1xf32>
    %108 = vector.shape_cast %107 : vector<1x1x16x1xf32> to vector<16x1xf32>
    %109 = vector.extract_strided_slice %104 {offsets = [0, 0], sizes = [16, 64], strides = [1, 1]} : vector<16x192xf32> to vector<16x64xf32>
    %110 = vector.broadcast %108 : vector<16x1xf32> to vector<16x64xf32>
    %111 = arith.mulf %110, %109 : vector<16x64xf32>
    %112 = vector.broadcast %106 : vector<16x1xf32> to vector<16x64xf32>
    %113 = arith.addf %112, %111 : vector<16x64xf32>
    %c2_85 = arith.constant 2 : index
    %c1_86 = arith.constant 1 : index
    %c0_87 = arith.constant 0 : index
    %c0_88 = arith.constant 0 : index
    %114 = vector.load %arg5[%c2_85, %c1_86, %c0_87, %c0_88] : memref<10x3x40x1xf32, #tpu.memory_space<vmem>>, vector<1x1x16x1xf32>
    %115 = vector.shape_cast %114 : vector<1x1x16x1xf32> to vector<16x1xf32>
    %116 = vector.extract_strided_slice %104 {offsets = [0, 64], sizes = [16, 64], strides = [1, 1]} : vector<16x192xf32> to vector<16x64xf32>
    %117 = vector.broadcast %115 : vector<16x1xf32> to vector<16x64xf32>
    %118 = arith.mulf %117, %116 : vector<16x64xf32>
    %119 = arith.addf %113, %118 : vector<16x64xf32>
    %c2_89 = arith.constant 2 : index
    %c2_90 = arith.constant 2 : index
    %c0_91 = arith.constant 0 : index
    %c0_92 = arith.constant 0 : index
    %120 = vector.load %arg5[%c2_89, %c2_90, %c0_91, %c0_92] : memref<10x3x40x1xf32, #tpu.memory_space<vmem>>, vector<1x1x16x1xf32>
    %121 = vector.shape_cast %120 : vector<1x1x16x1xf32> to vector<16x1xf32>
    %122 = vector.extract_strided_slice %104 {offsets = [0, 128], sizes = [16, 64], strides = [1, 1]} : vector<16x192xf32> to vector<16x64xf32>
    %123 = vector.broadcast %121 : vector<16x1xf32> to vector<16x64xf32>
    %124 = arith.mulf %123, %122 : vector<16x64xf32>
    %125 = arith.addf %119, %124 : vector<16x64xf32>
    %cst_93 = arith.constant 0.000000e+00 : f32
    %126 = vector.broadcast %cst_93 : f32 to vector<16x64xf32>
    %127 = arith.maximumf %125, %126 : vector<16x64xf32>
    %c2_94 = arith.constant 2 : index
    %c0_95 = arith.constant 0 : index
    %c0_96 = arith.constant 0 : index
    %128 = vector.load %arg7[%c2_94, %c0_95, %c0_96] : memref<10x20x40xbf16, #tpu.memory_space<vmem>>, vector<1x8x16xbf16>
    %129 = vector.shape_cast %128 : vector<1x8x16xbf16> to vector<8x16xbf16>
    %130 = arith.truncf %127 : vector<16x64xf32> to vector<16x64xbf16>
    %cst_97 = arith.constant dense<0.000000e+00> : vector<8x64xf32>
    %131 = tpu.matmul %129, %130, %cst_97 {dimension_numbers = #tpu.dot_dimension_numbers<[1], [0], [0], [1], [0, 0, 1, 1], [], []>} : vector<8x16xbf16>, vector<16x64xbf16>, vector<8x64xf32> -> vector<8x64xf32>
    %c2_98 = arith.constant 2 : index
    %c0_99 = arith.constant 0 : index
    %c0_100 = arith.constant 0 : index
    %132 = vector.load %arg8[%c2_98, %c0_99, %c0_100] : memref<10x20x1xf32, #tpu.memory_space<vmem>>, vector<1x8x1xf32>
    %133 = vector.shape_cast %132 : vector<1x8x1xf32> to vector<8x1xf32>
    %134 = vector.broadcast %133 : vector<8x1xf32> to vector<8x64xf32>
    %135 = arith.addf %131, %134 : vector<8x64xf32>
    %c3 = arith.constant 3 : index
    %c0_101 = arith.constant 0 : index
    %c0_102 = arith.constant 0 : index
    %136 = vector.load %arg3[%c3, %c0_101, %c0_102] : memref<10x40x20xbf16, #tpu.memory_space<vmem>>, vector<1x16x8xbf16>
    %137 = vector.shape_cast %136 : vector<1x16x8xbf16> to vector<16x8xbf16>
    %138 = arith.truncf %135 : vector<8x64xf32> to vector<8x64xbf16>
    %cst_103 = arith.constant dense<0.000000e+00> : vector<16x64xf32>
    %139 = tpu.matmul %137, %138, %cst_103 {dimension_numbers = #tpu.dot_dimension_numbers<[1], [0], [0], [1], [0, 0, 1, 1], [], []>} : vector<16x8xbf16>, vector<8x64xbf16>, vector<16x64xf32> -> vector<16x64xf32>
    %c3_104 = arith.constant 3 : index
    %c0_105 = arith.constant 0 : index
    %c0_106 = arith.constant 0 : index
    %140 = vector.load %arg4[%c3_104, %c0_105, %c0_106] : memref<10x40x1xf32, #tpu.memory_space<vmem>>, vector<1x16x1xf32>
    %141 = vector.shape_cast %140 : vector<1x16x1xf32> to vector<16x1xf32>
    %142 = vector.broadcast %141 : vector<16x1xf32> to vector<16x64xf32>
    %143 = arith.addf %139, %142 : vector<16x64xf32>
    %cst_107 = arith.constant 0.000000e+00 : f32
    %144 = vector.broadcast %cst_107 : f32 to vector<16x64xf32>
    %145 = arith.maximumf %143, %144 : vector<16x64xf32>
    %c384 = arith.constant 384 : index
    %c0_108 = arith.constant 0 : index
    %146 = vector.load %arg9[%c384, %c0_108] : memref<624x384xbf16, #tpu.memory_space<vmem>>, vector<64x192xbf16>
    %147 = arith.truncf %145 : vector<16x64xf32> to vector<16x64xbf16>
    %cst_109 = arith.constant dense<0.000000e+00> : vector<16x192xf32>
    %148 = tpu.matmul %147, %146, %cst_109 {dimension_numbers = #tpu.dot_dimension_numbers<[1], [0], [0], [1], [0, 0, 1, 1], [], []>} : vector<16x64xbf16>, vector<64x192xbf16>, vector<16x192xf32> -> vector<16x192xf32>
    %c3_110 = arith.constant 3 : index
    %c0_111 = arith.constant 0 : index
    %c0_112 = arith.constant 0 : index
    %149 = vector.load %arg6[%c3_110, %c0_111, %c0_112] : memref<10x40x1xf32, #tpu.memory_space<vmem>>, vector<1x16x1xf32>
    %150 = vector.shape_cast %149 : vector<1x16x1xf32> to vector<16x1xf32>
    %c3_113 = arith.constant 3 : index
    %c0_114 = arith.constant 0 : index
    %c0_115 = arith.constant 0 : index
    %c0_116 = arith.constant 0 : index
    %151 = vector.load %arg5[%c3_113, %c0_114, %c0_115, %c0_116] : memref<10x3x40x1xf32, #tpu.memory_space<vmem>>, vector<1x1x16x1xf32>
    %152 = vector.shape_cast %151 : vector<1x1x16x1xf32> to vector<16x1xf32>
    %153 = vector.extract_strided_slice %148 {offsets = [0, 0], sizes = [16, 64], strides = [1, 1]} : vector<16x192xf32> to vector<16x64xf32>
    %154 = vector.broadcast %152 : vector<16x1xf32> to vector<16x64xf32>
    %155 = arith.mulf %154, %153 : vector<16x64xf32>
    %156 = vector.broadcast %150 : vector<16x1xf32> to vector<16x64xf32>
    %157 = arith.addf %156, %155 : vector<16x64xf32>
    %c3_117 = arith.constant 3 : index
    %c1_118 = arith.constant 1 : index
    %c0_119 = arith.constant 0 : index
    %c0_120 = arith.constant 0 : index
    %158 = vector.load %arg5[%c3_117, %c1_118, %c0_119, %c0_120] : memref<10x3x40x1xf32, #tpu.memory_space<vmem>>, vector<1x1x16x1xf32>
    %159 = vector.shape_cast %158 : vector<1x1x16x1xf32> to vector<16x1xf32>
    %160 = vector.extract_strided_slice %148 {offsets = [0, 64], sizes = [16, 64], strides = [1, 1]} : vector<16x192xf32> to vector<16x64xf32>
    %161 = vector.broadcast %159 : vector<16x1xf32> to vector<16x64xf32>
    %162 = arith.mulf %161, %160 : vector<16x64xf32>
    %163 = arith.addf %157, %162 : vector<16x64xf32>
    %c3_121 = arith.constant 3 : index
    %c2_122 = arith.constant 2 : index
    %c0_123 = arith.constant 0 : index
    %c0_124 = arith.constant 0 : index
    %164 = vector.load %arg5[%c3_121, %c2_122, %c0_123, %c0_124] : memref<10x3x40x1xf32, #tpu.memory_space<vmem>>, vector<1x1x16x1xf32>
    %165 = vector.shape_cast %164 : vector<1x1x16x1xf32> to vector<16x1xf32>
    %166 = vector.extract_strided_slice %148 {offsets = [0, 128], sizes = [16, 64], strides = [1, 1]} : vector<16x192xf32> to vector<16x64xf32>
    %167 = vector.broadcast %165 : vector<16x1xf32> to vector<16x64xf32>
    %168 = arith.mulf %167, %166 : vector<16x64xf32>
    %169 = arith.addf %163, %168 : vector<16x64xf32>
    %cst_125 = arith.constant 0.000000e+00 : f32
    %170 = vector.broadcast %cst_125 : f32 to vector<16x64xf32>
    %171 = arith.maximumf %169, %170 : vector<16x64xf32>
    %c3_126 = arith.constant 3 : index
    %c0_127 = arith.constant 0 : index
    %c0_128 = arith.constant 0 : index
    %172 = vector.load %arg7[%c3_126, %c0_127, %c0_128] : memref<10x20x40xbf16, #tpu.memory_space<vmem>>, vector<1x12x16xbf16>
    %173 = vector.shape_cast %172 : vector<1x12x16xbf16> to vector<12x16xbf16>
    %174 = arith.truncf %171 : vector<16x64xf32> to vector<16x64xbf16>
    %cst_129 = arith.constant dense<0.000000e+00> : vector<12x64xf32>
    %175 = tpu.matmul %173, %174, %cst_129 {dimension_numbers = #tpu.dot_dimension_numbers<[1], [0], [0], [1], [0, 0, 1, 1], [], []>} : vector<12x16xbf16>, vector<16x64xbf16>, vector<12x64xf32> -> vector<12x64xf32>
    %c3_130 = arith.constant 3 : index
    %c0_131 = arith.constant 0 : index
    %c0_132 = arith.constant 0 : index
    %176 = vector.load %arg8[%c3_130, %c0_131, %c0_132] : memref<10x20x1xf32, #tpu.memory_space<vmem>>, vector<1x12x1xf32>
    %177 = vector.shape_cast %176 : vector<1x12x1xf32> to vector<12x1xf32>
    %178 = vector.broadcast %177 : vector<12x1xf32> to vector<12x64xf32>
    %179 = arith.addf %175, %178 : vector<12x64xf32>
    %c4 = arith.constant 4 : index
    %c0_133 = arith.constant 0 : index
    %c0_134 = arith.constant 0 : index
    %180 = vector.load %arg3[%c4, %c0_133, %c0_134] : memref<10x40x20xbf16, #tpu.memory_space<vmem>>, vector<1x24x12xbf16>
    %181 = vector.shape_cast %180 : vector<1x24x12xbf16> to vector<24x12xbf16>
    %182 = arith.truncf %179 : vector<12x64xf32> to vector<12x64xbf16>
    %cst_135 = arith.constant dense<0.000000e+00> : vector<24x64xf32>
    %183 = tpu.matmul %181, %182, %cst_135 {dimension_numbers = #tpu.dot_dimension_numbers<[1], [0], [0], [1], [0, 0, 1, 1], [], []>} : vector<24x12xbf16>, vector<12x64xbf16>, vector<24x64xf32> -> vector<24x64xf32>
    %c4_136 = arith.constant 4 : index
    %c0_137 = arith.constant 0 : index
    %c0_138 = arith.constant 0 : index
    %184 = vector.load %arg4[%c4_136, %c0_137, %c0_138] : memref<10x40x1xf32, #tpu.memory_space<vmem>>, vector<1x24x1xf32>
    %185 = vector.shape_cast %184 : vector<1x24x1xf32> to vector<24x1xf32>
    %186 = vector.broadcast %185 : vector<24x1xf32> to vector<24x64xf32>
    %187 = arith.addf %183, %186 : vector<24x64xf32>
    %cst_139 = arith.constant 0.000000e+00 : f32
    %188 = vector.broadcast %cst_139 : f32 to vector<24x64xf32>
    %189 = arith.maximumf %187, %188 : vector<24x64xf32>
    %c448 = arith.constant 448 : index
    %c0_140 = arith.constant 0 : index
    %190 = vector.load %arg9[%c448, %c0_140] : memref<624x384xbf16, #tpu.memory_space<vmem>>, vector<64x96xbf16>
    %191 = arith.truncf %189 : vector<24x64xf32> to vector<24x64xbf16>
    %cst_141 = arith.constant dense<0.000000e+00> : vector<24x96xf32>
    %192 = tpu.matmul %191, %190, %cst_141 {dimension_numbers = #tpu.dot_dimension_numbers<[1], [0], [0], [1], [0, 0, 1, 1], [], []>} : vector<24x64xbf16>, vector<64x96xbf16>, vector<24x96xf32> -> vector<24x96xf32>
    %c4_142 = arith.constant 4 : index
    %c0_143 = arith.constant 0 : index
    %c0_144 = arith.constant 0 : index
    %193 = vector.load %arg6[%c4_142, %c0_143, %c0_144] : memref<10x40x1xf32, #tpu.memory_space<vmem>>, vector<1x24x1xf32>
    %194 = vector.shape_cast %193 : vector<1x24x1xf32> to vector<24x1xf32>
    %c4_145 = arith.constant 4 : index
    %c0_146 = arith.constant 0 : index
    %c0_147 = arith.constant 0 : index
    %c0_148 = arith.constant 0 : index
    %195 = vector.load %arg5[%c4_145, %c0_146, %c0_147, %c0_148] : memref<10x3x40x1xf32, #tpu.memory_space<vmem>>, vector<1x1x24x1xf32>
    %196 = vector.shape_cast %195 : vector<1x1x24x1xf32> to vector<24x1xf32>
    %197 = vector.extract_strided_slice %192 {offsets = [0, 0], sizes = [24, 32], strides = [1, 1]} : vector<24x96xf32> to vector<24x32xf32>
    %198 = vector.broadcast %196 : vector<24x1xf32> to vector<24x32xf32>
    %199 = arith.mulf %198, %197 : vector<24x32xf32>
    %200 = vector.broadcast %194 : vector<24x1xf32> to vector<24x32xf32>
    %201 = arith.addf %200, %199 : vector<24x32xf32>
    %c4_149 = arith.constant 4 : index
    %c1_150 = arith.constant 1 : index
    %c0_151 = arith.constant 0 : index
    %c0_152 = arith.constant 0 : index
    %202 = vector.load %arg5[%c4_149, %c1_150, %c0_151, %c0_152] : memref<10x3x40x1xf32, #tpu.memory_space<vmem>>, vector<1x1x24x1xf32>
    %203 = vector.shape_cast %202 : vector<1x1x24x1xf32> to vector<24x1xf32>
    %204 = vector.extract_strided_slice %192 {offsets = [0, 32], sizes = [24, 32], strides = [1, 1]} : vector<24x96xf32> to vector<24x32xf32>
    %205 = vector.broadcast %203 : vector<24x1xf32> to vector<24x32xf32>
    %206 = arith.mulf %205, %204 : vector<24x32xf32>
    %207 = arith.addf %201, %206 : vector<24x32xf32>
    %c4_153 = arith.constant 4 : index
    %c2_154 = arith.constant 2 : index
    %c0_155 = arith.constant 0 : index
    %c0_156 = arith.constant 0 : index
    %208 = vector.load %arg5[%c4_153, %c2_154, %c0_155, %c0_156] : memref<10x3x40x1xf32, #tpu.memory_space<vmem>>, vector<1x1x24x1xf32>
    %209 = vector.shape_cast %208 : vector<1x1x24x1xf32> to vector<24x1xf32>
    %210 = vector.extract_strided_slice %192 {offsets = [0, 64], sizes = [24, 32], strides = [1, 1]} : vector<24x96xf32> to vector<24x32xf32>
    %211 = vector.broadcast %209 : vector<24x1xf32> to vector<24x32xf32>
    %212 = arith.mulf %211, %210 : vector<24x32xf32>
    %213 = arith.addf %207, %212 : vector<24x32xf32>
    %cst_157 = arith.constant 0.000000e+00 : f32
    %214 = vector.broadcast %cst_157 : f32 to vector<24x32xf32>
    %215 = arith.maximumf %213, %214 : vector<24x32xf32>
    %c4_158 = arith.constant 4 : index
    %c0_159 = arith.constant 0 : index
    %c0_160 = arith.constant 0 : index
    %216 = vector.load %arg7[%c4_158, %c0_159, %c0_160] : memref<10x20x40xbf16, #tpu.memory_space<vmem>>, vector<1x12x24xbf16>
    %217 = vector.shape_cast %216 : vector<1x12x24xbf16> to vector<12x24xbf16>
    %218 = arith.truncf %215 : vector<24x32xf32> to vector<24x32xbf16>
    %cst_161 = arith.constant dense<0.000000e+00> : vector<12x32xf32>
    %219 = tpu.matmul %217, %218, %cst_161 {dimension_numbers = #tpu.dot_dimension_numbers<[1], [0], [0], [1], [0, 0, 1, 1], [], []>} : vector<12x24xbf16>, vector<24x32xbf16>, vector<12x32xf32> -> vector<12x32xf32>
    %c4_162 = arith.constant 4 : index
    %c0_163 = arith.constant 0 : index
    %c0_164 = arith.constant 0 : index
    %220 = vector.load %arg8[%c4_162, %c0_163, %c0_164] : memref<10x20x1xf32, #tpu.memory_space<vmem>>, vector<1x12x1xf32>
    %221 = vector.shape_cast %220 : vector<1x12x1xf32> to vector<12x1xf32>
    %222 = vector.broadcast %221 : vector<12x1xf32> to vector<12x32xf32>
    %223 = arith.addf %219, %222 : vector<12x32xf32>
    %c5 = arith.constant 5 : index
    %c0_165 = arith.constant 0 : index
    %c0_166 = arith.constant 0 : index
    %224 = vector.load %arg3[%c5, %c0_165, %c0_166] : memref<10x40x20xbf16, #tpu.memory_space<vmem>>, vector<1x24x12xbf16>
    %225 = vector.shape_cast %224 : vector<1x24x12xbf16> to vector<24x12xbf16>
    %226 = arith.truncf %223 : vector<12x32xf32> to vector<12x32xbf16>
    %cst_167 = arith.constant dense<0.000000e+00> : vector<24x32xf32>
    %227 = tpu.matmul %225, %226, %cst_167 {dimension_numbers = #tpu.dot_dimension_numbers<[1], [0], [0], [1], [0, 0, 1, 1], [], []>} : vector<24x12xbf16>, vector<12x32xbf16>, vector<24x32xf32> -> vector<24x32xf32>
    %c5_168 = arith.constant 5 : index
    %c0_169 = arith.constant 0 : index
    %c0_170 = arith.constant 0 : index
    %228 = vector.load %arg4[%c5_168, %c0_169, %c0_170] : memref<10x40x1xf32, #tpu.memory_space<vmem>>, vector<1x24x1xf32>
    %229 = vector.shape_cast %228 : vector<1x24x1xf32> to vector<24x1xf32>
    %230 = vector.broadcast %229 : vector<24x1xf32> to vector<24x32xf32>
    %231 = arith.addf %227, %230 : vector<24x32xf32>
    %cst_171 = arith.constant 0.000000e+00 : f32
    %232 = vector.broadcast %cst_171 : f32 to vector<24x32xf32>
    %233 = arith.maximumf %231, %232 : vector<24x32xf32>
    %c512 = arith.constant 512 : index
    %c0_172 = arith.constant 0 : index
    %234 = vector.load %arg9[%c512, %c0_172] : memref<624x384xbf16, #tpu.memory_space<vmem>>, vector<32x96xbf16>
    %235 = arith.truncf %233 : vector<24x32xf32> to vector<24x32xbf16>
    %cst_173 = arith.constant dense<0.000000e+00> : vector<24x96xf32>
    %236 = tpu.matmul %235, %234, %cst_173 {dimension_numbers = #tpu.dot_dimension_numbers<[1], [0], [0], [1], [0, 0, 1, 1], [], []>} : vector<24x32xbf16>, vector<32x96xbf16>, vector<24x96xf32> -> vector<24x96xf32>
    %c5_174 = arith.constant 5 : index
    %c0_175 = arith.constant 0 : index
    %c0_176 = arith.constant 0 : index
    %237 = vector.load %arg6[%c5_174, %c0_175, %c0_176] : memref<10x40x1xf32, #tpu.memory_space<vmem>>, vector<1x24x1xf32>
    %238 = vector.shape_cast %237 : vector<1x24x1xf32> to vector<24x1xf32>
    %c5_177 = arith.constant 5 : index
    %c0_178 = arith.constant 0 : index
    %c0_179 = arith.constant 0 : index
    %c0_180 = arith.constant 0 : index
    %239 = vector.load %arg5[%c5_177, %c0_178, %c0_179, %c0_180] : memref<10x3x40x1xf32, #tpu.memory_space<vmem>>, vector<1x1x24x1xf32>
    %240 = vector.shape_cast %239 : vector<1x1x24x1xf32> to vector<24x1xf32>
    %241 = vector.extract_strided_slice %236 {offsets = [0, 0], sizes = [24, 32], strides = [1, 1]} : vector<24x96xf32> to vector<24x32xf32>
    %242 = vector.broadcast %240 : vector<24x1xf32> to vector<24x32xf32>
    %243 = arith.mulf %242, %241 : vector<24x32xf32>
    %244 = vector.broadcast %238 : vector<24x1xf32> to vector<24x32xf32>
    %245 = arith.addf %244, %243 : vector<24x32xf32>
    %c5_181 = arith.constant 5 : index
    %c1_182 = arith.constant 1 : index
    %c0_183 = arith.constant 0 : index
    %c0_184 = arith.constant 0 : index
    %246 = vector.load %arg5[%c5_181, %c1_182, %c0_183, %c0_184] : memref<10x3x40x1xf32, #tpu.memory_space<vmem>>, vector<1x1x24x1xf32>
    %247 = vector.shape_cast %246 : vector<1x1x24x1xf32> to vector<24x1xf32>
    %248 = vector.extract_strided_slice %236 {offsets = [0, 32], sizes = [24, 32], strides = [1, 1]} : vector<24x96xf32> to vector<24x32xf32>
    %249 = vector.broadcast %247 : vector<24x1xf32> to vector<24x32xf32>
    %250 = arith.mulf %249, %248 : vector<24x32xf32>
    %251 = arith.addf %245, %250 : vector<24x32xf32>
    %c5_185 = arith.constant 5 : index
    %c2_186 = arith.constant 2 : index
    %c0_187 = arith.constant 0 : index
    %c0_188 = arith.constant 0 : index
    %252 = vector.load %arg5[%c5_185, %c2_186, %c0_187, %c0_188] : memref<10x3x40x1xf32, #tpu.memory_space<vmem>>, vector<1x1x24x1xf32>
    %253 = vector.shape_cast %252 : vector<1x1x24x1xf32> to vector<24x1xf32>
    %254 = vector.extract_strided_slice %236 {offsets = [0, 64], sizes = [24, 32], strides = [1, 1]} : vector<24x96xf32> to vector<24x32xf32>
    %255 = vector.broadcast %253 : vector<24x1xf32> to vector<24x32xf32>
    %256 = arith.mulf %255, %254 : vector<24x32xf32>
    %257 = arith.addf %251, %256 : vector<24x32xf32>
    %cst_189 = arith.constant 0.000000e+00 : f32
    %258 = vector.broadcast %cst_189 : f32 to vector<24x32xf32>
    %259 = arith.maximumf %257, %258 : vector<24x32xf32>
    %c5_190 = arith.constant 5 : index
    %c0_191 = arith.constant 0 : index
    %c0_192 = arith.constant 0 : index
    %260 = vector.load %arg7[%c5_190, %c0_191, %c0_192] : memref<10x20x40xbf16, #tpu.memory_space<vmem>>, vector<1x16x24xbf16>
    %261 = vector.shape_cast %260 : vector<1x16x24xbf16> to vector<16x24xbf16>
    %262 = arith.truncf %259 : vector<24x32xf32> to vector<24x32xbf16>
    %cst_193 = arith.constant dense<0.000000e+00> : vector<16x32xf32>
    %263 = tpu.matmul %261, %262, %cst_193 {dimension_numbers = #tpu.dot_dimension_numbers<[1], [0], [0], [1], [0, 0, 1, 1], [], []>} : vector<16x24xbf16>, vector<24x32xbf16>, vector<16x32xf32> -> vector<16x32xf32>
    %c5_194 = arith.constant 5 : index
    %c0_195 = arith.constant 0 : index
    %c0_196 = arith.constant 0 : index
    %264 = vector.load %arg8[%c5_194, %c0_195, %c0_196] : memref<10x20x1xf32, #tpu.memory_space<vmem>>, vector<1x16x1xf32>
    %265 = vector.shape_cast %264 : vector<1x16x1xf32> to vector<16x1xf32>
    %266 = vector.broadcast %265 : vector<16x1xf32> to vector<16x32xf32>
    %267 = arith.addf %263, %266 : vector<16x32xf32>
    %c6 = arith.constant 6 : index
    %c0_197 = arith.constant 0 : index
    %c0_198 = arith.constant 0 : index
    %268 = vector.load %arg3[%c6, %c0_197, %c0_198] : memref<10x40x20xbf16, #tpu.memory_space<vmem>>, vector<1x32x16xbf16>
    %269 = vector.shape_cast %268 : vector<1x32x16xbf16> to vector<32x16xbf16>
    %270 = arith.truncf %267 : vector<16x32xf32> to vector<16x32xbf16>
    %cst_199 = arith.constant dense<0.000000e+00> : vector<32x32xf32>
    %271 = tpu.matmul %269, %270, %cst_199 {dimension_numbers = #tpu.dot_dimension_numbers<[1], [0], [0], [1], [0, 0, 1, 1], [], []>} : vector<32x16xbf16>, vector<16x32xbf16>, vector<32x32xf32> -> vector<32x32xf32>
    %c6_200 = arith.constant 6 : index
    %c0_201 = arith.constant 0 : index
    %c0_202 = arith.constant 0 : index
    %272 = vector.load %arg4[%c6_200, %c0_201, %c0_202] : memref<10x40x1xf32, #tpu.memory_space<vmem>>, vector<1x32x1xf32>
    %273 = vector.shape_cast %272 : vector<1x32x1xf32> to vector<32x1xf32>
    %274 = vector.broadcast %273 : vector<32x1xf32> to vector<32x32xf32>
    %275 = arith.addf %271, %274 : vector<32x32xf32>
    %cst_203 = arith.constant 0.000000e+00 : f32
    %276 = vector.broadcast %cst_203 : f32 to vector<32x32xf32>
    %277 = arith.maximumf %275, %276 : vector<32x32xf32>
    %c544 = arith.constant 544 : index
    %c0_204 = arith.constant 0 : index
    %278 = vector.load %arg9[%c544, %c0_204] : memref<624x384xbf16, #tpu.memory_space<vmem>>, vector<32x48xbf16>
    %279 = arith.truncf %277 : vector<32x32xf32> to vector<32x32xbf16>
    %cst_205 = arith.constant dense<0.000000e+00> : vector<32x48xf32>
    %280 = tpu.matmul %279, %278, %cst_205 {dimension_numbers = #tpu.dot_dimension_numbers<[1], [0], [0], [1], [0, 0, 1, 1], [], []>} : vector<32x32xbf16>, vector<32x48xbf16>, vector<32x48xf32> -> vector<32x48xf32>
    %c6_206 = arith.constant 6 : index
    %c0_207 = arith.constant 0 : index
    %c0_208 = arith.constant 0 : index
    %281 = vector.load %arg6[%c6_206, %c0_207, %c0_208] : memref<10x40x1xf32, #tpu.memory_space<vmem>>, vector<1x32x1xf32>
    %282 = vector.shape_cast %281 : vector<1x32x1xf32> to vector<32x1xf32>
    %c6_209 = arith.constant 6 : index
    %c0_210 = arith.constant 0 : index
    %c0_211 = arith.constant 0 : index
    %c0_212 = arith.constant 0 : index
    %283 = vector.load %arg5[%c6_209, %c0_210, %c0_211, %c0_212] : memref<10x3x40x1xf32, #tpu.memory_space<vmem>>, vector<1x1x32x1xf32>
    %284 = vector.shape_cast %283 : vector<1x1x32x1xf32> to vector<32x1xf32>
    %285 = vector.extract_strided_slice %280 {offsets = [0, 0], sizes = [32, 16], strides = [1, 1]} : vector<32x48xf32> to vector<32x16xf32>
    %286 = vector.broadcast %284 : vector<32x1xf32> to vector<32x16xf32>
    %287 = arith.mulf %286, %285 : vector<32x16xf32>
    %288 = vector.broadcast %282 : vector<32x1xf32> to vector<32x16xf32>
    %289 = arith.addf %288, %287 : vector<32x16xf32>
    %c6_213 = arith.constant 6 : index
    %c1_214 = arith.constant 1 : index
    %c0_215 = arith.constant 0 : index
    %c0_216 = arith.constant 0 : index
    %290 = vector.load %arg5[%c6_213, %c1_214, %c0_215, %c0_216] : memref<10x3x40x1xf32, #tpu.memory_space<vmem>>, vector<1x1x32x1xf32>
    %291 = vector.shape_cast %290 : vector<1x1x32x1xf32> to vector<32x1xf32>
    %292 = vector.extract_strided_slice %280 {offsets = [0, 16], sizes = [32, 16], strides = [1, 1]} : vector<32x48xf32> to vector<32x16xf32>
    %293 = vector.broadcast %291 : vector<32x1xf32> to vector<32x16xf32>
    %294 = arith.mulf %293, %292 : vector<32x16xf32>
    %295 = arith.addf %289, %294 : vector<32x16xf32>
    %c6_217 = arith.constant 6 : index
    %c2_218 = arith.constant 2 : index
    %c0_219 = arith.constant 0 : index
    %c0_220 = arith.constant 0 : index
    %296 = vector.load %arg5[%c6_217, %c2_218, %c0_219, %c0_220] : memref<10x3x40x1xf32, #tpu.memory_space<vmem>>, vector<1x1x32x1xf32>
    %297 = vector.shape_cast %296 : vector<1x1x32x1xf32> to vector<32x1xf32>
    %298 = vector.extract_strided_slice %280 {offsets = [0, 32], sizes = [32, 16], strides = [1, 1]} : vector<32x48xf32> to vector<32x16xf32>
    %299 = vector.broadcast %297 : vector<32x1xf32> to vector<32x16xf32>
    %300 = arith.mulf %299, %298 : vector<32x16xf32>
    %301 = arith.addf %295, %300 : vector<32x16xf32>
    %cst_221 = arith.constant 0.000000e+00 : f32
    %302 = vector.broadcast %cst_221 : f32 to vector<32x16xf32>
    %303 = arith.maximumf %301, %302 : vector<32x16xf32>
    %c6_222 = arith.constant 6 : index
    %c0_223 = arith.constant 0 : index
    %c0_224 = arith.constant 0 : index
    %304 = vector.load %arg7[%c6_222, %c0_223, %c0_224] : memref<10x20x40xbf16, #tpu.memory_space<vmem>>, vector<1x20x32xbf16>
    %305 = vector.shape_cast %304 : vector<1x20x32xbf16> to vector<20x32xbf16>
    %306 = arith.truncf %303 : vector<32x16xf32> to vector<32x16xbf16>
    %cst_225 = arith.constant dense<0.000000e+00> : vector<20x16xf32>
    %307 = tpu.matmul %305, %306, %cst_225 {dimension_numbers = #tpu.dot_dimension_numbers<[1], [0], [0], [1], [0, 0, 1, 1], [], []>} : vector<20x32xbf16>, vector<32x16xbf16>, vector<20x16xf32> -> vector<20x16xf32>
    %c6_226 = arith.constant 6 : index
    %c0_227 = arith.constant 0 : index
    %c0_228 = arith.constant 0 : index
    %308 = vector.load %arg8[%c6_226, %c0_227, %c0_228] : memref<10x20x1xf32, #tpu.memory_space<vmem>>, vector<1x20x1xf32>
    %309 = vector.shape_cast %308 : vector<1x20x1xf32> to vector<20x1xf32>
    %310 = vector.broadcast %309 : vector<20x1xf32> to vector<20x16xf32>
    %311 = arith.addf %307, %310 : vector<20x16xf32>
    %c7 = arith.constant 7 : index
    %c0_229 = arith.constant 0 : index
    %c0_230 = arith.constant 0 : index
    %312 = vector.load %arg3[%c7, %c0_229, %c0_230] : memref<10x40x20xbf16, #tpu.memory_space<vmem>>, vector<1x40x20xbf16>
    %313 = vector.shape_cast %312 : vector<1x40x20xbf16> to vector<40x20xbf16>
    %314 = arith.truncf %311 : vector<20x16xf32> to vector<20x16xbf16>
    %cst_231 = arith.constant dense<0.000000e+00> : vector<40x16xf32>
    %315 = tpu.matmul %313, %314, %cst_231 {dimension_numbers = #tpu.dot_dimension_numbers<[1], [0], [0], [1], [0, 0, 1, 1], [], []>} : vector<40x20xbf16>, vector<20x16xbf16>, vector<40x16xf32> -> vector<40x16xf32>
    %c7_232 = arith.constant 7 : index
    %c0_233 = arith.constant 0 : index
    %c0_234 = arith.constant 0 : index
    %316 = vector.load %arg4[%c7_232, %c0_233, %c0_234] : memref<10x40x1xf32, #tpu.memory_space<vmem>>, vector<1x40x1xf32>
    %317 = vector.shape_cast %316 : vector<1x40x1xf32> to vector<40x1xf32>
    %318 = vector.broadcast %317 : vector<40x1xf32> to vector<40x16xf32>
    %319 = arith.addf %315, %318 : vector<40x16xf32>
    %cst_235 = arith.constant 0.000000e+00 : f32
    %320 = vector.broadcast %cst_235 : f32 to vector<40x16xf32>
    %321 = arith.maximumf %319, %320 : vector<40x16xf32>
    %c576 = arith.constant 576 : index
    %c0_236 = arith.constant 0 : index
    %322 = vector.load %arg9[%c576, %c0_236] : memref<624x384xbf16, #tpu.memory_space<vmem>>, vector<16x24xbf16>
    %323 = arith.truncf %321 : vector<40x16xf32> to vector<40x16xbf16>
    %cst_237 = arith.constant dense<0.000000e+00> : vector<40x24xf32>
    %324 = tpu.matmul %323, %322, %cst_237 {dimension_numbers = #tpu.dot_dimension_numbers<[1], [0], [0], [1], [0, 0, 1, 1], [], []>} : vector<40x16xbf16>, vector<16x24xbf16>, vector<40x24xf32> -> vector<40x24xf32>
    %c7_238 = arith.constant 7 : index
    %c0_239 = arith.constant 0 : index
    %c0_240 = arith.constant 0 : index
    %325 = vector.load %arg6[%c7_238, %c0_239, %c0_240] : memref<10x40x1xf32, #tpu.memory_space<vmem>>, vector<1x40x1xf32>
    %326 = vector.shape_cast %325 : vector<1x40x1xf32> to vector<40x1xf32>
    %c7_241 = arith.constant 7 : index
    %c0_242 = arith.constant 0 : index
    %c0_243 = arith.constant 0 : index
    %c0_244 = arith.constant 0 : index
    %327 = vector.load %arg5[%c7_241, %c0_242, %c0_243, %c0_244] : memref<10x3x40x1xf32, #tpu.memory_space<vmem>>, vector<1x1x40x1xf32>
    %328 = vector.shape_cast %327 : vector<1x1x40x1xf32> to vector<40x1xf32>
    %329 = vector.extract_strided_slice %324 {offsets = [0, 0], sizes = [40, 8], strides = [1, 1]} : vector<40x24xf32> to vector<40x8xf32>
    %330 = vector.broadcast %328 : vector<40x1xf32> to vector<40x8xf32>
    %331 = arith.mulf %330, %329 : vector<40x8xf32>
    %332 = vector.broadcast %326 : vector<40x1xf32> to vector<40x8xf32>
    %333 = arith.addf %332, %331 : vector<40x8xf32>
    %c7_245 = arith.constant 7 : index
    %c1_246 = arith.constant 1 : index
    %c0_247 = arith.constant 0 : index
    %c0_248 = arith.constant 0 : index
    %334 = vector.load %arg5[%c7_245, %c1_246, %c0_247, %c0_248] : memref<10x3x40x1xf32, #tpu.memory_space<vmem>>, vector<1x1x40x1xf32>
    %335 = vector.shape_cast %334 : vector<1x1x40x1xf32> to vector<40x1xf32>
    %336 = vector.extract_strided_slice %324 {offsets = [0, 8], sizes = [40, 8], strides = [1, 1]} : vector<40x24xf32> to vector<40x8xf32>
    %337 = vector.broadcast %335 : vector<40x1xf32> to vector<40x8xf32>
    %338 = arith.mulf %337, %336 : vector<40x8xf32>
    %339 = arith.addf %333, %338 : vector<40x8xf32>
    %c7_249 = arith.constant 7 : index
    %c2_250 = arith.constant 2 : index
    %c0_251 = arith.constant 0 : index
    %c0_252 = arith.constant 0 : index
    %340 = vector.load %arg5[%c7_249, %c2_250, %c0_251, %c0_252] : memref<10x3x40x1xf32, #tpu.memory_space<vmem>>, vector<1x1x40x1xf32>
    %341 = vector.shape_cast %340 : vector<1x1x40x1xf32> to vector<40x1xf32>
    %342 = vector.extract_strided_slice %324 {offsets = [0, 16], sizes = [40, 8], strides = [1, 1]} : vector<40x24xf32> to vector<40x8xf32>
    %343 = vector.broadcast %341 : vector<40x1xf32> to vector<40x8xf32>
    %344 = arith.mulf %343, %342 : vector<40x8xf32>
    %345 = arith.addf %339, %344 : vector<40x8xf32>
    %cst_253 = arith.constant 0.000000e+00 : f32
    %346 = vector.broadcast %cst_253 : f32 to vector<40x8xf32>
    %347 = arith.maximumf %345, %346 : vector<40x8xf32>
    %c7_254 = arith.constant 7 : index
    %c0_255 = arith.constant 0 : index
    %c0_256 = arith.constant 0 : index
    %348 = vector.load %arg7[%c7_254, %c0_255, %c0_256] : memref<10x20x40xbf16, #tpu.memory_space<vmem>>, vector<1x20x40xbf16>
    %349 = vector.shape_cast %348 : vector<1x20x40xbf16> to vector<20x40xbf16>
    %350 = arith.truncf %347 : vector<40x8xf32> to vector<40x8xbf16>
    %cst_257 = arith.constant dense<0.000000e+00> : vector<20x8xf32>
    %351 = tpu.matmul %349, %350, %cst_257 {dimension_numbers = #tpu.dot_dimension_numbers<[1], [0], [0], [1], [0, 0, 1, 1], [], []>} : vector<20x40xbf16>, vector<40x8xbf16>, vector<20x8xf32> -> vector<20x8xf32>
    %c7_258 = arith.constant 7 : index
    %c0_259 = arith.constant 0 : index
    %c0_260 = arith.constant 0 : index
    %352 = vector.load %arg8[%c7_258, %c0_259, %c0_260] : memref<10x20x1xf32, #tpu.memory_space<vmem>>, vector<1x20x1xf32>
    %353 = vector.shape_cast %352 : vector<1x20x1xf32> to vector<20x1xf32>
    %354 = vector.broadcast %353 : vector<20x1xf32> to vector<20x8xf32>
    %355 = arith.addf %351, %354 : vector<20x8xf32>
    %c8 = arith.constant 8 : index
    %c0_261 = arith.constant 0 : index
    %c0_262 = arith.constant 0 : index
    %356 = vector.load %arg3[%c8, %c0_261, %c0_262] : memref<10x40x20xbf16, #tpu.memory_space<vmem>>, vector<1x40x20xbf16>
    %357 = vector.shape_cast %356 : vector<1x40x20xbf16> to vector<40x20xbf16>
    %358 = arith.truncf %355 : vector<20x8xf32> to vector<20x8xbf16>
    %cst_263 = arith.constant dense<0.000000e+00> : vector<40x8xf32>
    %359 = tpu.matmul %357, %358, %cst_263 {dimension_numbers = #tpu.dot_dimension_numbers<[1], [0], [0], [1], [0, 0, 1, 1], [], []>} : vector<40x20xbf16>, vector<20x8xbf16>, vector<40x8xf32> -> vector<40x8xf32>
    %c8_264 = arith.constant 8 : index
    %c0_265 = arith.constant 0 : index
    %c0_266 = arith.constant 0 : index
    %360 = vector.load %arg4[%c8_264, %c0_265, %c0_266] : memref<10x40x1xf32, #tpu.memory_space<vmem>>, vector<1x40x1xf32>
    %361 = vector.shape_cast %360 : vector<1x40x1xf32> to vector<40x1xf32>
    %362 = vector.broadcast %361 : vector<40x1xf32> to vector<40x8xf32>
    %363 = arith.addf %359, %362 : vector<40x8xf32>
    %cst_267 = arith.constant 0.000000e+00 : f32
    %364 = vector.broadcast %cst_267 : f32 to vector<40x8xf32>
    %365 = arith.maximumf %363, %364 : vector<40x8xf32>
    %c592 = arith.constant 592 : index
    %c0_268 = arith.constant 0 : index
    %366 = vector.load %arg9[%c592, %c0_268] : memref<624x384xbf16, #tpu.memory_space<vmem>>, vector<8x12xbf16>
    %367 = arith.truncf %365 : vector<40x8xf32> to vector<40x8xbf16>
    %cst_269 = arith.constant dense<0.000000e+00> : vector<40x12xf32>
    %368 = tpu.matmul %367, %366, %cst_269 {dimension_numbers = #tpu.dot_dimension_numbers<[1], [0], [0], [1], [0, 0, 1, 1], [], []>} : vector<40x8xbf16>, vector<8x12xbf16>, vector<40x12xf32> -> vector<40x12xf32>
    %c8_270 = arith.constant 8 : index
    %c0_271 = arith.constant 0 : index
    %c0_272 = arith.constant 0 : index
    %369 = vector.load %arg6[%c8_270, %c0_271, %c0_272] : memref<10x40x1xf32, #tpu.memory_space<vmem>>, vector<1x40x1xf32>
    %370 = vector.shape_cast %369 : vector<1x40x1xf32> to vector<40x1xf32>
    %c8_273 = arith.constant 8 : index
    %c0_274 = arith.constant 0 : index
    %c0_275 = arith.constant 0 : index
    %c0_276 = arith.constant 0 : index
    %371 = vector.load %arg5[%c8_273, %c0_274, %c0_275, %c0_276] : memref<10x3x40x1xf32, #tpu.memory_space<vmem>>, vector<1x1x40x1xf32>
    %372 = vector.shape_cast %371 : vector<1x1x40x1xf32> to vector<40x1xf32>
    %373 = vector.extract_strided_slice %368 {offsets = [0, 0], sizes = [40, 4], strides = [1, 1]} : vector<40x12xf32> to vector<40x4xf32>
    %374 = vector.broadcast %372 : vector<40x1xf32> to vector<40x4xf32>
    %375 = arith.mulf %374, %373 : vector<40x4xf32>
    %376 = vector.broadcast %370 : vector<40x1xf32> to vector<40x4xf32>
    %377 = arith.addf %376, %375 : vector<40x4xf32>
    %c8_277 = arith.constant 8 : index
    %c1_278 = arith.constant 1 : index
    %c0_279 = arith.constant 0 : index
    %c0_280 = arith.constant 0 : index
    %378 = vector.load %arg5[%c8_277, %c1_278, %c0_279, %c0_280] : memref<10x3x40x1xf32, #tpu.memory_space<vmem>>, vector<1x1x40x1xf32>
    %379 = vector.shape_cast %378 : vector<1x1x40x1xf32> to vector<40x1xf32>
    %380 = vector.extract_strided_slice %368 {offsets = [0, 4], sizes = [40, 4], strides = [1, 1]} : vector<40x12xf32> to vector<40x4xf32>
    %381 = vector.broadcast %379 : vector<40x1xf32> to vector<40x4xf32>
    %382 = arith.mulf %381, %380 : vector<40x4xf32>
    %383 = arith.addf %377, %382 : vector<40x4xf32>
    %c8_281 = arith.constant 8 : index
    %c2_282 = arith.constant 2 : index
    %c0_283 = arith.constant 0 : index
    %c0_284 = arith.constant 0 : index
    %384 = vector.load %arg5[%c8_281, %c2_282, %c0_283, %c0_284] : memref<10x3x40x1xf32, #tpu.memory_space<vmem>>, vector<1x1x40x1xf32>
    %385 = vector.shape_cast %384 : vector<1x1x40x1xf32> to vector<40x1xf32>
    %386 = vector.extract_strided_slice %368 {offsets = [0, 8], sizes = [40, 4], strides = [1, 1]} : vector<40x12xf32> to vector<40x4xf32>
    %387 = vector.broadcast %385 : vector<40x1xf32> to vector<40x4xf32>
    %388 = arith.mulf %387, %386 : vector<40x4xf32>
    %389 = arith.addf %383, %388 : vector<40x4xf32>
    %cst_285 = arith.constant 0.000000e+00 : f32
    %390 = vector.broadcast %cst_285 : f32 to vector<40x4xf32>
    %391 = arith.maximumf %389, %390 : vector<40x4xf32>
    %c8_286 = arith.constant 8 : index
    %c0_287 = arith.constant 0 : index
    %c0_288 = arith.constant 0 : index
    %392 = vector.load %arg7[%c8_286, %c0_287, %c0_288] : memref<10x20x40xbf16, #tpu.memory_space<vmem>>, vector<1x20x40xbf16>
    %393 = vector.shape_cast %392 : vector<1x20x40xbf16> to vector<20x40xbf16>
    %394 = arith.truncf %391 : vector<40x4xf32> to vector<40x4xbf16>
    %cst_289 = arith.constant dense<0.000000e+00> : vector<20x4xf32>
    %395 = tpu.matmul %393, %394, %cst_289 {dimension_numbers = #tpu.dot_dimension_numbers<[1], [0], [0], [1], [0, 0, 1, 1], [], []>} : vector<20x40xbf16>, vector<40x4xbf16>, vector<20x4xf32> -> vector<20x4xf32>
    %c8_290 = arith.constant 8 : index
    %c0_291 = arith.constant 0 : index
    %c0_292 = arith.constant 0 : index
    %396 = vector.load %arg8[%c8_290, %c0_291, %c0_292] : memref<10x20x1xf32, #tpu.memory_space<vmem>>, vector<1x20x1xf32>
    %397 = vector.shape_cast %396 : vector<1x20x1xf32> to vector<20x1xf32>
    %398 = vector.broadcast %397 : vector<20x1xf32> to vector<20x4xf32>
    %399 = arith.addf %395, %398 : vector<20x4xf32>
    %c9 = arith.constant 9 : index
    %c0_293 = arith.constant 0 : index
    %c0_294 = arith.constant 0 : index
    %400 = vector.load %arg3[%c9, %c0_293, %c0_294] : memref<10x40x20xbf16, #tpu.memory_space<vmem>>, vector<1x40x20xbf16>
    %401 = vector.shape_cast %400 : vector<1x40x20xbf16> to vector<40x20xbf16>
    %402 = arith.truncf %399 : vector<20x4xf32> to vector<20x4xbf16>
    %cst_295 = arith.constant dense<0.000000e+00> : vector<40x4xf32>
    %403 = tpu.matmul %401, %402, %cst_295 {dimension_numbers = #tpu.dot_dimension_numbers<[1], [0], [0], [1], [0, 0, 1, 1], [], []>} : vector<40x20xbf16>, vector<20x4xbf16>, vector<40x4xf32> -> vector<40x4xf32>
    %c9_296 = arith.constant 9 : index
    %c0_297 = arith.constant 0 : index
    %c0_298 = arith.constant 0 : index
    %404 = vector.load %arg4[%c9_296, %c0_297, %c0_298] : memref<10x40x1xf32, #tpu.memory_space<vmem>>, vector<1x40x1xf32>
    %405 = vector.shape_cast %404 : vector<1x40x1xf32> to vector<40x1xf32>
    %406 = vector.broadcast %405 : vector<40x1xf32> to vector<40x4xf32>
    %407 = arith.addf %403, %406 : vector<40x4xf32>
    %cst_299 = arith.constant 0.000000e+00 : f32
    %408 = vector.broadcast %cst_299 : f32 to vector<40x4xf32>
    %409 = arith.maximumf %407, %408 : vector<40x4xf32>
    %c608 = arith.constant 608 : index
    %c0_300 = arith.constant 0 : index
    %410 = vector.load %arg9[%c608, %c0_300] : memref<624x384xbf16, #tpu.memory_space<vmem>>, vector<4x6xbf16>
    %411 = arith.truncf %409 : vector<40x4xf32> to vector<40x4xbf16>
    %cst_301 = arith.constant dense<0.000000e+00> : vector<40x6xf32>
    %412 = tpu.matmul %411, %410, %cst_301 {dimension_numbers = #tpu.dot_dimension_numbers<[1], [0], [0], [1], [0, 0, 1, 1], [], []>} : vector<40x4xbf16>, vector<4x6xbf16>, vector<40x6xf32> -> vector<40x6xf32>
    %c9_302 = arith.constant 9 : index
    %c0_303 = arith.constant 0 : index
    %c0_304 = arith.constant 0 : index
    %413 = vector.load %arg6[%c9_302, %c0_303, %c0_304] : memref<10x40x1xf32, #tpu.memory_space<vmem>>, vector<1x40x1xf32>
    %414 = vector.shape_cast %413 : vector<1x40x1xf32> to vector<40x1xf32>
    %c9_305 = arith.constant 9 : index
    %c0_306 = arith.constant 0 : index
    %c0_307 = arith.constant 0 : index
    %c0_308 = arith.constant 0 : index
    %415 = vector.load %arg5[%c9_305, %c0_306, %c0_307, %c0_308] : memref<10x3x40x1xf32, #tpu.memory_space<vmem>>, vector<1x1x40x1xf32>
    %416 = vector.shape_cast %415 : vector<1x1x40x1xf32> to vector<40x1xf32>
    %417 = vector.extract_strided_slice %412 {offsets = [0, 0], sizes = [40, 2], strides = [1, 1]} : vector<40x6xf32> to vector<40x2xf32>
    %418 = vector.broadcast %416 : vector<40x1xf32> to vector<40x2xf32>
    %419 = arith.mulf %418, %417 : vector<40x2xf32>
    %420 = vector.broadcast %414 : vector<40x1xf32> to vector<40x2xf32>
    %421 = arith.addf %420, %419 : vector<40x2xf32>
    %c9_309 = arith.constant 9 : index
    %c1_310 = arith.constant 1 : index
    %c0_311 = arith.constant 0 : index
    %c0_312 = arith.constant 0 : index
    %422 = vector.load %arg5[%c9_309, %c1_310, %c0_311, %c0_312] : memref<10x3x40x1xf32, #tpu.memory_space<vmem>>, vector<1x1x40x1xf32>
    %423 = vector.shape_cast %422 : vector<1x1x40x1xf32> to vector<40x1xf32>
    %424 = vector.extract_strided_slice %412 {offsets = [0, 2], sizes = [40, 2], strides = [1, 1]} : vector<40x6xf32> to vector<40x2xf32>
    %425 = vector.broadcast %423 : vector<40x1xf32> to vector<40x2xf32>
    %426 = arith.mulf %425, %424 : vector<40x2xf32>
    %427 = arith.addf %421, %426 : vector<40x2xf32>
    %c9_313 = arith.constant 9 : index
    %c2_314 = arith.constant 2 : index
    %c0_315 = arith.constant 0 : index
    %c0_316 = arith.constant 0 : index
    %428 = vector.load %arg5[%c9_313, %c2_314, %c0_315, %c0_316] : memref<10x3x40x1xf32, #tpu.memory_space<vmem>>, vector<1x1x40x1xf32>
    %429 = vector.shape_cast %428 : vector<1x1x40x1xf32> to vector<40x1xf32>
    %430 = vector.extract_strided_slice %412 {offsets = [0, 4], sizes = [40, 2], strides = [1, 1]} : vector<40x6xf32> to vector<40x2xf32>
    %431 = vector.broadcast %429 : vector<40x1xf32> to vector<40x2xf32>
    %432 = arith.mulf %431, %430 : vector<40x2xf32>
    %433 = arith.addf %427, %432 : vector<40x2xf32>
    %cst_317 = arith.constant 0.000000e+00 : f32
    %434 = vector.broadcast %cst_317 : f32 to vector<40x2xf32>
    %435 = arith.maximumf %433, %434 : vector<40x2xf32>
    %c9_318 = arith.constant 9 : index
    %c0_319 = arith.constant 0 : index
    %c0_320 = arith.constant 0 : index
    %436 = vector.load %arg7[%c9_318, %c0_319, %c0_320] : memref<10x20x40xbf16, #tpu.memory_space<vmem>>, vector<1x20x40xbf16>
    %437 = vector.shape_cast %436 : vector<1x20x40xbf16> to vector<20x40xbf16>
    %438 = arith.truncf %435 : vector<40x2xf32> to vector<40x2xbf16>
    %cst_321 = arith.constant dense<0.000000e+00> : vector<20x2xf32>
    %439 = tpu.matmul %437, %438, %cst_321 {dimension_numbers = #tpu.dot_dimension_numbers<[1], [0], [0], [1], [0, 0, 1, 1], [], []>} : vector<20x40xbf16>, vector<40x2xbf16>, vector<20x2xf32> -> vector<20x2xf32>
    %c9_322 = arith.constant 9 : index
    %c0_323 = arith.constant 0 : index
    %c0_324 = arith.constant 0 : index
    %440 = vector.load %arg8[%c9_322, %c0_323, %c0_324] : memref<10x20x1xf32, #tpu.memory_space<vmem>>, vector<1x20x1xf32>
    %441 = vector.shape_cast %440 : vector<1x20x1xf32> to vector<20x1xf32>
    %442 = vector.broadcast %441 : vector<20x1xf32> to vector<20x2xf32>
    %443 = arith.addf %439, %442 : vector<20x2xf32>
    %c0_325 = arith.constant 0 : index
    %c0_326 = arith.constant 0 : index
    %444 = vector.load %arg10[%c0_325, %c0_326] : memref<48x80xf32, #tpu.memory_space<vmem>>, vector<2x20xf32>
    %cst_327 = arith.constant dense<0.000000e+00> : vector<20x20xf32>
    %445 = tpu.matmul %443, %444, %cst_327 {dimension_numbers = #tpu.dot_dimension_numbers<[1], [0], [0], [1], [0, 0, 1, 1], [], []>} : vector<20x2xf32>, vector<2x20xf32>, vector<20x20xf32> -> vector<20x20xf32>
    %c0_328 = arith.constant 0 : index
    %c0_329 = arith.constant 0 : index
    %c0_330 = arith.constant 0 : index
    %446 = vector.load %arg12[%c0_328, %c0_329, %c0_330] : memref<3x20x1xf32, #tpu.memory_space<vmem>>, vector<1x20x1xf32>
    %447 = vector.shape_cast %446 : vector<1x20x1xf32> to vector<20x1xf32>
    %c0_331 = arith.constant 0 : index
    %c0_332 = arith.constant 0 : index
    %c0_333 = arith.constant 0 : index
    %c0_334 = arith.constant 0 : index
    %448 = vector.load %arg11[%c0_331, %c0_332, %c0_333, %c0_334] : memref<3x5x20x20xf32, #tpu.memory_space<vmem>>, vector<1x1x20x20xf32>
    %449 = vector.shape_cast %448 : vector<1x1x20x20xf32> to vector<20x20xf32>
    %450 = vector.extract_strided_slice %445 {offsets = [0, 0], sizes = [20, 4], strides = [1, 1]} : vector<20x20xf32> to vector<20x4xf32>
    %cst_335 = arith.constant dense<0.000000e+00> : vector<20x4xf32>
    %451 = tpu.matmul %449, %450, %cst_335 {dimension_numbers = #tpu.dot_dimension_numbers<[1], [0], [0], [1], [0, 0, 1, 1], [], []>} : vector<20x20xf32>, vector<20x4xf32>, vector<20x4xf32> -> vector<20x4xf32>
    %452 = vector.broadcast %447 : vector<20x1xf32> to vector<20x4xf32>
    %453 = arith.addf %452, %451 : vector<20x4xf32>
    %c0_336 = arith.constant 0 : index
    %c1_337 = arith.constant 1 : index
    %c0_338 = arith.constant 0 : index
    %c0_339 = arith.constant 0 : index
    %454 = vector.load %arg11[%c0_336, %c1_337, %c0_338, %c0_339] : memref<3x5x20x20xf32, #tpu.memory_space<vmem>>, vector<1x1x20x20xf32>
    %455 = vector.shape_cast %454 : vector<1x1x20x20xf32> to vector<20x20xf32>
    %456 = vector.extract_strided_slice %445 {offsets = [0, 4], sizes = [20, 4], strides = [1, 1]} : vector<20x20xf32> to vector<20x4xf32>
    %cst_340 = arith.constant dense<0.000000e+00> : vector<20x4xf32>
    %457 = tpu.matmul %455, %456, %cst_340 {dimension_numbers = #tpu.dot_dimension_numbers<[1], [0], [0], [1], [0, 0, 1, 1], [], []>} : vector<20x20xf32>, vector<20x4xf32>, vector<20x4xf32> -> vector<20x4xf32>
    %458 = arith.addf %453, %457 : vector<20x4xf32>
    %c0_341 = arith.constant 0 : index
    %c2_342 = arith.constant 2 : index
    %c0_343 = arith.constant 0 : index
    %c0_344 = arith.constant 0 : index
    %459 = vector.load %arg11[%c0_341, %c2_342, %c0_343, %c0_344] : memref<3x5x20x20xf32, #tpu.memory_space<vmem>>, vector<1x1x20x20xf32>
    %460 = vector.shape_cast %459 : vector<1x1x20x20xf32> to vector<20x20xf32>
    %461 = vector.extract_strided_slice %445 {offsets = [0, 8], sizes = [20, 4], strides = [1, 1]} : vector<20x20xf32> to vector<20x4xf32>
    %cst_345 = arith.constant dense<0.000000e+00> : vector<20x4xf32>
    %462 = tpu.matmul %460, %461, %cst_345 {dimension_numbers = #tpu.dot_dimension_numbers<[1], [0], [0], [1], [0, 0, 1, 1], [], []>} : vector<20x20xf32>, vector<20x4xf32>, vector<20x4xf32> -> vector<20x4xf32>
    %463 = arith.addf %458, %462 : vector<20x4xf32>
    %c0_346 = arith.constant 0 : index
    %c3_347 = arith.constant 3 : index
    %c0_348 = arith.constant 0 : index
    %c0_349 = arith.constant 0 : index
    %464 = vector.load %arg11[%c0_346, %c3_347, %c0_348, %c0_349] : memref<3x5x20x20xf32, #tpu.memory_space<vmem>>, vector<1x1x20x20xf32>
    %465 = vector.shape_cast %464 : vector<1x1x20x20xf32> to vector<20x20xf32>
    %466 = vector.extract_strided_slice %445 {offsets = [0, 12], sizes = [20, 4], strides = [1, 1]} : vector<20x20xf32> to vector<20x4xf32>
    %cst_350 = arith.constant dense<0.000000e+00> : vector<20x4xf32>
    %467 = tpu.matmul %465, %466, %cst_350 {dimension_numbers = #tpu.dot_dimension_numbers<[1], [0], [0], [1], [0, 0, 1, 1], [], []>} : vector<20x20xf32>, vector<20x4xf32>, vector<20x4xf32> -> vector<20x4xf32>
    %468 = arith.addf %463, %467 : vector<20x4xf32>
    %c0_351 = arith.constant 0 : index
    %c4_352 = arith.constant 4 : index
    %c0_353 = arith.constant 0 : index
    %c0_354 = arith.constant 0 : index
    %469 = vector.load %arg11[%c0_351, %c4_352, %c0_353, %c0_354] : memref<3x5x20x20xf32, #tpu.memory_space<vmem>>, vector<1x1x20x20xf32>
    %470 = vector.shape_cast %469 : vector<1x1x20x20xf32> to vector<20x20xf32>
    %471 = vector.extract_strided_slice %445 {offsets = [0, 16], sizes = [20, 4], strides = [1, 1]} : vector<20x20xf32> to vector<20x4xf32>
    %cst_355 = arith.constant dense<0.000000e+00> : vector<20x4xf32>
    %472 = tpu.matmul %470, %471, %cst_355 {dimension_numbers = #tpu.dot_dimension_numbers<[1], [0], [0], [1], [0, 0, 1, 1], [], []>} : vector<20x20xf32>, vector<20x4xf32>, vector<20x4xf32> -> vector<20x4xf32>
    %473 = arith.addf %468, %472 : vector<20x4xf32>
    %cst_356 = arith.constant 0.000000e+00 : f32
    %474 = vector.broadcast %cst_356 : f32 to vector<20x4xf32>
    %475 = arith.maximumf %473, %474 : vector<20x4xf32>
    %c16 = arith.constant 16 : index
    %c0_357 = arith.constant 0 : index
    %476 = vector.load %arg10[%c16, %c0_357] : memref<48x80xf32, #tpu.memory_space<vmem>>, vector<4x40xf32>
    %cst_358 = arith.constant dense<0.000000e+00> : vector<20x40xf32>
    %477 = tpu.matmul %475, %476, %cst_358 {dimension_numbers = #tpu.dot_dimension_numbers<[1], [0], [0], [1], [0, 0, 1, 1], [], []>} : vector<20x4xf32>, vector<4x40xf32>, vector<20x40xf32> -> vector<20x40xf32>
    %c1_359 = arith.constant 1 : index
    %c0_360 = arith.constant 0 : index
    %c0_361 = arith.constant 0 : index
    %478 = vector.load %arg12[%c1_359, %c0_360, %c0_361] : memref<3x20x1xf32, #tpu.memory_space<vmem>>, vector<1x20x1xf32>
    %479 = vector.shape_cast %478 : vector<1x20x1xf32> to vector<20x1xf32>
    %c1_362 = arith.constant 1 : index
    %c0_363 = arith.constant 0 : index
    %c0_364 = arith.constant 0 : index
    %c0_365 = arith.constant 0 : index
    %480 = vector.load %arg11[%c1_362, %c0_363, %c0_364, %c0_365] : memref<3x5x20x20xf32, #tpu.memory_space<vmem>>, vector<1x1x20x20xf32>
    %481 = vector.shape_cast %480 : vector<1x1x20x20xf32> to vector<20x20xf32>
    %482 = vector.extract_strided_slice %477 {offsets = [0, 0], sizes = [20, 8], strides = [1, 1]} : vector<20x40xf32> to vector<20x8xf32>
    %cst_366 = arith.constant dense<0.000000e+00> : vector<20x8xf32>
    %483 = tpu.matmul %481, %482, %cst_366 {dimension_numbers = #tpu.dot_dimension_numbers<[1], [0], [0], [1], [0, 0, 1, 1], [], []>} : vector<20x20xf32>, vector<20x8xf32>, vector<20x8xf32> -> vector<20x8xf32>
    %484 = vector.broadcast %479 : vector<20x1xf32> to vector<20x8xf32>
    %485 = arith.addf %484, %483 : vector<20x8xf32>
    %c1_367 = arith.constant 1 : index
    %c1_368 = arith.constant 1 : index
    %c0_369 = arith.constant 0 : index
    %c0_370 = arith.constant 0 : index
    %486 = vector.load %arg11[%c1_367, %c1_368, %c0_369, %c0_370] : memref<3x5x20x20xf32, #tpu.memory_space<vmem>>, vector<1x1x20x20xf32>
    %487 = vector.shape_cast %486 : vector<1x1x20x20xf32> to vector<20x20xf32>
    %488 = vector.extract_strided_slice %477 {offsets = [0, 8], sizes = [20, 8], strides = [1, 1]} : vector<20x40xf32> to vector<20x8xf32>
    %cst_371 = arith.constant dense<0.000000e+00> : vector<20x8xf32>
    %489 = tpu.matmul %487, %488, %cst_371 {dimension_numbers = #tpu.dot_dimension_numbers<[1], [0], [0], [1], [0, 0, 1, 1], [], []>} : vector<20x20xf32>, vector<20x8xf32>, vector<20x8xf32> -> vector<20x8xf32>
    %490 = arith.addf %485, %489 : vector<20x8xf32>
    %c1_372 = arith.constant 1 : index
    %c2_373 = arith.constant 2 : index
    %c0_374 = arith.constant 0 : index
    %c0_375 = arith.constant 0 : index
    %491 = vector.load %arg11[%c1_372, %c2_373, %c0_374, %c0_375] : memref<3x5x20x20xf32, #tpu.memory_space<vmem>>, vector<1x1x20x20xf32>
    %492 = vector.shape_cast %491 : vector<1x1x20x20xf32> to vector<20x20xf32>
    %493 = vector.extract_strided_slice %477 {offsets = [0, 16], sizes = [20, 8], strides = [1, 1]} : vector<20x40xf32> to vector<20x8xf32>
    %cst_376 = arith.constant dense<0.000000e+00> : vector<20x8xf32>
    %494 = tpu.matmul %492, %493, %cst_376 {dimension_numbers = #tpu.dot_dimension_numbers<[1], [0], [0], [1], [0, 0, 1, 1], [], []>} : vector<20x20xf32>, vector<20x8xf32>, vector<20x8xf32> -> vector<20x8xf32>
    %495 = arith.addf %490, %494 : vector<20x8xf32>
    %c1_377 = arith.constant 1 : index
    %c3_378 = arith.constant 3 : index
    %c0_379 = arith.constant 0 : index
    %c0_380 = arith.constant 0 : index
    %496 = vector.load %arg11[%c1_377, %c3_378, %c0_379, %c0_380] : memref<3x5x20x20xf32, #tpu.memory_space<vmem>>, vector<1x1x20x20xf32>
    %497 = vector.shape_cast %496 : vector<1x1x20x20xf32> to vector<20x20xf32>
    %498 = vector.extract_strided_slice %477 {offsets = [0, 24], sizes = [20, 8], strides = [1, 1]} : vector<20x40xf32> to vector<20x8xf32>
    %cst_381 = arith.constant dense<0.000000e+00> : vector<20x8xf32>
    %499 = tpu.matmul %497, %498, %cst_381 {dimension_numbers = #tpu.dot_dimension_numbers<[1], [0], [0], [1], [0, 0, 1, 1], [], []>} : vector<20x20xf32>, vector<20x8xf32>, vector<20x8xf32> -> vector<20x8xf32>
    %500 = arith.addf %495, %499 : vector<20x8xf32>
    %c1_382 = arith.constant 1 : index
    %c4_383 = arith.constant 4 : index
    %c0_384 = arith.constant 0 : index
    %c0_385 = arith.constant 0 : index
    %501 = vector.load %arg11[%c1_382, %c4_383, %c0_384, %c0_385] : memref<3x5x20x20xf32, #tpu.memory_space<vmem>>, vector<1x1x20x20xf32>
    %502 = vector.shape_cast %501 : vector<1x1x20x20xf32> to vector<20x20xf32>
    %503 = vector.extract_strided_slice %477 {offsets = [0, 32], sizes = [20, 8], strides = [1, 1]} : vector<20x40xf32> to vector<20x8xf32>
    %cst_386 = arith.constant dense<0.000000e+00> : vector<20x8xf32>
    %504 = tpu.matmul %502, %503, %cst_386 {dimension_numbers = #tpu.dot_dimension_numbers<[1], [0], [0], [1], [0, 0, 1, 1], [], []>} : vector<20x20xf32>, vector<20x8xf32>, vector<20x8xf32> -> vector<20x8xf32>
    %505 = arith.addf %500, %504 : vector<20x8xf32>
    %cst_387 = arith.constant 0.000000e+00 : f32
    %506 = vector.broadcast %cst_387 : f32 to vector<20x8xf32>
    %507 = arith.maximumf %505, %506 : vector<20x8xf32>
    %c32 = arith.constant 32 : index
    %c0_388 = arith.constant 0 : index
    %508 = vector.load %arg10[%c32, %c0_388] : memref<48x80xf32, #tpu.memory_space<vmem>>, vector<8x80xf32>
    %cst_389 = arith.constant dense<0.000000e+00> : vector<20x80xf32>
    %509 = tpu.matmul %507, %508, %cst_389 {dimension_numbers = #tpu.dot_dimension_numbers<[1], [0], [0], [1], [0, 0, 1, 1], [], []>} : vector<20x8xf32>, vector<8x80xf32>, vector<20x80xf32> -> vector<20x80xf32>
    %c2_390 = arith.constant 2 : index
    %c0_391 = arith.constant 0 : index
    %c0_392 = arith.constant 0 : index
    %510 = vector.load %arg12[%c2_390, %c0_391, %c0_392] : memref<3x20x1xf32, #tpu.memory_space<vmem>>, vector<1x20x1xf32>
    %511 = vector.shape_cast %510 : vector<1x20x1xf32> to vector<20x1xf32>
    %c2_393 = arith.constant 2 : index
    %c0_394 = arith.constant 0 : index
    %c0_395 = arith.constant 0 : index
    %c0_396 = arith.constant 0 : index
    %512 = vector.load %arg11[%c2_393, %c0_394, %c0_395, %c0_396] : memref<3x5x20x20xf32, #tpu.memory_space<vmem>>, vector<1x1x20x20xf32>
    %513 = vector.shape_cast %512 : vector<1x1x20x20xf32> to vector<20x20xf32>
    %514 = vector.extract_strided_slice %509 {offsets = [0, 0], sizes = [20, 16], strides = [1, 1]} : vector<20x80xf32> to vector<20x16xf32>
    %cst_397 = arith.constant dense<0.000000e+00> : vector<20x16xf32>
    %515 = tpu.matmul %513, %514, %cst_397 {dimension_numbers = #tpu.dot_dimension_numbers<[1], [0], [0], [1], [0, 0, 1, 1], [], []>} : vector<20x20xf32>, vector<20x16xf32>, vector<20x16xf32> -> vector<20x16xf32>
    %516 = vector.broadcast %511 : vector<20x1xf32> to vector<20x16xf32>
    %517 = arith.addf %516, %515 : vector<20x16xf32>
    %c2_398 = arith.constant 2 : index
    %c1_399 = arith.constant 1 : index
    %c0_400 = arith.constant 0 : index
    %c0_401 = arith.constant 0 : index
    %518 = vector.load %arg11[%c2_398, %c1_399, %c0_400, %c0_401] : memref<3x5x20x20xf32, #tpu.memory_space<vmem>>, vector<1x1x20x20xf32>
    %519 = vector.shape_cast %518 : vector<1x1x20x20xf32> to vector<20x20xf32>
    %520 = vector.extract_strided_slice %509 {offsets = [0, 16], sizes = [20, 16], strides = [1, 1]} : vector<20x80xf32> to vector<20x16xf32>
    %cst_402 = arith.constant dense<0.000000e+00> : vector<20x16xf32>
    %521 = tpu.matmul %519, %520, %cst_402 {dimension_numbers = #tpu.dot_dimension_numbers<[1], [0], [0], [1], [0, 0, 1, 1], [], []>} : vector<20x20xf32>, vector<20x16xf32>, vector<20x16xf32> -> vector<20x16xf32>
    %522 = arith.addf %517, %521 : vector<20x16xf32>
    %c2_403 = arith.constant 2 : index
    %c2_404 = arith.constant 2 : index
    %c0_405 = arith.constant 0 : index
    %c0_406 = arith.constant 0 : index
    %523 = vector.load %arg11[%c2_403, %c2_404, %c0_405, %c0_406] : memref<3x5x20x20xf32, #tpu.memory_space<vmem>>, vector<1x1x20x20xf32>
    %524 = vector.shape_cast %523 : vector<1x1x20x20xf32> to vector<20x20xf32>
    %525 = vector.extract_strided_slice %509 {offsets = [0, 32], sizes = [20, 16], strides = [1, 1]} : vector<20x80xf32> to vector<20x16xf32>
    %cst_407 = arith.constant dense<0.000000e+00> : vector<20x16xf32>
    %526 = tpu.matmul %524, %525, %cst_407 {dimension_numbers = #tpu.dot_dimension_numbers<[1], [0], [0], [1], [0, 0, 1, 1], [], []>} : vector<20x20xf32>, vector<20x16xf32>, vector<20x16xf32> -> vector<20x16xf32>
    %527 = arith.addf %522, %526 : vector<20x16xf32>
    %c2_408 = arith.constant 2 : index
    %c3_409 = arith.constant 3 : index
    %c0_410 = arith.constant 0 : index
    %c0_411 = arith.constant 0 : index
    %528 = vector.load %arg11[%c2_408, %c3_409, %c0_410, %c0_411] : memref<3x5x20x20xf32, #tpu.memory_space<vmem>>, vector<1x1x20x20xf32>
    %529 = vector.shape_cast %528 : vector<1x1x20x20xf32> to vector<20x20xf32>
    %530 = vector.extract_strided_slice %509 {offsets = [0, 48], sizes = [20, 16], strides = [1, 1]} : vector<20x80xf32> to vector<20x16xf32>
    %cst_412 = arith.constant dense<0.000000e+00> : vector<20x16xf32>
    %531 = tpu.matmul %529, %530, %cst_412 {dimension_numbers = #tpu.dot_dimension_numbers<[1], [0], [0], [1], [0, 0, 1, 1], [], []>} : vector<20x20xf32>, vector<20x16xf32>, vector<20x16xf32> -> vector<20x16xf32>
    %532 = arith.addf %527, %531 : vector<20x16xf32>
    %c2_413 = arith.constant 2 : index
    %c4_414 = arith.constant 4 : index
    %c0_415 = arith.constant 0 : index
    %c0_416 = arith.constant 0 : index
    %533 = vector.load %arg11[%c2_413, %c4_414, %c0_415, %c0_416] : memref<3x5x20x20xf32, #tpu.memory_space<vmem>>, vector<1x1x20x20xf32>
    %534 = vector.shape_cast %533 : vector<1x1x20x20xf32> to vector<20x20xf32>
    %535 = vector.extract_strided_slice %509 {offsets = [0, 64], sizes = [20, 16], strides = [1, 1]} : vector<20x80xf32> to vector<20x16xf32>
    %cst_417 = arith.constant dense<0.000000e+00> : vector<20x16xf32>
    %536 = tpu.matmul %534, %535, %cst_417 {dimension_numbers = #tpu.dot_dimension_numbers<[1], [0], [0], [1], [0, 0, 1, 1], [], []>} : vector<20x20xf32>, vector<20x16xf32>, vector<20x16xf32> -> vector<20x16xf32>
    %537 = arith.addf %532, %536 : vector<20x16xf32>
    %cst_418 = arith.constant 0.000000e+00 : f32
    %538 = vector.broadcast %cst_418 : f32 to vector<20x16xf32>
    %539 = arith.maximumf %537, %538 : vector<20x16xf32>
    %c0_419 = arith.constant 0 : index
    %c0_420 = arith.constant 0 : index
    %c0_421 = arith.constant 0 : index
    %540 = vector.load %arg13[%c0_419, %c0_420, %c0_421] : memref<2x4x20xf32, #tpu.memory_space<vmem>>, vector<1x4x20xf32>
    %541 = vector.shape_cast %540 : vector<1x4x20xf32> to vector<4x20xf32>
    %cst_422 = arith.constant dense<0.000000e+00> : vector<4x16xf32>
    %542 = tpu.matmul %541, %311, %cst_422 {dimension_numbers = #tpu.dot_dimension_numbers<[1], [0], [0], [1], [0, 0, 1, 1], [], []>} : vector<4x20xf32>, vector<20x16xf32>, vector<4x16xf32> -> vector<4x16xf32>
    %c1_423 = arith.constant 1 : index
    %c0_424 = arith.constant 0 : index
    %c0_425 = arith.constant 0 : index
    %543 = vector.load %arg13[%c1_423, %c0_424, %c0_425] : memref<2x4x20xf32, #tpu.memory_space<vmem>>, vector<1x4x20xf32>
    %544 = vector.shape_cast %543 : vector<1x4x20xf32> to vector<4x20xf32>
    %cst_426 = arith.constant dense<0.000000e+00> : vector<4x16xf32>
    %545 = tpu.matmul %544, %539, %cst_426 {dimension_numbers = #tpu.dot_dimension_numbers<[1], [0], [0], [1], [0, 0, 1, 1], [], []>} : vector<4x20xf32>, vector<20x16xf32>, vector<4x16xf32> -> vector<4x16xf32>
    %546 = arith.addf %542, %545 : vector<4x16xf32>
    %c0_427 = arith.constant 0 : index
    %c0_428 = arith.constant 0 : index
    %547 = vector.load %arg14[%c0_427, %c0_428] : memref<4x1xf32, #tpu.memory_space<vmem>>, vector<4x1xf32>
    %548 = vector.broadcast %547 : vector<4x1xf32> to vector<4x16xf32>
    %549 = arith.addf %546, %548 : vector<4x16xf32>
    %550 = vector.extract_strided_slice %549 {offsets = [0, 0], sizes = [3, 16], strides = [1, 1]} : vector<4x16xf32> to vector<3x16xf32>
    %cst_429 = arith.constant dense<0xFF800000> : vector<16xf32>
    %551 = vector.multi_reduction <maximumf>, %550, %cst_429 [0] : vector<3x16xf32> to vector<16xf32>
    %552 = vector.shape_cast %551 : vector<16xf32> to vector<1x16xf32>
    %553 = vector.broadcast %552 : vector<1x16xf32> to vector<3x16xf32>
    %554 = arith.subf %550, %553 : vector<3x16xf32>
    %555 = math.exp %554 : vector<3x16xf32>
    %cst_430 = arith.constant dense<0.000000e+00> : vector<16xf32>
    %556 = vector.multi_reduction <add>, %555, %cst_430 [0] : vector<3x16xf32> to vector<16xf32>
    %557 = vector.shape_cast %556 : vector<16xf32> to vector<1x16xf32>
    %558 = vector.broadcast %557 : vector<1x16xf32> to vector<3x16xf32>
    %559 = arith.divf %555, %558 : vector<3x16xf32>
    %c0_431 = arith.constant 0 : index
    %c0_432 = arith.constant 0 : index
    %c0_433 = arith.constant 0 : index
    %560 = vector.load %arg15[%c0_431, %c0_432, %c0_433] : memref<1x4x16xf32, #tpu.memory_space<vmem>>, vector<1x3x16xf32>
    %561 = vector.shape_cast %560 : vector<1x3x16xf32> to vector<3x16xf32>
    %562 = vector.shape_cast %559 : vector<3x16xf32> to vector<1x3x16xf32>
    tpu.vector_store %arg15[%c0_431, %c0_432, %c0_433], %562 {strides = array<i32>} : memref<1x4x16xf32, #tpu.memory_space<vmem>>, vector<1x3x16xf32>,
    %563 = vector.extract_strided_slice %549 {offsets = [3, 0], sizes = [1, 16], strides = [1, 1]} : vector<4x16xf32> to vector<1x16xf32>
    %cst_434 = arith.constant 8.000000e+00 : f32
    %564 = vector.broadcast %cst_434 : f32 to vector<1x16xf32>
    %565 = arith.mulf %563, %564 : vector<1x16xf32>
    %c0_435 = arith.constant 0 : index
    %c3_436 = arith.constant 3 : index
    %c0_437 = arith.constant 0 : index
    %566 = vector.load %arg15[%c0_435, %c3_436, %c0_437] : memref<1x4x16xf32, #tpu.memory_space<vmem>>, vector<1x1x16xf32>
    %567 = vector.shape_cast %566 : vector<1x1x16xf32> to vector<1x16xf32>
    %568 = vector.shape_cast %565 : vector<1x16xf32> to vector<1x1x16xf32>
    tpu.vector_store %arg15[%c0_435, %c3_436, %c0_437], %568 {strides = array<i32>} : memref<1x4x16xf32, #tpu.memory_space<vmem>>, vector<1x1x16xf32>,
    return
  }
  func.func @transform_0(%arg0: i32) -> (i32, i32, i32) {
    %c0_i32 = arith.constant 0 : i32
    %c0_i32_0 = arith.constant 0 : i32
    %c0_i32_1 = arith.constant 0 : i32
    return %arg0, %c0_i32, %c0_i32_0 : i32, i32, i32
  }
  func.func @transform_1(%arg0: i32) -> (i32, i32) {
    %c0_i32 = arith.constant 0 : i32
    %c0_i32_0 = arith.constant 0 : i32
    %c0_i32_1 = arith.constant 0 : i32
    return %c0_i32, %c0_i32_0 : i32, i32
  }
  func.func @transform_2(%arg0: i32) -> (i32, i32, i32) {
    %c0_i32 = arith.constant 0 : i32
    %c0_i32_0 = arith.constant 0 : i32
    %c0_i32_1 = arith.constant 0 : i32
    %c0_i32_2 = arith.constant 0 : i32
    return %c0_i32, %c0_i32_0, %c0_i32_1 : i32, i32, i32
  }
  func.func @transform_3(%arg0: i32) -> (i32, i32, i32) {
    %c0_i32 = arith.constant 0 : i32
    %c0_i32_0 = arith.constant 0 : i32
    %c0_i32_1 = arith.constant 0 : i32
    %c0_i32_2 = arith.constant 0 : i32
    return %c0_i32, %c0_i32_0, %c0_i32_1 : i32, i32, i32
  }
  func.func @transform_4(%arg0: i32) -> (i32, i32, i32, i32) {
    %c0_i32 = arith.constant 0 : i32
    %c0_i32_0 = arith.constant 0 : i32
    %c0_i32_1 = arith.constant 0 : i32
    %c0_i32_2 = arith.constant 0 : i32
    %c0_i32_3 = arith.constant 0 : i32
    return %c0_i32, %c0_i32_0, %c0_i32_1, %c0_i32_2 : i32, i32, i32, i32
  }
  func.func @transform_5(%arg0: i32) -> (i32, i32, i32) {
    %c0_i32 = arith.constant 0 : i32
    %c0_i32_0 = arith.constant 0 : i32
    %c0_i32_1 = arith.constant 0 : i32
    %c0_i32_2 = arith.constant 0 : i32
    return %c0_i32, %c0_i32_0, %c0_i32_1 : i32, i32, i32
  }
  func.func @transform_6(%arg0: i32) -> (i32, i32, i32) {
    %c0_i32 = arith.constant 0 : i32
    %c0_i32_0 = arith.constant 0 : i32
    %c0_i32_1 = arith.constant 0 : i32
    %c0_i32_2 = arith.constant 0 : i32
    return %c0_i32, %c0_i32_0, %c0_i32_1 : i32, i32, i32
  }
  func.func @transform_7(%arg0: i32) -> (i32, i32, i32) {
    %c0_i32 = arith.constant 0 : i32
    %c0_i32_0 = arith.constant 0 : i32
    %c0_i32_1 = arith.constant 0 : i32
    %c0_i32_2 = arith.constant 0 : i32
    return %c0_i32, %c0_i32_0, %c0_i32_1 : i32, i32, i32
  }
  func.func @transform_8(%arg0: i32) -> (i32, i32) {
    %c0_i32 = arith.constant 0 : i32
    %c0_i32_0 = arith.constant 0 : i32
    %c0_i32_1 = arith.constant 0 : i32
    return %c0_i32, %c0_i32_0 : i32, i32
  }
  func.func @transform_9(%arg0: i32) -> (i32, i32) {
    %c0_i32 = arith.constant 0 : i32
    %c0_i32_0 = arith.constant 0 : i32
    %c0_i32_1 = arith.constant 0 : i32
    return %c0_i32, %c0_i32_0 : i32, i32
  }
  func.func @transform_10(%arg0: i32) -> (i32, i32, i32, i32) {
    %c0_i32 = arith.constant 0 : i32
    %c0_i32_0 = arith.constant 0 : i32
    %c0_i32_1 = arith.constant 0 : i32
    %c0_i32_2 = arith.constant 0 : i32
    %c0_i32_3 = arith.constant 0 : i32
    return %c0_i32, %c0_i32_0, %c0_i32_1, %c0_i32_2 : i32, i32, i32, i32
  }
  func.func @transform_11(%arg0: i32) -> (i32, i32, i32) {
    %c0_i32 = arith.constant 0 : i32
    %c0_i32_0 = arith.constant 0 : i32
    %c0_i32_1 = arith.constant 0 : i32
    %c0_i32_2 = arith.constant 0 : i32
    return %c0_i32, %c0_i32_0, %c0_i32_1 : i32, i32, i32
  }
  func.func @transform_12(%arg0: i32) -> (i32, i32, i32) {
    %c0_i32 = arith.constant 0 : i32
    %c0_i32_0 = arith.constant 0 : i32
    %c0_i32_1 = arith.constant 0 : i32
    %c0_i32_2 = arith.constant 0 : i32
    return %c0_i32, %c0_i32_0, %c0_i32_1 : i32, i32, i32
  }
  func.func @transform_13(%arg0: i32) -> (i32, i32) {
    %c0_i32 = arith.constant 0 : i32
    %c0_i32_0 = arith.constant 0 : i32
    %c0_i32_1 = arith.constant 0 : i32
    return %c0_i32, %c0_i32_0 : i32, i32
  }
  func.func @transform_14(%arg0: i32) -> (i32, i32, i32) {
    %c0_i32 = arith.constant 0 : i32
    %c0_i32_0 = arith.constant 0 : i32
    %c0_i32_1 = arith.constant 0 : i32
    return %arg0, %c0_i32, %c0_i32_0 : i32, i32, i32
  }
}

</mosaic_0001>

<llo_original>
// kernel: forward.1
$region0: #{forward.1}
  #allocation0 [shape = 'u32[]', space=smem, size = 0x4, offset = 0x4, fixed_abs, tag = 'smem constant byte address 0x4 - core index']
  #allocation1 [shape = 'u32[72,128]{1,0:T(1,128)}', space=vmem, size = 0x9000, scoped, tag = 'internal scratch']
  %s0 = inlined_call_operand.vmem [shape: f32[2,3,128], index: 0, kind: input, shape index: {}]
  %s1 = inlined_call_operand.hbm [shape: f32[3,128], index: 1, kind: input, shape index: {}]
  %s2 = inlined_call_operand.hbm [shape: bf16[10,40,20], index: 2, kind: input, shape index: {}]
  %s3 = inlined_call_operand.hbm [shape: f32[10,40,1], index: 3, kind: input, shape index: {}]
  %s4 = inlined_call_operand.hbm [shape: f32[10,3,40,1], index: 4, kind: input, shape index: {}]
  %s5 = inlined_call_operand.hbm [shape: f32[10,40,1], index: 5, kind: input, shape index: {}]
  %s6 = inlined_call_operand.hbm [shape: bf16[10,20,40], index: 6, kind: input, shape index: {}]
  %s7 = inlined_call_operand.hbm [shape: f32[10,20,1], index: 7, kind: input, shape index: {}]
  %s8 = inlined_call_operand.hbm [shape: bf16[624,384], index: 8, kind: input, shape index: {}]
  %s9 = inlined_call_operand.hbm [shape: f32[48,80], index: 9, kind: input, shape index: {}]
  %s10 = inlined_call_operand.hbm [shape: f32[3,5,20,20], index: 10, kind: input, shape index: {}]
  %s11 = inlined_call_operand.hbm [shape: f32[3,20,1], index: 11, kind: input, shape index: {}]
  %s12 = inlined_call_operand.vmem [shape: f32[2,4,20], index: 12, kind: input, shape index: {}]
  %s13 = inlined_call_operand.vmem [shape: f32[4,1], index: 13, kind: input, shape index: {}]
  %s14 = inlined_call_operand.vmem [shape: f32[2,4,16], index: 14, kind: output, shape index: {}]
  %s15 = sld [smem:[#allocation0]]
  $region133: #{forward.1} parent=0
    _
  %s17 = ssub.s32 1, %s15
  %s18 = scalar_select 0, %s17, %s15
  $region1: #{forward.1} parent=0
    #allocation2 [shape = 'u8[2048]{0}', space=vmem, size = 0x800, scoped, tag = 'input window, operand 1, single buffered']
    #allocation3 [shape = 's32[2]{0}', space=sflag, size = 0x8, scoped, tag = 'scoped memory for forward.1']
    #allocation4 [shape = 'u8[102400]{0}', space=vmem, size = 0x19000, scoped, tag = 'input window, operand 2, single buffered']
    #allocation5 [shape = 's32[1]{0}', space=sflag, size = 0x4, scoped, tag = 'scoped memory for forward.1']
    #allocation6 [shape = 'u8[204800]{0}', space=vmem, size = 0x32000, scoped, tag = 'input window, operand 3, single buffered']
    #allocation7 [shape = 'u8[614400]{0}', space=vmem, size = 0x96000, scoped, tag = 'input window, operand 4, single buffered']
    #allocation8 [shape = 's32[1]{0}', space=sflag, size = 0x4, scoped, tag = 'scoped memory for forward.1']
    #allocation9 [shape = 'u8[204800]{0}', space=vmem, size = 0x32000, scoped, tag = 'input window, operand 5, single buffered']
    #allocation10 [shape = 'u8[61440]{0}', space=vmem, size = 0xf000, scoped, tag = 'input window, operand 6, single buffered']
    #allocation11 [shape = 's32[1]{0}', space=sflag, size = 0x4, scoped, tag = 'scoped memory for forward.1']
    #allocation12 [shape = 'u8[122880]{0}', space=vmem, size = 0x1e000, scoped, tag = 'input window, operand 7, single buffered']
    #allocation13 [shape = 'u8[479232]{0}', space=vmem, size = 0x75000, scoped, tag = 'input window, operand 8, single buffered']
    #allocation14 [shape = 's32[1]{0}', space=sflag, size = 0x4, scoped, tag = 'scoped memory for forward.1']
    #allocation15 [shape = 'u8[24576]{0}', space=vmem, size = 0x6000, scoped, tag = 'input window, operand 9, single buffered']
    #allocation16 [shape = 'u8[184320]{0}', space=vmem, size = 0x2d000, scoped, tag = 'input window, operand 10, single buffered']
    #allocation17 [shape = 's32[1]{0}', space=sflag, size = 0x4, scoped, tag = 'scoped memory for forward.1']
    #allocation18 [shape = 'u8[36864]{0}', space=vmem, size = 0x9000, scoped, tag = 'input window, operand 11, single buffered']
    %19 = vsyncpa [#allocation3], 0
    %20 = vsyncpa [#allocation5], 0
    %21 = vsyncpa [#allocation8], 0
    %22 = vsyncpa [#allocation11], 0
    %23 = vsyncpa [#allocation14], 0
    %24 = vsyncpa [#allocation17], 0
    loop: start=0, step=1, limit=4
    $region2: #{forward.1} parent=1 // loop_pre_header
      _
    $region3: #{forward.1} parent=1 // loop_header
      %s26 = sphi 0, %s30
      %p27 = scmp.ge.s32.totalorder %s26, 4
      %s36 = sphi 0, %s38
      %s39 = sphi 0, %s36
      %s40 = sphi 0, %s39
      %s56 = sphi 0, %s40
      %s60 = sphi 0, %s60
      %s62 = sphi 0, %s60
      %s63 = sphi 0, %s62
      %s77 = sphi 0, %s63
      %s81 = sphi 0, %s81
      %s83 = sphi 0, %s81
      %s84 = sphi 0, %s83
      %s98 = sphi 0, %s84
      %s102 = sphi 0, %s102
      %s104 = sphi 0, %s102
      %s105 = sphi 0, %s104
      %s119 = sphi 0, %s105
      %s123 = sphi 0, %s123
      %s125 = sphi 0, %s123
      %s126 = sphi 0, %s125
      %s140 = sphi 0, %s126
      %s144 = sphi 0, %s144
      %s146 = sphi 0, %s144
      %s147 = sphi 0, %s146
      %s161 = sphi 0, %s147
      %s165 = sphi 0, %s165
      %s167 = sphi 0, %s165
      %s168 = sphi 0, %s167
      %s182 = sphi 0, %s168
      %s186 = sphi 0, %s186
      %s188 = sphi 0, %s186
      %s189 = sphi 0, %s188
      %s203 = sphi 0, %s189
      %s207 = sphi 0, %s207
      %s209 = sphi 0, %s207
      %s210 = sphi 0, %s209
      %s224 = sphi 0, %s210
      %s228 = sphi 0, %s228
      %s230 = sphi 0, %s228
      %s231 = sphi 0, %s230
      %s245 = sphi 0, %s231
      %s249 = sphi 0, %s249
      %s251 = sphi 0, %s249
      %s252 = sphi 0, %s251
      %s266 = sphi 0, %s252
      %s270 = sphi 0, %s270
      %s272 = sphi 0, %s270
      %s273 = sphi 0, %s272
      %s287 = sphi 0, %s273
      %s291 = sphi 0, %s291
      %s293 = sphi 0, %s291
      %s294 = sphi 0, %s293
      %s308 = sphi 0, %s294
      %s312 = sphi 0, %s312
      %s314 = sphi 0, %s312
      %s315 = sphi 0, %s314
      %s329 = sphi 0, %s315
      %s335 = sphi 0, %s337
      %s338 = sphi 0, %s335
      %s339 = sphi 0, %s338
      %s355 = sphi 0, %s339
    $region4: #{forward.1} parent=1 // loop_header_branch
      %29 = sbr.rel (%p27) target = $region8
    $region5: #{forward.1} parent=1 // loop_body
      %s31 = ssub.s32 %s26, 1
      %s32 = ssub.s32 %s26, 2
      %s33 = sadd.s32 %s26, 1
      %s34 = ssub.s32 %s26, %s33
      %p35 = scmp.eq.s32.totalorder %s34, 0
      %s37 = sadd.s32 %s36, 1
      %s38 = scalar_select %p35, %s36, %s37
      %p41 = pneg %p35
      %p42 = scmp.eq.s32.totalorder %s26, 1
      %p43 = por %p41, %p42
      %p44 = scmp.ne.s32.totalorder %s36, %s39
      %p45 = scmp.eq.s32.totalorder %s26, 0
      %p46 = por %p44, %p45
      %p47 = scmp.ne.s32.totalorder %s36, %s39
      %p48 = scmp.eq.s32.totalorder %s31, 1
      %p49 = por %p47, %p48
      %p50 = scmp.ne.s32.totalorder %s39, %s40
      %p51 = scmp.eq.s32.totalorder %s31, 0
      %p52 = por %p50, %p51
      %p53 = scmp.ne.s32.totalorder %s39, %s40
      %p54 = scmp.eq.s32.totalorder %s32, 1
      %p55 = por %p53, %p54
      %p57 = scmp.ne.s32.totalorder %s40, %s56
      %p58 = scmp.eq.s32.totalorder %s32, 0
      %p59 = por %p57, %p58
      %s61 = sadd.s32 %s60, 1
      %p64 = scmp.eq.s32.totalorder %s26, 1
      %p65 = scmp.ne.s32.totalorder %s60, %s62
      %p66 = scmp.eq.s32.totalorder %s26, 0
      %p67 = por %p65, %p66
      %p68 = scmp.ne.s32.totalorder %s60, %s62
      %p69 = scmp.eq.s32.totalorder %s31, 1
      %p70 = por %p68, %p69
      %p71 = scmp.ne.s32.totalorder %s62, %s63
      %p72 = scmp.eq.s32.totalorder %s31, 0
      %p73 = por %p71, %p72
      %p74 = scmp.ne.s32.totalorder %s62, %s63
      %p75 = scmp.eq.s32.totalorder %s32, 1
      %p76 = por %p74, %p75
      %p78 = scmp.ne.s32.totalorder %s63, %s77
      %p79 = scmp.eq.s32.totalorder %s32, 0
      %p80 = por %p78, %p79
      %s82 = sadd.s32 %s81, 1
      %p85 = scmp.eq.s32.totalorder %s26, 1
      %p86 = scmp.ne.s32.totalorder %s81, %s83
      %p87 = scmp.eq.s32.totalorder %s26, 0
      %p88 = por %p86, %p87
      %p89 = scmp.ne.s32.totalorder %s81, %s83
      %p90 = scmp.eq.s32.totalorder %s31, 1
      %p91 = por %p89, %p90
      %p92 = scmp.ne.s32.totalorder %s83, %s84
      %p93 = scmp.eq.s32.totalorder %s31, 0
      %p94 = por %p92, %p93
      %p95 = scmp.ne.s32.totalorder %s83, %s84
      %p96 = scmp.eq.s32.totalorder %s32, 1
      %p97 = por %p95, %p96
      %p99 = scmp.ne.s32.totalorder %s84, %s98
      %p100 = scmp.eq.s32.totalorder %s32, 0
      %p101 = por %p99, %p100
      %s103 = sadd.s32 %s102, 1
      %p106 = scmp.eq.s32.totalorder %s26, 1
      %p107 = scmp.ne.s32.totalorder %s102, %s104
      %p108 = scmp.eq.s32.totalorder %s26, 0
      %p109 = por %p107, %p108
      %p110 = scmp.ne.s32.totalorder %s102, %s104
      %p111 = scmp.eq.s32.totalorder %s31, 1
      %p112 = por %p110, %p111
      %p113 = scmp.ne.s32.totalorder %s104, %s105
      %p114 = scmp.eq.s32.totalorder %s31, 0
      %p115 = por %p113, %p114
      %p116 = scmp.ne.s32.totalorder %s104, %s105
      %p117 = scmp.eq.s32.totalorder %s32, 1
      %p118 = por %p116, %p117
      %p120 = scmp.ne.s32.totalorder %s105, %s119
      %p121 = scmp.eq.s32.totalorder %s32, 0
      %p122 = por %p120, %p121
      %s124 = sadd.s32 %s123, 1
      %p127 = scmp.eq.s32.totalorder %s26, 1
      %p128 = scmp.ne.s32.totalorder %s123, %s125
      %p129 = scmp.eq.s32.totalorder %s26, 0
      %p130 = por %p128, %p129
      %p131 = scmp.ne.s32.totalorder %s123, %s125
      %p132 = scmp.eq.s32.totalorder %s31, 1
      %p133 = por %p131, %p132
      %p134 = scmp.ne.s32.totalorder %s125, %s126
      %p135 = scmp.eq.s32.totalorder %s31, 0
      %p136 = por %p134, %p135
      %p137 = scmp.ne.s32.totalorder %s125, %s126
      %p138 = scmp.eq.s32.totalorder %s32, 1
      %p139 = por %p137, %p138
      %p141 = scmp.ne.s32.totalorder %s126, %s140
      %p142 = scmp.eq.s32.totalorder %s32, 0
      %p143 = por %p141, %p142
      %s145 = sadd.s32 %s144, 1
      %p148 = scmp.eq.s32.totalorder %s26, 1
      %p149 = scmp.ne.s32.totalorder %s144, %s146
      %p150 = scmp.eq.s32.totalorder %s26, 0
      %p151 = por %p149, %p150
      %p152 = scmp.ne.s32.totalorder %s144, %s146
      %p153 = scmp.eq.s32.totalorder %s31, 1
      %p154 = por %p152, %p153
      %p155 = scmp.ne.s32.totalorder %s146, %s147
      %p156 = scmp.eq.s32.totalorder %s31, 0
      %p157 = por %p155, %p156
      %p158 = scmp.ne.s32.totalorder %s146, %s147
      %p159 = scmp.eq.s32.totalorder %s32, 1
      %p160 = por %p158, %p159
      %p162 = scmp.ne.s32.totalorder %s147, %s161
      %p163 = scmp.eq.s32.totalorder %s32, 0
      %p164 = por %p162, %p163
      %s166 = sadd.s32 %s165, 1
      %p169 = scmp.eq.s32.totalorder %s26, 1
      %p170 = scmp.ne.s32.totalorder %s165, %s167
      %p171 = scmp.eq.s32.totalorder %s26, 0
      %p172 = por %p170, %p171
      %p173 = scmp.ne.s32.totalorder %s165, %s167
      %p174 = scmp.eq.s32.totalorder %s31, 1
      %p175 = por %p173, %p174
      %p176 = scmp.ne.s32.totalorder %s167, %s168
      %p177 = scmp.eq.s32.totalorder %s31, 0
      %p178 = por %p176, %p177
      %p179 = scmp.ne.s32.totalorder %s167, %s168
      %p180 = scmp.eq.s32.totalorder %s32, 1
      %p181 = por %p179, %p180
      %p183 = scmp.ne.s32.totalorder %s168, %s182
      %p184 = scmp.eq.s32.totalorder %s32, 0
      %p185 = por %p183, %p184
      %s187 = sadd.s32 %s186, 1
      %p190 = scmp.eq.s32.totalorder %s26, 1
      %p191 = scmp.ne.s32.totalorder %s186, %s188
      %p192 = scmp.eq.s32.totalorder %s26, 0
      %p193 = por %p191, %p192
      %p194 = scmp.ne.s32.totalorder %s186, %s188
      %p195 = scmp.eq.s32.totalorder %s31, 1
      %p196 = por %p194, %p195
      %p197 = scmp.ne.s32.totalorder %s188, %s189
      %p198 = scmp.eq.s32.totalorder %s31, 0
      %p199 = por %p197, %p198
      %p200 = scmp.ne.s32.totalorder %s188, %s189
      %p201 = scmp.eq.s32.totalorder %s32, 1
      %p202 = por %p200, %p201
      %p204 = scmp.ne.s32.totalorder %s189, %s203
      %p205 = scmp.eq.s32.totalorder %s32, 0
      %p206 = por %p204, %p205
      %s208 = sadd.s32 %s207, 1
      %p211 = scmp.eq.s32.totalorder %s26, 1
      %p212 = scmp.ne.s32.totalorder %s207, %s209
      %p213 = scmp.eq.s32.totalorder %s26, 0
      %p214 = por %p212, %p213
      %p215 = scmp.ne.s32.totalorder %s207, %s209
      %p216 = scmp.eq.s32.totalorder %s31, 1
      %p217 = por %p215, %p216
      %p218 = scmp.ne.s32.totalorder %s209, %s210
      %p219 = scmp.eq.s32.totalorder %s31, 0
      %p220 = por %p218, %p219
      %p221 = scmp.ne.s32.totalorder %s209, %s210
      %p222 = scmp.eq.s32.totalorder %s32, 1
      %p223 = por %p221, %p222
      %p225 = scmp.ne.s32.totalorder %s210, %s224
      %p226 = scmp.eq.s32.totalorder %s32, 0
      %p227 = por %p225, %p226
      %s229 = sadd.s32 %s228, 1
      %p232 = scmp.eq.s32.totalorder %s26, 1
      %p233 = scmp.ne.s32.totalorder %s228, %s230
      %p234 = scmp.eq.s32.totalorder %s26, 0
      %p235 = por %p233, %p234
      %p236 = scmp.ne.s32.totalorder %s228, %s230
      %p237 = scmp.eq.s32.totalorder %s31, 1
      %p238 = por %p236, %p237
      %p239 = scmp.ne.s32.totalorder %s230, %s231
      %p240 = scmp.eq.s32.totalorder %s31, 0
      %p241 = por %p239, %p240
      %p242 = scmp.ne.s32.totalorder %s230, %s231
      %p243 = scmp.eq.s32.totalorder %s32, 1
      %p244 = por %p242, %p243
      %p246 = scmp.ne.s32.totalorder %s231, %s245
      %p247 = scmp.eq.s32.totalorder %s32, 0
      %p248 = por %p246, %p247
      %s250 = sadd.s32 %s249, 1
      %p253 = scmp.eq.s32.totalorder %s26, 1
      %p254 = scmp.ne.s32.totalorder %s249, %s251
      %p255 = scmp.eq.s32.totalorder %s26, 0
      %p256 = por %p254, %p255
      %p257 = scmp.ne.s32.totalorder %s249, %s251
      %p258 = scmp.eq.s32.totalorder %s31, 1
      %p259 = por %p257, %p258
      %p260 = scmp.ne.s32.totalorder %s251, %s252
      %p261 = scmp.eq.s32.totalorder %s31, 0
      %p262 = por %p260, %p261
      %p263 = scmp.ne.s32.totalorder %s251, %s252
      %p264 = scmp.eq.s32.totalorder %s32, 1
      %p265 = por %p263, %p264
      %p267 = scmp.ne.s32.totalorder %s252, %s266
      %p268 = scmp.eq.s32.totalorder %s32, 0
      %p269 = por %p267, %p268
      %s271 = sadd.s32 %s270, 1
      %p274 = scmp.eq.s32.totalorder %s26, 1
      %p275 = scmp.ne.s32.totalorder %s270, %s272
      %p276 = scmp.eq.s32.totalorder %s26, 0
      %p277 = por %p275, %p276
      %p278 = scmp.ne.s32.totalorder %s270, %s272
      %p279 = scmp.eq.s32.totalorder %s31, 1
      %p280 = por %p278, %p279
      %p281 = scmp.ne.s32.totalorder %s272, %s273
      %p282 = scmp.eq.s32.totalorder %s31, 0
      %p283 = por %p281, %p282
      %p284 = scmp.ne.s32.totalorder %s272, %s273
      %p285 = scmp.eq.s32.totalorder %s32, 1
      %p286 = por %p284, %p285
      %p288 = scmp.ne.s32.totalorder %s273, %s287
      %p289 = scmp.eq.s32.totalorder %s32, 0
      %p290 = por %p288, %p289
      %s292 = sadd.s32 %s291, 1
      %p295 = scmp.eq.s32.totalorder %s26, 1
      %p296 = scmp.ne.s32.totalorder %s291, %s293
      %p297 = scmp.eq.s32.totalorder %s26, 0
      %p298 = por %p296, %p297
      %p299 = scmp.ne.s32.totalorder %s291, %s293
      %p300 = scmp.eq.s32.totalorder %s31, 1
      %p301 = por %p299, %p300
      %p302 = scmp.ne.s32.totalorder %s293, %s294
      %p303 = scmp.eq.s32.totalorder %s31, 0
      %p304 = por %p302, %p303
      %p305 = scmp.ne.s32.totalorder %s293, %s294
      %p306 = scmp.eq.s32.totalorder %s32, 1
      %p307 = por %p305, %p306
      %p309 = scmp.ne.s32.totalorder %s294, %s308
      %p310 = scmp.eq.s32.totalorder %s32, 0
      %p311 = por %p309, %p310
      %s313 = sadd.s32 %s312, 1
      %p316 = scmp.eq.s32.totalorder %s26, 1
      %p317 = scmp.ne.s32.totalorder %s312, %s314
      %p318 = scmp.eq.s32.totalorder %s26, 0
      %p319 = por %p317, %p318
      %p320 = scmp.ne.s32.totalorder %s312, %s314
      %p321 = scmp.eq.s32.totalorder %s31, 1
      %p322 = por %p320, %p321
      %p323 = scmp.ne.s32.totalorder %s314, %s315
      %p324 = scmp.eq.s32.totalorder %s31, 0
      %p325 = por %p323, %p324
      %p326 = scmp.ne.s32.totalorder %s314, %s315
      %p327 = scmp.eq.s32.totalorder %s32, 1
      %p328 = por %p326, %p327
      %p330 = scmp.ne.s32.totalorder %s315, %s329
      %p331 = scmp.eq.s32.totalorder %s32, 0
      %p332 = por %p330, %p331
      %s333 = ssub.s32 %s26, %s33
      %p334 = scmp.eq.s32.totalorder %s333, 0
      %s336 = sadd.s32 %s335, 1
      %s337 = scalar_select %p334, %s335, %s336
      %p340 = pneg %p334
      %p341 = scmp.eq.s32.totalorder %s26, 1
      %p342 = por %p340, %p341
      %p343 = scmp.ne.s32.totalorder %s335, %s338
      %p344 = scmp.eq.s32.totalorder %s26, 0
      %p345 = por %p343, %p344
      %p346 = scmp.ne.s32.totalorder %s335, %s338
      %p347 = scmp.eq.s32.totalorder %s31, 1
      %p348 = por %p346, %p347
      %p349 = scmp.ne.s32.totalorder %s338, %s339
      %p350 = scmp.eq.s32.totalorder %s31, 0
      %p351 = por %p349, %p350
      %p352 = scmp.ne.s32.totalorder %s338, %s339
      %p353 = scmp.eq.s32.totalorder %s32, 1
      %p354 = por %p352, %p353
      %p356 = scmp.ne.s32.totalorder %s339, %s355
      %p357 = scmp.eq.s32.totalorder %s32, 0
      %p358 = por %p356, %p357
      %p359 = scmp.le.s32.totalorder 1, %s26
      %p360 = scmp.lt.s32.totalorder %s26, 3
      %p361 = pnand %p359, %p360
      %p362 = pneg %p361
      // Predicated region
      $region9: #{forward.1} parent=5 // pred_check
        _
      $region10: #{forward.1} parent=5 // pred_check_branch
        %364 = sbr.rel (%p361) target = $region12
      $region11: #{forward.1} parent=5 // pred_region
        %s365 = ssub.s32 %s26, 1
        // Predicated region
        $region13: #{forward.1} parent=11 // pred_check
          %p366 = pneg %p73
        $region14: #{forward.1} parent=11 // pred_check_branch
          %368 = sbr.rel (%p366) target = $region16
        $region15: #{forward.1} parent=11 // pred_region
          %370 = vsyncadd [#allocation3], 0
          %s372 = sshll.u32 %s1, 4
          %s373 = int_to_ptr.hbm [resolvable:$true] %s372
          %s374 = sshll.u32 [#allocation2], 4
          %s375 = int_to_ptr.vmem [resolvable:$true] %s374
          %377 = dma.hbm_to_vmem [thread:$0]  %s373, 64, %s375, [#allocation3]
        $region16: #{forward.1} parent=11 // pred_fallthru
          _
        // Predicated region
        $region17: #{forward.1} parent=11 // pred_check
          %p378 = pneg %p94
        $region18: #{forward.1} parent=11 // pred_check_branch
          %380 = sbr.rel (%p378) target = $region20
        $region19: #{forward.1} parent=11 // pred_region
          %382 = vsyncadd [#allocation5], 0
          %s383 = sshll.u32 %s2, 4
          %s384 = int_to_ptr.hbm [resolvable:$true] %s383
          %s385 = sshll.u32 [#allocation4], 4
          %s386 = int_to_ptr.vmem [resolvable:$true] %s385
          %391 = dma.hbm_to_vmem [thread:$0]  %s384, 3200, %s386, [#allocation5], 64, 64, 4
        $region20: #{forward.1} parent=11 // pred_fallthru
          _
        // Predicated region
        $region21: #{forward.1} parent=11 // pred_check
          %p392 = pneg %p115
        $region22: #{forward.1} parent=11 // pred_check_branch
          %394 = sbr.rel (%p392) target = $region24
        $region23: #{forward.1} parent=11 // pred_region
          %396 = vsyncadd [#allocation5], 0
          %s397 = sshll.u32 %s3, 4
          %s398 = int_to_ptr.hbm [resolvable:$true] %s397
          %s399 = sshll.u32 [#allocation6], 4
          %s400 = int_to_ptr.vmem [resolvable:$true] %s399
          %405 = dma.hbm_to_vmem [thread:$0]  %s398, 6400, %s400, [#allocation5], 128, 128, 8
        $region24: #{forward.1} parent=11 // pred_fallthru
          _
        // Predicated region
        $region25: #{forward.1} parent=11 // pred_check
          %p406 = pneg %p136
        $region26: #{forward.1} parent=11 // pred_check_branch
          %408 = sbr.rel (%p406) target = $region28
        $region27: #{forward.1} parent=11 // pred_region
          %410 = vsyncadd [#allocation8], 0
          %s411 = sshll.u32 %s4, 4
          %s412 = int_to_ptr.hbm [resolvable:$true] %s411
          %s413 = sshll.u32 [#allocation7], 4
          %s414 = int_to_ptr.vmem [resolvable:$true] %s413
          %419 = dma.hbm_to_vmem [thread:$0]  %s412, 19200, %s414, [#allocation8], 128, 128, 8
        $region28: #{forward.1} parent=11 // pred_fallthru
          _
        // Predicated region
        $region29: #{forward.1} parent=11 // pred_check
          %p420 = pneg %p157
        $region30: #{forward.1} parent=11 // pred_check_branch
          %422 = sbr.rel (%p420) target = $region32
        $region31: #{forward.1} parent=11 // pred_region
          %424 = vsyncadd [#allocation8], 0
          %s425 = sshll.u32 %s5, 4
          %s426 = int_to_ptr.hbm [resolvable:$true] %s425
          %s427 = sshll.u32 [#allocation9], 4
          %s428 = int_to_ptr.vmem [resolvable:$true] %s427
          %433 = dma.hbm_to_vmem [thread:$0]  %s426, 6400, %s428, [#allocation8], 128, 128, 8
        $region32: #{forward.1} parent=11 // pred_fallthru
          _
        // Predicated region
        $region33: #{forward.1} parent=11 // pred_check
          %p434 = pneg %p178
        $region34: #{forward.1} parent=11 // pred_check_branch
          %436 = sbr.rel (%p434) target = $region36
        $region35: #{forward.1} parent=11 // pred_region
          %438 = vsyncadd [#allocation11], 0
          %s439 = sshll.u32 %s6, 4
          %s440 = int_to_ptr.hbm [resolvable:$true] %s439
          %s441 = sshll.u32 [#allocation10], 4
          %s442 = int_to_ptr.vmem [resolvable:$true] %s441
          %447 = dma.hbm_to_vmem [thread:$0]  %s440, 1920, %s442, [#allocation11], 64, 64, 4
        $region36: #{forward.1} parent=11 // pred_fallthru
          _
        // Predicated region
        $region37: #{forward.1} parent=11 // pred_check
          %p448 = pneg %p199
        $region38: #{forward.1} parent=11 // pred_check_branch
          %450 = sbr.rel (%p448) target = $region40
        $region39: #{forward.1} parent=11 // pred_region
          %452 = vsyncadd [#allocation11], 0
          %s453 = sshll.u32 %s7, 4
          %s454 = int_to_ptr.hbm [resolvable:$true] %s453
          %s455 = sshll.u32 [#allocation12], 4
          %s456 = int_to_ptr.vmem [resolvable:$true] %s455
          %461 = dma.hbm_to_vmem [thread:$0]  %s454, 3840, %s456, [#allocation11], 128, 128, 8
        $region40: #{forward.1} parent=11 // pred_fallthru
          _
        // Predicated region
        $region41: #{forward.1} parent=11 // pred_check
          %p462 = pneg %p220
        $region42: #{forward.1} parent=11 // pred_check_branch
          %464 = sbr.rel (%p462) target = $region44
        $region43: #{forward.1} parent=11 // pred_region
          %466 = vsyncadd [#allocation14], 0
          %s467 = sshll.u32 %s8, 4
          %s468 = int_to_ptr.hbm [resolvable:$true] %s467
          %s469 = sshll.u32 [#allocation13], 4
          %s470 = int_to_ptr.vmem [resolvable:$true] %s469
          %475 = dma.hbm_to_vmem [thread:$0]  %s468, 14976, %s470, [#allocation14], 192, 192, 12
        $region44: #{forward.1} parent=11 // pred_fallthru
          _
        // Predicated region
        $region45: #{forward.1} parent=11 // pred_check
          %p476 = pneg %p241
        $region46: #{forward.1} parent=11 // pred_check_branch
          %478 = sbr.rel (%p476) target = $region48
        $region47: #{forward.1} parent=11 // pred_region
          %480 = vsyncadd [#allocation14], 0
          %s481 = sshll.u32 %s9, 4
          %s482 = int_to_ptr.hbm [resolvable:$true] %s481
          %s483 = sshll.u32 [#allocation15], 4
          %s484 = int_to_ptr.vmem [resolvable:$true] %s483
          %489 = dma.hbm_to_vmem [thread:$0]  %s482, 768, %s484, [#allocation14], 128, 128, 8
        $region48: #{forward.1} parent=11 // pred_fallthru
          _
        // Predicated region
        $region49: #{forward.1} parent=11 // pred_check
          %p490 = pneg %p262
        $region50: #{forward.1} parent=11 // pred_check_branch
          %492 = sbr.rel (%p490) target = $region52
        $region51: #{forward.1} parent=11 // pred_region
          %494 = vsyncadd [#allocation17], 0
          %s495 = sshll.u32 %s10, 4
          %s496 = int_to_ptr.hbm [resolvable:$true] %s495
          %s497 = sshll.u32 [#allocation16], 4
          %s498 = int_to_ptr.vmem [resolvable:$true] %s497
          %503 = dma.hbm_to_vmem [thread:$0]  %s496, 5760, %s498, [#allocation17], 128, 128, 8
        $region52: #{forward.1} parent=11 // pred_fallthru
          _
        // Predicated region
        $region53: #{forward.1} parent=11 // pred_check
          %p504 = pneg %p283
        $region54: #{forward.1} parent=11 // pred_check_branch
          %506 = sbr.rel (%p504) target = $region56
        $region55: #{forward.1} parent=11 // pred_region
          %508 = vsyncadd [#allocation17], 0
          %s509 = sshll.u32 %s11, 4
          %s510 = int_to_ptr.hbm [resolvable:$true] %s509
          %s511 = sshll.u32 [#allocation18], 4
          %s512 = int_to_ptr.vmem [resolvable:$true] %s511
          %517 = dma.hbm_to_vmem [thread:$0]  %s510, 1152, %s512, [#allocation17], 128, 128, 8
        $region56: #{forward.1} parent=11 // pred_fallthru
          _
        // Predicated region
        $region57: #{forward.1} parent=11 // pred_check
          %p518 = pneg %p304
        $region58: #{forward.1} parent=11 // pred_check_branch
          %520 = sbr.rel (%p518) target = $region60
        $region59: #{forward.1} parent=11 // pred_region
          _
        $region60: #{forward.1} parent=11 // pred_fallthru
          _
        // Predicated region
        $region61: #{forward.1} parent=11 // pred_check
          %p521 = pneg %p325
        $region62: #{forward.1} parent=11 // pred_check_branch
          %523 = sbr.rel (%p521) target = $region64
        $region63: #{forward.1} parent=11 // pred_region
          _
        $region64: #{forward.1} parent=11 // pred_fallthru
          _
      $region12: #{forward.1} parent=5 // pred_fallthru
        _
      %p524 = scmp.lt.s32.totalorder %s26, 2
      // Predicated region
      $region65: #{forward.1} parent=5 // pred_check
        %p525 = pneg %p524
      $region66: #{forward.1} parent=5 // pred_check_branch
        %527 = sbr.rel (%p525) target = $region68
      $region67: #{forward.1} parent=5 // pred_region
        // Predicated region
        $region69: #{forward.1} parent=67 // pred_check
          %p528 = pneg %p46
        $region70: #{forward.1} parent=67 // pred_check_branch
          %530 = sbr.rel (%p528) target = $region72
        $region71: #{forward.1} parent=67 // pred_region
          %p531 = scmp.lt.s32.totalorder %s26, 1
          %s532 = scalar_select %p531, %s26, 1
          %s533 = smul.addr %s532, 4
          %s534 = scalar_lea.vmem %s0, %s533
        $region72: #{forward.1} parent=67 // pred_fallthru
          _
      $region68: #{forward.1} parent=5 // pred_fallthru
        _
      %p535 = scmp.le.s32.totalorder 1, %s26
      %p536 = scmp.lt.s32.totalorder %s26, 3
      %p537 = pnand %p535, %p536
      %p538 = pneg %p537
      // Predicated region
      $region73: #{forward.1} parent=5 // pred_check
        _
      $region74: #{forward.1} parent=5 // pred_check_branch
        %540 = sbr.rel (%p537) target = $region76
      $region75: #{forward.1} parent=5 // pred_region
        %s541 = ssub.s32 %s26, 1
        // Predicated region
        $region77: #{forward.1} parent=75 // pred_check
          %p542 = pneg %p73
        $region78: #{forward.1} parent=75 // pred_check_branch
          %544 = sbr.rel (%p542) target = $region80
        $region79: #{forward.1} parent=75 // pred_region
          %546 = dma.done [#allocation3], 64
        $region80: #{forward.1} parent=75 // pred_fallthru
          _
        // Predicated region
        $region81: #{forward.1} parent=75 // pred_check
          %p547 = pneg %p94
        $region82: #{forward.1} parent=75 // pred_check_branch
          %549 = sbr.rel (%p547) target = $region84
        $region83: #{forward.1} parent=75 // pred_region
          %551 = dma.done [#allocation5], 3200
        $region84: #{forward.1} parent=75 // pred_fallthru
          _
        // Predicated region
        $region85: #{forward.1} parent=75 // pred_check
          %p552 = pneg %p115
        $region86: #{forward.1} parent=75 // pred_check_branch
          %554 = sbr.rel (%p552) target = $region88
        $region87: #{forward.1} parent=75 // pred_region
          %556 = dma.done [#allocation5], 6400
        $region88: #{forward.1} parent=75 // pred_fallthru
          _
        // Predicated region
        $region89: #{forward.1} parent=75 // pred_check
          %p557 = pneg %p136
        $region90: #{forward.1} parent=75 // pred_check_branch
          %559 = sbr.rel (%p557) target = $region92
        $region91: #{forward.1} parent=75 // pred_region
          %561 = dma.done [#allocation8], 19200
        $region92: #{forward.1} parent=75 // pred_fallthru
          _
        // Predicated region
        $region93: #{forward.1} parent=75 // pred_check
          %p562 = pneg %p157
        $region94: #{forward.1} parent=75 // pred_check_branch
          %564 = sbr.rel (%p562) target = $region96
        $region95: #{forward.1} parent=75 // pred_region
          %566 = dma.done [#allocation8], 6400
        $region96: #{forward.1} parent=75 // pred_fallthru
          _
        // Predicated region
        $region97: #{forward.1} parent=75 // pred_check
          %p567 = pneg %p178
        $region98: #{forward.1} parent=75 // pred_check_branch
          %569 = sbr.rel (%p567) target = $region100
        $region99: #{forward.1} parent=75 // pred_region
          %571 = dma.done [#allocation11], 1920
        $region100: #{forward.1} parent=75 // pred_fallthru
          _
        // Predicated region
        $region101: #{forward.1} parent=75 // pred_check
          %p572 = pneg %p199
        $region102: #{forward.1} parent=75 // pred_check_branch
          %574 = sbr.rel (%p572) target = $region104
        $region103: #{forward.1} parent=75 // pred_region
          %576 = dma.done [#allocation11], 3840
        $region104: #{forward.1} parent=75 // pred_fallthru
          _
        // Predicated region
        $region105: #{forward.1} parent=75 // pred_check
          %p577 = pneg %p220
        $region106: #{forward.1} parent=75 // pred_check_branch
          %579 = sbr.rel (%p577) target = $region108
        $region107: #{forward.1} parent=75 // pred_region
          %581 = dma.done [#allocation14], 14976
        $region108: #{forward.1} parent=75 // pred_fallthru
          _
        // Predicated region
        $region109: #{forward.1} parent=75 // pred_check
          %p582 = pneg %p241
        $region110: #{forward.1} parent=75 // pred_check_branch
          %584 = sbr.rel (%p582) target = $region112
        $region111: #{forward.1} parent=75 // pred_region
          %586 = dma.done [#allocation14], 768
        $region112: #{forward.1} parent=75 // pred_fallthru
          _
        // Predicated region
        $region113: #{forward.1} parent=75 // pred_check
          %p587 = pneg %p262
        $region114: #{forward.1} parent=75 // pred_check_branch
          %589 = sbr.rel (%p587) target = $region116
        $region115: #{forward.1} parent=75 // pred_region
          %591 = dma.done [#allocation17], 5760
        $region116: #{forward.1} parent=75 // pred_fallthru
          _
        // Predicated region
        $region117: #{forward.1} parent=75 // pred_check
          %p592 = pneg %p283
        $region118: #{forward.1} parent=75 // pred_check_branch
          %594 = sbr.rel (%p592) target = $region120
        $region119: #{forward.1} parent=75 // pred_region
          %596 = dma.done [#allocation17], 1152
        $region120: #{forward.1} parent=75 // pred_fallthru
          _
        %p597 = scmp.lt.s32.totalorder %s31, 1
        %s598 = scalar_select %p597, %s31, 1
        %s599 = smul.addr %s598, 4
        %s600 = scalar_lea.vmem %s0, %s599
        %p601 = pneg %p52
        %p602 = pneg %p49
        %p603 = pneg %p73
        %p604 = pneg %p70
        %p605 = pneg %p94
        %p606 = pneg %p91
        %p607 = pneg %p115
        %p608 = pneg %p112
        %p609 = pneg %p136
        %p610 = pneg %p133
        %p611 = pneg %p157
        %p612 = pneg %p154
        %p613 = pneg %p178
        %p614 = pneg %p175
        %p615 = pneg %p199
        %p616 = pneg %p196
        %p617 = pneg %p220
        %p618 = pneg %p217
        %p619 = pneg %p241
        %p620 = pneg %p238
        %p621 = pneg %p262
        %p622 = pneg %p259
        %p623 = pneg %p283
        %p624 = pneg %p280
        %p625 = pneg %p304
        %p626 = pneg %p301
        %p627 = pneg %p325
        %p628 = pneg %p322
        %p629 = pneg %p351
        %p630 = pneg %p348
        %p631 = scmp.lt.s32.totalorder %s31, 1
        %s632 = scalar_select %p631, %s31, 1
        %s633 = smul.addr %s632, 4
        %s634 = scalar_lea.vmem %s14, %s633
        %p635 = scmp.lt.s32.totalorder %s31, 1
        %s636 = scalar_select %p635, %s31, 1
        %s637 = smul.addr %s636, 4
        %s638 = scalar_lea.vmem %s0, %s637
        %p639 = scmp.lt.s32.totalorder %s31, 1
        %s640 = scalar_select %p639, %s31, 1
        %s641 = smul.addr %s640, 4
        %s642 = scalar_lea.vmem %s14, %s641
        %v644 = vld [vmem:[%s638] sm:$0x7]
        %v645 = vld [vmem:[#allocation2] sm:$0x7]
        %v646 = vadd.f32 %v644, %v645
        %v647 = vld [vmem:[#allocation4] sm:$0x7]
        %v648 = vpack.c.bf16 %v646, %v646
        %v649 = vld [vmem:[#allocation6] sm:$0x3f]
        %651 = vset.pattern.permute.xlu0 0
        %652 = vperm.xlu0 %651, %v649
        %v653 = vpop.permute.xlu0 %652
        %vm655 = vcmask 23552
        %v657 = vsel %vm655, %v647, 0
        %vm659 = vcmask 1040384
        %vm660 = vcmask 1041408
        %v661 = vsel %vm659, 4294967295, 65535
        %v662 = vsel %vm660, %v661, 0
        %v664 = vand.u32 %v648, %v662
        %666 = vmatpush.bf16.msra.mxu0 0
        %667 = vmatpush.bf16.msra.mxu0 0
        %668 = vmatpush.bf16.msra.mxu0 0
        %669 = vmatpush.bf16.msra.mxu0 0
        %670 = vmatpush.bf16.msra.mxu0 0
        %671 = vmatpush.bf16.msra.mxu0 0
        %672 = vmatpush.bf16.msra.mxu0 0
        %673 = vmatpush.bf16.msra.mxu0 %v664
        %674 = vmatmul.bf16.gmra.mxu0 %v657
        %v675 = vpop.f32.mrf.mxu0
        %v676 = vadd.f32 %v653, %v675
        %v677 = vpop.f32.mrf.mxu0
        %678 = vdwg.mxu0
        %v679 = vmax.f32 %v676, 0.0
        %v680 = vld [vmem:[#allocation13] sm:$0xff]
        %v681 = vld [vmem:[#allocation13 + $0x8] sm:$0xf]
        %v682 = vld [vmem:[#allocation13 + $0xc] sm:$0xff]
        %v683 = vld [vmem:[#allocation13 + $0x14] sm:$0xf]
        %v684 = vld [vmem:[#allocation13 + $0x18] sm:$0xff]
        %v685 = vld [vmem:[#allocation13 + $0x20] sm:$0xf]
        %v686 = vld [vmem:[#allocation13 + $0x24] sm:$0xff]
        %v687 = vld [vmem:[#allocation13 + $0x2c] sm:$0xf]
        %v688 = vld [vmem:[#allocation13 + $0x30] sm:$0xff]
        %v689 = vld [vmem:[#allocation13 + $0x38] sm:$0xf]
        %v690 = vld [vmem:[#allocation13 + $0x3c] sm:$0xff]
        %v691 = vld [vmem:[#allocation13 + $0x44] sm:$0xf]
        %v692 = vld [vmem:[#allocation13 + $0x48] sm:$0xff]
        %v693 = vld [vmem:[#allocation13 + $0x50] sm:$0xf]
        %v694 = vld [vmem:[#allocation13 + $0x54] sm:$0xff]
        %v695 = vld [vmem:[#allocation13 + $0x5c] sm:$0xf]
        %v696 = vld [vmem:[#allocation13 + $0x60] sm:$0xff]
        %v697 = vld [vmem:[#allocation13 + $0x68] sm:$0xf]
        %v698 = vld [vmem:[#allocation13 + $0x6c] sm:$0xff]
        %v699 = vld [vmem:[#allocation13 + $0x74] sm:$0xf]
        %v700 = vld [vmem:[#allocation13 + $0x78] sm:$0xff]
        %v701 = vld [vmem:[#allocation13 + $0x80] sm:$0xf]
        %v702 = vld [vmem:[#allocation13 + $0x84] sm:$0xff]
        %v703 = vld [vmem:[#allocation13 + $0x8c] sm:$0xf]
        %v704 = vld [vmem:[#allocation13 + $0x90] sm:$0xff]
        %v705 = vld [vmem:[#allocation13 + $0x98] sm:$0xf]
        %v706 = vld [vmem:[#allocation13 + $0x9c] sm:$0xff]
        %v707 = vld [vmem:[#allocation13 + $0xa4] sm:$0xf]
        %v708 = vld [vmem:[#allocation13 + $0xa8] sm:$0xff]
        %v709 = vld [vmem:[#allocation13 + $0xb0] sm:$0xf]
        %v710 = vld [vmem:[#allocation13 + $0xb4] sm:$0xff]
        %v711 = vld [vmem:[#allocation13 + $0xbc] sm:$0xf]
        %v712 = vpack.c.bf16 %v679, %v679
        %v745 = vunpack.c.l.b16 %v680
        %v746 = vunpack.c.h.b16 %v680
        %v747 = vunpack.c.l.b16 %v681
        %v748 = vunpack.c.l.b16 %v682
        %v749 = vunpack.c.h.b16 %v682
        %v750 = vunpack.c.l.b16 %v683
        %v751 = vunpack.c.l.b16 %v684
        %v752 = vunpack.c.h.b16 %v684
        %v753 = vunpack.c.l.b16 %v685
        %v754 = vunpack.c.l.b16 %v686
        %v755 = vunpack.c.h.b16 %v686
        %v756 = vunpack.c.l.b16 %v687
        %v757 = vunpack.c.l.b16 %v688
        %v758 = vunpack.c.h.b16 %v688
        %v759 = vunpack.c.l.b16 %v689
        %v760 = vunpack.c.l.b16 %v690
        %v761 = vunpack.c.h.b16 %v690
        %v762 = vunpack.c.l.b16 %v691
        %v763 = vunpack.c.l.b16 %v692
        %v764 = vunpack.c.h.b16 %v692
        %v765 = vunpack.c.l.b16 %v693
        %v766 = vunpack.c.l.b16 %v694
        %v767 = vunpack.c.h.b16 %v694
        %v768 = vunpack.c.l.b16 %v695
        %v769 = vunpack.c.l.b16 %v696
        %v770 = vunpack.c.h.b16 %v696
        %v771 = vunpack.c.l.b16 %v697
        %v772 = vunpack.c.l.b16 %v698
        %v773 = vunpack.c.h.b16 %v698
        %v774 = vunpack.c.l.b16 %v699
        %v775 = vunpack.c.l.b16 %v700
        %v776 = vunpack.c.h.b16 %v700
        %v777 = vunpack.c.l.b16 %v701
        %v778 = vunpack.c.l.b16 %v702
        %v779 = vunpack.c.h.b16 %v702
        %v780 = vunpack.c.l.b16 %v703
        %v781 = vunpack.c.l.b16 %v704
        %v782 = vunpack.c.h.b16 %v704
        %v783 = vunpack.c.l.b16 %v705
        %v784 = vunpack.c.l.b16 %v706
        %v785 = vunpack.c.h.b16 %v706
        %v786 = vunpack.c.l.b16 %v707
        %v787 = vunpack.c.l.b16 %v708
        %v788 = vunpack.c.h.b16 %v708
        %v789 = vunpack.c.l.b16 %v709
        %v790 = vunpack.c.l.b16 %v710
        %v791 = vunpack.c.h.b16 %v710
        %v792 = vunpack.c.l.b16 %v711
        %v793 = vpack.c.b16 %v748, %v745
        %v794 = vpack.c.b16 %v749, %v746
        %v795 = vpack.c.b16 %v750, %v747
        %v796 = vpack.c.b16 %v754, %v751
        %v797 = vpack.c.b16 %v755, %v752
        %v798 = vpack.c.b16 %v756, %v753
        %v799 = vpack.c.b16 %v760, %v757
        %v800 = vpack.c.b16 %v761, %v758
        %v801 = vpack.c.b16 %v762, %v759
        %v802 = vpack.c.b16 %v766, %v763
        %v803 = vpack.c.b16 %v767, %v764
        %v804 = vpack.c.b16 %v768, %v765
        %v805 = vpack.c.b16 %v772, %v769
        %v806 = vpack.c.b16 %v773, %v770
        %v807 = vpack.c.b16 %v774, %v771
        %v808 = vpack.c.b16 %v778, %v775
        %v809 = vpack.c.b16 %v779, %v776
        %v810 = vpack.c.b16 %v780, %v777
        %v811 = vpack.c.b16 %v784, %v781
        %v812 = vpack.c.b16 %v785, %v782
        %v813 = vpack.c.b16 %v786, %v783
        %v814 = vpack.c.b16 %v790, %v787
        %v815 = vpack.c.b16 %v791, %v788
        %v816 = vpack.c.b16 %v792, %v789
        %841 = vmatpush.bf16.msra.mxu0 %v814
        %842 = vmatpush.bf16.msra.mxu0 %v811
        %843 = vmatpush.bf16.msra.mxu0 %v808
        %844 = vmatpush.bf16.msra.mxu0 %v805
        %845 = vmatpush.bf16.msra.mxu0 %v802
        %846 = vmatpush.bf16.msra.mxu0 %v799
        %847 = vmatpush.bf16.msra.mxu0 %v796
        %848 = vmatpush.bf16.msra.mxu0 %v793
        %849 = vmatmul.bf16.gmra.mxu0 %v712
        %v850 = vpop.f32.mrf.mxu0
        %v851 = vadd.f32 0.0, %v850
        %v852 = vpop.f32.mrf.mxu0
        %853 = vdwg.mxu0
        %854 = vmatpush.bf16.msra.mxu0 %v815
        %855 = vmatpush.bf16.msra.mxu0 %v812
        %856 = vmatpush.bf16.msra.mxu0 %v809
        %857 = vmatpush.bf16.msra.mxu0 %v806
        %858 = vmatpush.bf16.msra.mxu0 %v803
        %859 = vmatpush.bf16.msra.mxu0 %v800
        %860 = vmatpush.bf16.msra.mxu0 %v797
        %861 = vmatpush.bf16.msra.mxu0 %v794
        %862 = vmatmul.bf16.gmra.mxu0 %v712
        %v863 = vpop.f32.mrf.mxu0
        %v864 = vadd.f32 0.0, %v863
        %v865 = vpop.f32.mrf.mxu0
        %866 = vdwg.mxu0
        %867 = vmatpush.bf16.msra.mxu0 %v816
        %868 = vmatpush.bf16.msra.mxu0 %v813
        %869 = vmatpush.bf16.msra.mxu0 %v810
        %870 = vmatpush.bf16.msra.mxu0 %v807
        %871 = vmatpush.bf16.msra.mxu0 %v804
        %872 = vmatpush.bf16.msra.mxu0 %v801
        %873 = vmatpush.bf16.msra.mxu0 %v798
        %874 = vmatpush.bf16.msra.mxu0 %v795
        %875 = vmatmul.bf16.gmra.mxu0 %v712
        %v876 = vpop.f32.mrf.mxu0
        %v877 = vadd.f32 0.0, %v876
        %v878 = vpop.f32.mrf.mxu0
        %879 = vdwg.mxu0
        %v880 = vld [vmem:[#allocation9] sm:$0x3f]
        %v881 = vld [vmem:[#allocation7] sm:$0x3f]
        %883 = vset.pattern.permute.xlu0 0
        %884 = vperm.xlu0 %883, %v881
        %v885 = vpop.permute.xlu0 %884
        %v887 = vmul.f32 %v885, %v851
        %889 = vset.pattern.permute.xlu0 0
        %890 = vperm.xlu0 %889, %v880
        %v891 = vpop.permute.xlu0 %890
        %v893 = vadd.f32 %v891, %v887
        %s894 = scalar_lea.vmem [#allocation7], 40
        %v895 = vld [vmem:[%s894] sm:$0x3f]
        %897 = vset.pattern.permute.xlu0 0
        %898 = vperm.xlu0 %897, %v895
        %v899 = vpop.permute.xlu0 %898
        %v901 = vmul.f32 %v899, %v864
        %v902 = vadd.f32 %v893, %v901
        %s903 = scalar_lea.vmem [#allocation7], 80
        %v904 = vld [vmem:[%s903] sm:$0x3f]
        %906 = vset.pattern.permute.xlu0 0
        %907 = vperm.xlu0 %906, %v904
        %v908 = vpop.permute.xlu0 %907
        %v910 = vmul.f32 %v908, %v877
        %v911 = vadd.f32 %v902, %v910
        %v912 = vmax.f32 %v911, 0.0
        %v913 = vld [vmem:[#allocation10] sm:$0x3]
        %v914 = vpack.c.bf16 %v912, %v912
        %v915 = vld [vmem:[#allocation12] sm:$0xf]
        %917 = vset.pattern.permute.xlu0 0
        %918 = vperm.xlu0 %917, %v915
        %v919 = vpop.permute.xlu0 %918
        %vm921 = vcmask 48128
        %v923 = vsel %vm921, %v913, 0
        %vm925 = vcmask 1042432
        %v927 = vsel %vm925, %v914, 0
        %929 = vmatpush.bf16.msra.mxu0 0
        %930 = vmatpush.bf16.msra.mxu0 0
        %931 = vmatpush.bf16.msra.mxu0 0
        %932 = vmatpush.bf16.msra.mxu0 0
        %933 = vmatpush.bf16.msra.mxu0 0
        %934 = vmatpush.bf16.msra.mxu0 0
        %935 = vmatpush.bf16.msra.mxu0 0
        %936 = vmatpush.bf16.msra.mxu0 %v927
        %937 = vmatmul.bf16.gmra.mxu0 %v923
        %v938 = vpop.f32.mrf.mxu0
        %v939 = vadd.f32 %v919, %v938
        %v940 = vpop.f32.mrf.mxu0
        %941 = vdwg.mxu0
        %s942 = scalar_lea.vmem [#allocation4], 20
        %v943 = vld [vmem:[%s942] sm:$0xf]
        %v944 = vpack.c.bf16 %v939, %v939
        %s945 = scalar_lea.vmem [#allocation6], 40
        %v946 = vld [vmem:[%s945] sm:$0xff]
        %948 = vset.pattern.permute.xlu0 0
        %949 = vperm.xlu0 %948, %v946
        %v950 = vpop.permute.xlu0 %949
        %vm952 = vcmask 31744
        %v954 = vsel %vm952, %v943, 0
        %v957 = vsel %vm660, %v944, 0
        %959 = vmatpush.bf16.msra.mxu0 0
        %960 = vmatpush.bf16.msra.mxu0 0
        %961 = vmatpush.bf16.msra.mxu0 0
        %962 = vmatpush.bf16.msra.mxu0 0
        %963 = vmatpush.bf16.msra.mxu0 0
        %964 = vmatpush.bf16.msra.mxu0 0
        %965 = vmatpush.bf16.msra.mxu0 0
        %966 = vmatpush.bf16.msra.mxu0 %v957
        %967 = vmatmul.bf16.gmra.mxu0 %v954
        %v968 = vpop.f32.mrf.mxu0
        %v969 = vadd.f32 %v950, %v968
        %v970 = vpop.f32.mrf.mxu0
        %971 = vdwg.mxu0
        %v972 = vmax.f32 %v969, 0.0
        %v973 = vld [vmem:[#allocation13 + $0xc0] sm:$0xff]
        %v974 = vld [vmem:[#allocation13 + $0xc8] sm:$0xf]
        %v975 = vld [vmem:[#allocation13 + $0xcc] sm:$0xff]
        %v976 = vld [vmem:[#allocation13 + $0xd4] sm:$0xf]
        %v977 = vld [vmem:[#allocation13 + $0xd8] sm:$0xff]
        %v978 = vld [vmem:[#allocation13 + $0xe0] sm:$0xf]
        %v979 = vld [vmem:[#allocation13 + $0xe4] sm:$0xff]
        %v980 = vld [vmem:[#allocation13 + $0xec] sm:$0xf]
        %v981 = vld [vmem:[#allocation13 + $0xf0] sm:$0xff]
        %v982 = vld [vmem:[#allocation13 + $0xf8] sm:$0xf]
        %v983 = vld [vmem:[#allocation13 + $0xfc] sm:$0xff]
        %v984 = vld [vmem:[#allocation13 + $0x104] sm:$0xf]
        %v985 = vld [vmem:[#allocation13 + $0x108] sm:$0xff]
        %v986 = vld [vmem:[#allocation13 + $0x110] sm:$0xf]
        %v987 = vld [vmem:[#allocation13 + $0x114] sm:$0xff]
        %v988 = vld [vmem:[#allocation13 + $0x11c] sm:$0xf]
        %v989 = vld [vmem:[#allocation13 + $0x120] sm:$0xff]
        %v990 = vld [vmem:[#allocation13 + $0x128] sm:$0xf]
        %v991 = vld [vmem:[#allocation13 + $0x12c] sm:$0xff]
        %v992 = vld [vmem:[#allocation13 + $0x134] sm:$0xf]
        %v993 = vld [vmem:[#allocation13 + $0x138] sm:$0xff]
        %v994 = vld [vmem:[#allocation13 + $0x140] sm:$0xf]
        %v995 = vld [vmem:[#allocation13 + $0x144] sm:$0xff]
        %v996 = vld [vmem:[#allocation13 + $0x14c] sm:$0xf]
        %v997 = vld [vmem:[#allocation13 + $0x150] sm:$0xff]
        %v998 = vld [vmem:[#allocation13 + $0x158] sm:$0xf]
        %v999 = vld [vmem:[#allocation13 + $0x15c] sm:$0xff]
        %v1000 = vld [vmem:[#allocation13 + $0x164] sm:$0xf]
        %v1001 = vld [vmem:[#allocation13 + $0x168] sm:$0xff]
        %v1002 = vld [vmem:[#allocation13 + $0x170] sm:$0xf]
        %v1003 = vld [vmem:[#allocation13 + $0x174] sm:$0xff]
        %v1004 = vld [vmem:[#allocation13 + $0x17c] sm:$0xf]
        %v1005 = vpack.c.bf16 %v972, %v972
        %v1038 = vunpack.c.l.b16 %v973
        %v1039 = vunpack.c.h.b16 %v973
        %v1040 = vunpack.c.l.b16 %v974
        %v1041 = vunpack.c.l.b16 %v975
        %v1042 = vunpack.c.h.b16 %v975
        %v1043 = vunpack.c.l.b16 %v976
        %v1044 = vunpack.c.l.b16 %v977
        %v1045 = vunpack.c.h.b16 %v977
        %v1046 = vunpack.c.l.b16 %v978
        %v1047 = vunpack.c.l.b16 %v979
        %v1048 = vunpack.c.h.b16 %v979
        %v1049 = vunpack.c.l.b16 %v980
        %v1050 = vunpack.c.l.b16 %v981
        %v1051 = vunpack.c.h.b16 %v981
        %v1052 = vunpack.c.l.b16 %v982
        %v1053 = vunpack.c.l.b16 %v983
        %v1054 = vunpack.c.h.b16 %v983
        %v1055 = vunpack.c.l.b16 %v984
        %v1056 = vunpack.c.l.b16 %v985
        %v1057 = vunpack.c.h.b16 %v985
        %v1058 = vunpack.c.l.b16 %v986
        %v1059 = vunpack.c.l.b16 %v987
        %v1060 = vunpack.c.h.b16 %v987
        %v1061 = vunpack.c.l.b16 %v988
        %v1062 = vunpack.c.l.b16 %v989
        %v1063 = vunpack.c.h.b16 %v989
        %v1064 = vunpack.c.l.b16 %v990
        %v1065 = vunpack.c.l.b16 %v991
        %v1066 = vunpack.c.h.b16 %v991
        %v1067 = vunpack.c.l.b16 %v992
        %v1068 = vunpack.c.l.b16 %v993
        %v1069 = vunpack.c.h.b16 %v993
        %v1070 = vunpack.c.l.b16 %v994
        %v1071 = vunpack.c.l.b16 %v995
        %v1072 = vunpack.c.h.b16 %v995
        %v1073 = vunpack.c.l.b16 %v996
        %v1074 = vunpack.c.l.b16 %v997
        %v1075 = vunpack.c.h.b16 %v997
        %v1076 = vunpack.c.l.b16 %v998
        %v1077 = vunpack.c.l.b16 %v999
        %v1078 = vunpack.c.h.b16 %v999
        %v1079 = vunpack.c.l.b16 %v1000
        %v1080 = vunpack.c.l.b16 %v1001
        %v1081 = vunpack.c.h.b16 %v1001
        %v1082 = vunpack.c.l.b16 %v1002
        %v1083 = vunpack.c.l.b16 %v1003
        %v1084 = vunpack.c.h.b16 %v1003
        %v1085 = vunpack.c.l.b16 %v1004
        %v1086 = vpack.c.b16 %v1041, %v1038
        %v1087 = vpack.c.b16 %v1042, %v1039
        %v1088 = vpack.c.b16 %v1043, %v1040
        %v1089 = vpack.c.b16 %v1047, %v1044
        %v1090 = vpack.c.b16 %v1048, %v1045
        %v1091 = vpack.c.b16 %v1049, %v1046
        %v1092 = vpack.c.b16 %v1053, %v1050
        %v1093 = vpack.c.b16 %v1054, %v1051
        %v1094 = vpack.c.b16 %v1055, %v1052
        %v1095 = vpack.c.b16 %v1059, %v1056
        %v1096 = vpack.c.b16 %v1060, %v1057
        %v1097 = vpack.c.b16 %v1061, %v1058
        %v1098 = vpack.c.b16 %v1065, %v1062
        %v1099 = vpack.c.b16 %v1066, %v1063
        %v1100 = vpack.c.b16 %v1067, %v1064
        %v1101 = vpack.c.b16 %v1071, %v1068
        %v1102 = vpack.c.b16 %v1072, %v1069
        %v1103 = vpack.c.b16 %v1073, %v1070
        %v1104 = vpack.c.b16 %v1077, %v1074
        %v1105 = vpack.c.b16 %v1078, %v1075
        %v1106 = vpack.c.b16 %v1079, %v1076
        %v1107 = vpack.c.b16 %v1083, %v1080
        %v1108 = vpack.c.b16 %v1084, %v1081
        %v1109 = vpack.c.b16 %v1085, %v1082
        %1134 = vmatpush.bf16.msra.mxu0 %v1107
        %1135 = vmatpush.bf16.msra.mxu0 %v1104
        %1136 = vmatpush.bf16.msra.mxu0 %v1101
        %1137 = vmatpush.bf16.msra.mxu0 %v1098
        %1138 = vmatpush.bf16.msra.mxu0 %v1095
        %1139 = vmatpush.bf16.msra.mxu0 %v1092
        %1140 = vmatpush.bf16.msra.mxu0 %v1089
        %1141 = vmatpush.bf16.msra.mxu0 %v1086
        %1142 = vmatmul.bf16.gmra.mxu0 %v1005
        %v1143 = vpop.f32.mrf.mxu0
        %v1144 = vadd.f32 0.0, %v1143
        %v1145 = vpop.f32.mrf.mxu0
        %1146 = vdwg.mxu0
        %1147 = vmatpush.bf16.msra.mxu0 %v1108
        %1148 = vmatpush.bf16.msra.mxu0 %v1105
        %1149 = vmatpush.bf16.msra.mxu0 %v1102
        %1150 = vmatpush.bf16.msra.mxu0 %v1099
        %1151 = vmatpush.bf16.msra.mxu0 %v1096
        %1152 = vmatpush.bf16.msra.mxu0 %v1093
        %1153 = vmatpush.bf16.msra.mxu0 %v1090
        %1154 = vmatpush.bf16.msra.mxu0 %v1087
        %1155 = vmatmul.bf16.gmra.mxu0 %v1005
        %v1156 = vpop.f32.mrf.mxu0
        %v1157 = vadd.f32 0.0, %v1156
        %v1158 = vpop.f32.mrf.mxu0
        %1159 = vdwg.mxu0
        %1160 = vmatpush.bf16.msra.mxu0 %v1109
        %1161 = vmatpush.bf16.msra.mxu0 %v1106
        %1162 = vmatpush.bf16.msra.mxu0 %v1103
        %1163 = vmatpush.bf16.msra.mxu0 %v1100
        %1164 = vmatpush.bf16.msra.mxu0 %v1097
        %1165 = vmatpush.bf16.msra.mxu0 %v1094
        %1166 = vmatpush.bf16.msra.mxu0 %v1091
        %1167 = vmatpush.bf16.msra.mxu0 %v1088
        %1168 = vmatmul.bf16.gmra.mxu0 %v1005
        %v1169 = vpop.f32.mrf.mxu0
        %v1170 = vadd.f32 0.0, %v1169
        %v1171 = vpop.f32.mrf.mxu0
        %1172 = vdwg.mxu0
        %s1173 = scalar_lea.vmem [#allocation9], 40
        %v1174 = vld [vmem:[%s1173] sm:$0xff]
        %s1175 = scalar_lea.vmem [#allocation7], 120
        %v1176 = vld [vmem:[%s1175] sm:$0xff]
        %1178 = vset.pattern.permute.xlu0 0
        %1179 = vperm.xlu0 %1178, %v1176
        %v1180 = vpop.permute.xlu0 %1179
        %v1182 = vmul.f32 %v1180, %v1144
        %1184 = vset.pattern.permute.xlu0 0
        %1185 = vperm.xlu0 %1184, %v1174
        %v1186 = vpop.permute.xlu0 %1185
        %v1188 = vadd.f32 %v1186, %v1182
        %s1189 = scalar_lea.vmem [#allocation7], 160
        %v1190 = vld [vmem:[%s1189] sm:$0xff]
        %1192 = vset.pattern.permute.xlu0 0
        %1193 = vperm.xlu0 %1192, %v1190
        %v1194 = vpop.permute.xlu0 %1193
        %v1196 = vmul.f32 %v1194, %v1157
        %v1197 = vadd.f32 %v1188, %v1196
        %s1198 = scalar_lea.vmem [#allocation7], 200
        %v1199 = vld [vmem:[%s1198] sm:$0xff]
        %1201 = vset.pattern.permute.xlu0 0
        %1202 = vperm.xlu0 %1201, %v1199
        %v1203 = vpop.permute.xlu0 %1202
        %v1205 = vmul.f32 %v1203, %v1170
        %v1206 = vadd.f32 %v1197, %v1205
        %v1207 = vmax.f32 %v1206, 0.0
        %s1208 = scalar_lea.vmem [#allocation10], 12
        %v1209 = vld [vmem:[%s1208] sm:$0xf]
        %v1210 = vpack.c.bf16 %v1207, %v1207
        %s1211 = scalar_lea.vmem [#allocation12], 24
        %v1212 = vld [vmem:[%s1211] sm:$0xff]
        %1214 = vset.pattern.permute.xlu0 0
        %1215 = vperm.xlu0 %1214, %v1212
        %v1216 = vpop.permute.xlu0 %1215
        %vm1218 = vcmask 64512
        %v1220 = vsel %vm1218, %v1209, 0
        %vm1222 = vcmask 1043456
        %v1224 = vsel %vm1222, %v1210, 0
        %1226 = vmatpush.bf16.msra.mxu0 0
        %1227 = vmatpush.bf16.msra.mxu0 0
        %1228 = vmatpush.bf16.msra.mxu0 0
        %1229 = vmatpush.bf16.msra.mxu0 0
        %1230 = vmatpush.bf16.msra.mxu0 0
        %1231 = vmatpush.bf16.msra.mxu0 0
        %1232 = vmatpush.bf16.msra.mxu0 0
        %1233 = vmatpush.bf16.msra.mxu0 %v1224
        %1234 = vmatmul.bf16.gmra.mxu0 %v1220
        %v1235 = vpop.f32.mrf.mxu0
        %v1236 = vadd.f32 %v1216, %v1235
        %v1237 = vpop.f32.mrf.mxu0
        %1238 = vdwg.mxu0
        %s1239 = scalar_lea.vmem [#allocation4], 40
        %v1240 = vld [vmem:[%s1239] sm:$0xf]
        %v1241 = vld [vmem:[%s1239 + $0x4] sm:$0xf]
        %v1242 = vpack.c.bf16 %v1236, %v1236
        %s1243 = scalar_lea.vmem [#allocation6], 80
        %v1244 = vld [vmem:[%s1243] sm:$0xff]
        %v1245 = vld [vmem:[%s1243 + $0x8] sm:$0xff]
        %1247 = vset.pattern.permute.xlu0 0
        %1248 = vperm.xlu0 %1247, %v1244
        %v1249 = vpop.permute.xlu0 %1248
        %1252 = vset.pattern.permute.xlu0 0
        %1253 = vperm.xlu0 %1252, %v1245
        %v1254 = vpop.permute.xlu0 %1253
        %v1258 = vunpack.c.l.b16 %v1240
        %v1259 = vunpack.c.l.b16 %v1241
        %v1260 = vpack.c.b16 %v1259, %v1258
        %v1262 = vsel %vm1218, %v1260, 0
        %v1265 = vsel %vm1222, %v1242, 0
        %1267 = vmatpush.bf16.msra.mxu0 0
        %1268 = vmatpush.bf16.msra.mxu0 0
        %1269 = vmatpush.bf16.msra.mxu0 0
        %1270 = vmatpush.bf16.msra.mxu0 0
        %1271 = vmatpush.bf16.msra.mxu0 0
        %1272 = vmatpush.bf16.msra.mxu0 0
        %1273 = vmatpush.bf16.msra.mxu0 0
        %1274 = vmatpush.bf16.msra.mxu0 %v1265
        %1275 = vmatmul.bf16.gmra.mxu0 %v1262
        %v1276 = vpop.f32.mrf.mxu0
        %v1277 = vadd.f32 %v1249, %v1276
        %v1278 = vpop.f32.mrf.mxu0
        %v1279 = vadd.f32 %v1254, %v1278
        %1280 = vdwg.mxu0
        %v1281 = vmax.f32 %v1277, 0.0
        %v1282 = vmax.f32 %v1279, 0.0
        %v1283 = vld [vmem:[#allocation13 + $0x180] sm:$0xff]
        %v1284 = vld [vmem:[#allocation13 + $0x18c] sm:$0xff]
        %v1285 = vld [vmem:[#allocation13 + $0x198] sm:$0xff]
        %v1286 = vld [vmem:[#allocation13 + $0x1a4] sm:$0xff]
        %v1287 = vld [vmem:[#allocation13 + $0x1b0] sm:$0xff]
        %v1288 = vld [vmem:[#allocation13 + $0x1bc] sm:$0xff]
        %v1289 = vld [vmem:[#allocation13 + $0x1c8] sm:$0xff]
        %v1290 = vld [vmem:[#allocation13 + $0x1d4] sm:$0xff]
        %v1291 = vld [vmem:[#allocation13 + $0x1e0] sm:$0xff]
        %v1292 = vld [vmem:[#allocation13 + $0x1ec] sm:$0xff]
        %v1293 = vld [vmem:[#allocation13 + $0x1f8] sm:$0xff]
        %v1294 = vld [vmem:[#allocation13 + $0x204] sm:$0xff]
        %v1295 = vld [vmem:[#allocation13 + $0x210] sm:$0xff]
        %v1296 = vld [vmem:[#allocation13 + $0x21c] sm:$0xff]
        %v1297 = vld [vmem:[#allocation13 + $0x228] sm:$0xff]
        %v1298 = vld [vmem:[#allocation13 + $0x234] sm:$0xff]
        %v1299 = vpack.c.bf16 %v1282, %v1281
        %v1316 = vunpack.c.l.b16 %v1283
        %v1317 = vunpack.c.h.b16 %v1283
        %v1318 = vunpack.c.l.b16 %v1284
        %v1319 = vunpack.c.h.b16 %v1284
        %v1320 = vunpack.c.l.b16 %v1285
        %v1321 = vunpack.c.h.b16 %v1285
        %v1322 = vunpack.c.l.b16 %v1286
        %v1323 = vunpack.c.h.b16 %v1286
        %v1324 = vunpack.c.l.b16 %v1287
        %v1325 = vunpack.c.h.b16 %v1287
        %v1326 = vunpack.c.l.b16 %v1288
        %v1327 = vunpack.c.h.b16 %v1288
        %v1328 = vunpack.c.l.b16 %v1289
        %v1329 = vunpack.c.h.b16 %v1289
        %v1330 = vunpack.c.l.b16 %v1290
        %v1331 = vunpack.c.h.b16 %v1290
        %v1332 = vunpack.c.l.b16 %v1291
        %v1333 = vunpack.c.h.b16 %v1291
        %v1334 = vunpack.c.l.b16 %v1292
        %v1335 = vunpack.c.h.b16 %v1292
        %v1336 = vunpack.c.l.b16 %v1293
        %v1337 = vunpack.c.h.b16 %v1293
        %v1338 = vunpack.c.l.b16 %v1294
        %v1339 = vunpack.c.h.b16 %v1294
        %v1340 = vunpack.c.l.b16 %v1295
        %v1341 = vunpack.c.h.b16 %v1295
        %v1342 = vunpack.c.l.b16 %v1296
        %v1343 = vunpack.c.h.b16 %v1296
        %v1344 = vunpack.c.l.b16 %v1297
        %v1345 = vunpack.c.h.b16 %v1297
        %v1346 = vunpack.c.l.b16 %v1298
        %v1347 = vunpack.c.h.b16 %v1298
        %v1348 = vpack.c.b16 %v1318, %v1316
        %v1349 = vpack.c.b16 %v1319, %v1317
        %v1350 = vpack.c.b16 %v1322, %v1320
        %v1351 = vpack.c.b16 %v1323, %v1321
        %v1352 = vpack.c.b16 %v1326, %v1324
        %v1353 = vpack.c.b16 %v1327, %v1325
        %v1354 = vpack.c.b16 %v1330, %v1328
        %v1355 = vpack.c.b16 %v1331, %v1329
        %v1356 = vpack.c.b16 %v1334, %v1332
        %v1357 = vpack.c.b16 %v1335, %v1333
        %v1358 = vpack.c.b16 %v1338, %v1336
        %v1359 = vpack.c.b16 %v1339, %v1337
        %v1360 = vpack.c.b16 %v1342, %v1340
        %v1361 = vpack.c.b16 %v1343, %v1341
        %v1362 = vpack.c.b16 %v1346, %v1344
        %v1363 = vpack.c.b16 %v1347, %v1345
        %1380 = vmatpush.bf16.msra.mxu0 %v1362
        %1381 = vmatpush.bf16.msra.mxu0 %v1360
        %1382 = vmatpush.bf16.msra.mxu0 %v1358
        %1383 = vmatpush.bf16.msra.mxu0 %v1356
        %1384 = vmatpush.bf16.msra.mxu0 %v1354
        %1385 = vmatpush.bf16.msra.mxu0 %v1352
        %1386 = vmatpush.bf16.msra.mxu0 %v1350
        %1387 = vmatpush.bf16.msra.mxu0 %v1348
        %1388 = vmatmul.bf16.gmra.mxu0 %v1299
        %v1389 = vpop.f32.mrf.mxu0
        %v1390 = vadd.f32 0.0, %v1389
        %v1391 = vpop.f32.mrf.mxu0
        %v1392 = vadd.f32 0.0, %v1391
        %1393 = vdwg.mxu0
        %1394 = vmatpush.bf16.msra.mxu0 %v1363
        %1395 = vmatpush.bf16.msra.mxu0 %v1361
        %1396 = vmatpush.bf16.msra.mxu0 %v1359
        %1397 = vmatpush.bf16.msra.mxu0 %v1357
        %1398 = vmatpush.bf16.msra.mxu0 %v1355
        %1399 = vmatpush.bf16.msra.mxu0 %v1353
        %1400 = vmatpush.bf16.msra.mxu0 %v1351
        %1401 = vmatpush.bf16.msra.mxu0 %v1349
        %1402 = vmatmul.bf16.gmra.mxu0 %v1299
        %v1403 = vpop.f32.mrf.mxu0
        %v1404 = vadd.f32 0.0, %v1403
        %v1405 = vpop.f32.mrf.mxu0
        %v1406 = vadd.f32 0.0, %v1405
        %1407 = vdwg.mxu0
        %s1408 = scalar_lea.vmem [#allocation9], 80
        %v1409 = vld [vmem:[%s1408] sm:$0xff]
        %v1410 = vld [vmem:[%s1408 + $0x8] sm:$0xff]
        %s1411 = scalar_lea.vmem [#allocation7], 240
        %v1412 = vld [vmem:[%s1411] sm:$0xff]
        %v1413 = vld [vmem:[%s1411 + $0x8] sm:$0xff]
        %1415 = vset.pattern.permute.xlu0 0
        %1416 = vperm.xlu0 %1415, %v1412
        %v1417 = vpop.permute.xlu0 %1416
        %1420 = vset.pattern.permute.xlu0 0
        %1421 = vperm.xlu0 %1420, %v1413
        %v1422 = vpop.permute.xlu0 %1421
        %v1424 = vmul.f32 %v1417, %v1390
        %v1425 = vmul.f32 %v1422, %v1392
        %1427 = vset.pattern.permute.xlu0 0
        %1428 = vperm.xlu0 %1427, %v1409
        %v1429 = vpop.permute.xlu0 %1428
        %1432 = vset.pattern.permute.xlu0 0
        %1433 = vperm.xlu0 %1432, %v1410
        %v1434 = vpop.permute.xlu0 %1433
        %v1436 = vadd.f32 %v1429, %v1424
        %v1437 = vadd.f32 %v1434, %v1425
        %s1438 = scalar_lea.vmem [#allocation7], 280
        %v1439 = vld [vmem:[%s1438] sm:$0xff]
        %v1440 = vld [vmem:[%s1438 + $0x8] sm:$0xff]
        %1442 = vset.pattern.permute.xlu0 0
        %1443 = vperm.xlu0 %1442, %v1439
        %v1444 = vpop.permute.xlu0 %1443
        %1447 = vset.pattern.permute.xlu0 0
        %1448 = vperm.xlu0 %1447, %v1440
        %v1449 = vpop.permute.xlu0 %1448
        %v1451 = vmul.f32 %v1444, %v1390
        %v1452 = vmul.f32 %v1449, %v1392
        %1455 = vrot.lane.b32.xlu0 %v1451, 64
        %v1456 = vpop.permute.xlu0 %1455
        %1457 = vrot.lane.b32.xlu0 %v1452, 64
        %v1458 = vpop.permute.xlu0 %1457
        %v1461 = vadd.f32 %v1436, %v1456
        %v1462 = vadd.f32 %v1437, %v1458
        %s1463 = scalar_lea.vmem [#allocation7], 320
        %v1464 = vld [vmem:[%s1463] sm:$0xff]
        %v1465 = vld [vmem:[%s1463 + $0x8] sm:$0xff]
        %1467 = vset.pattern.permute.xlu0 0
        %1468 = vperm.xlu0 %1467, %v1464
        %v1469 = vpop.permute.xlu0 %1468
        %1472 = vset.pattern.permute.xlu0 0
        %1473 = vperm.xlu0 %1472, %v1465
        %v1474 = vpop.permute.xlu0 %1473
        %v1476 = vmul.f32 %v1469, %v1404
        %v1477 = vmul.f32 %v1474, %v1406
        %v1478 = vadd.f32 %v1461, %v1476
        %v1479 = vadd.f32 %v1462, %v1477
        %v1480 = vmax.f32 %v1478, 0.0
        %v1481 = vmax.f32 %v1479, 0.0
        %s1482 = scalar_lea.vmem [#allocation10], 24
        %v1483 = vld [vmem:[%s1482] sm:$0xf]
        %v1484 = vpack.c.bf16 %v1481, %v1480
        %s1485 = scalar_lea.vmem [#allocation12], 48
        %v1486 = vld [vmem:[%s1485] sm:$0xff]
        %1488 = vset.pattern.permute.xlu0 0
        %1489 = vperm.xlu0 %1488, %v1486
        %v1490 = vpop.permute.xlu0 %1489
        %vm1492 = vcmask 130048
        %v1494 = vsel %vm1492, %v1483, 0
        %1496 = vmatpush.bf16.msra.mxu0 0
        %1497 = vmatpush.bf16.msra.mxu0 0
        %1498 = vmatpush.bf16.msra.mxu0 0
        %1499 = vmatpush.bf16.msra.mxu0 0
        %1500 = vmatpush.bf16.msra.mxu0 0
        %1501 = vmatpush.bf16.msra.mxu0 0
        %1502 = vmatpush.bf16.msra.mxu0 0
        %1503 = vmatpush.bf16.msra.mxu0 %v1484
        %1504 = vmatmul.bf16.gmra.mxu0 %v1494
        %v1505 = vpop.f32.mrf.mxu0
        %v1506 = vadd.f32 %v1490, %v1505
        %v1507 = vpop.f32.mrf.mxu0
        %1508 = vdwg.mxu0
        %s1509 = scalar_lea.vmem [#allocation4], 60
        %v1510 = vld [vmem:[%s1509] sm:$0xf]
        %v1511 = vld [vmem:[%s1509 + $0x4] sm:$0xf]
        %v1512 = vpack.c.bf16 %v1506, %v1506
        %s1513 = scalar_lea.vmem [#allocation6], 120
        %v1514 = vld [vmem:[%s1513] sm:$0xff]
        %v1515 = vld [vmem:[%s1513 + $0x8] sm:$0xff]
        %1517 = vset.pattern.permute.xlu0 0
        %1518 = vperm.xlu0 %1517, %v1514
        %v1519 = vpop.permute.xlu0 %1518
        %1522 = vset.pattern.permute.xlu0 0
        %1523 = vperm.xlu0 %1522, %v1515
        %v1524 = vpop.permute.xlu0 %1523
        %v1528 = vunpack.c.l.b16 %v1510
        %v1529 = vunpack.c.l.b16 %v1511
        %v1530 = vpack.c.b16 %v1529, %v1528
        %v1532 = vsel %vm1218, %v1530, 0
        %v1535 = vsel %vm1222, %v1512, 0
        %1537 = vmatpush.bf16.msra.mxu0 0
        %1538 = vmatpush.bf16.msra.mxu0 0
        %1539 = vmatpush.bf16.msra.mxu0 0
        %1540 = vmatpush.bf16.msra.mxu0 0
        %1541 = vmatpush.bf16.msra.mxu0 0
        %1542 = vmatpush.bf16.msra.mxu0 0
        %1543 = vmatpush.bf16.msra.mxu0 0
        %1544 = vmatpush.bf16.msra.mxu0 %v1535
        %1545 = vmatmul.bf16.gmra.mxu0 %v1532
        %v1546 = vpop.f32.mrf.mxu0
        %v1547 = vadd.f32 %v1519, %v1546
        %v1548 = vpop.f32.mrf.mxu0
        %v1549 = vadd.f32 %v1524, %v1548
        %1550 = vdwg.mxu0
        %v1551 = vmax.f32 %v1547, 0.0
        %v1552 = vmax.f32 %v1549, 0.0
        %v1553 = vld [vmem:[#allocation13 + $0x240] sm:$0xff]
        %v1554 = vld [vmem:[#allocation13 + $0x24c] sm:$0xff]
        %v1555 = vld [vmem:[#allocation13 + $0x258] sm:$0xff]
        %v1556 = vld [vmem:[#allocation13 + $0x264] sm:$0xff]
        %v1557 = vld [vmem:[#allocation13 + $0x270] sm:$0xff]
        %v1558 = vld [vmem:[#allocation13 + $0x27c] sm:$0xff]
        %v1559 = vld [vmem:[#allocation13 + $0x288] sm:$0xff]
        %v1560 = vld [vmem:[#allocation13 + $0x294] sm:$0xff]
        %v1561 = vpack.c.bf16 %v1552, %v1551
        %v1570 = vunpack.c.l.b16 %v1553
        %v1571 = vunpack.c.h.b16 %v1553
        %v1572 = vunpack.c.l.b16 %v1554
        %v1573 = vunpack.c.h.b16 %v1554
        %v1574 = vunpack.c.l.b16 %v1555
        %v1575 = vunpack.c.h.b16 %v1555
        %v1576 = vunpack.c.l.b16 %v1556
        %v1577 = vunpack.c.h.b16 %v1556
        %v1578 = vunpack.c.l.b16 %v1557
        %v1579 = vunpack.c.h.b16 %v1557
        %v1580 = vunpack.c.l.b16 %v1558
        %v1581 = vunpack.c.h.b16 %v1558
        %v1582 = vunpack.c.l.b16 %v1559
        %v1583 = vunpack.c.h.b16 %v1559
        %v1584 = vunpack.c.l.b16 %v1560
        %v1585 = vunpack.c.h.b16 %v1560
        %v1586 = vpack.c.b16 %v1572, %v1570
        %v1587 = vpack.c.b16 %v1573, %v1571
        %v1588 = vpack.c.b16 %v1576, %v1574
        %v1589 = vpack.c.b16 %v1577, %v1575
        %v1590 = vpack.c.b16 %v1580, %v1578
        %v1591 = vpack.c.b16 %v1581, %v1579
        %v1592 = vpack.c.b16 %v1584, %v1582
        %v1593 = vpack.c.b16 %v1585, %v1583
        %vm1602 = vcmask 523264
        %v1604 = vsel %vm1602, %v1561, 0
        %1606 = vmatpush.bf16.msra.mxu0 0
        %1607 = vmatpush.bf16.msra.mxu0 0
        %1608 = vmatpush.bf16.msra.mxu0 0
        %1609 = vmatpush.bf16.msra.mxu0 0
        %1610 = vmatpush.bf16.msra.mxu0 %v1592
        %1611 = vmatpush.bf16.msra.mxu0 %v1590
        %1612 = vmatpush.bf16.msra.mxu0 %v1588
        %1613 = vmatpush.bf16.msra.mxu0 %v1586
        %1614 = vmatmul.bf16.gmra.mxu0 %v1604
        %v1615 = vpop.f32.mrf.mxu0
        %v1616 = vadd.f32 0.0, %v1615
        %v1617 = vpop.f32.mrf.mxu0
        %v1618 = vadd.f32 0.0, %v1617
        %1619 = vdwg.mxu0
        %1620 = vmatpush.bf16.msra.mxu0 0
        %1621 = vmatpush.bf16.msra.mxu0 0
        %1622 = vmatpush.bf16.msra.mxu0 0
        %1623 = vmatpush.bf16.msra.mxu0 0
        %1624 = vmatpush.bf16.msra.mxu0 %v1593
        %1625 = vmatpush.bf16.msra.mxu0 %v1591
        %1626 = vmatpush.bf16.msra.mxu0 %v1589
        %1627 = vmatpush.bf16.msra.mxu0 %v1587
        %1628 = vmatmul.bf16.gmra.mxu0 %v1604
        %v1629 = vpop.f32.mrf.mxu0
        %v1630 = vadd.f32 0.0, %v1629
        %v1631 = vpop.f32.mrf.mxu0
        %v1632 = vadd.f32 0.0, %v1631
        %1633 = vdwg.mxu0
        %s1634 = scalar_lea.vmem [#allocation9], 120
        %v1635 = vld [vmem:[%s1634] sm:$0xff]
        %v1636 = vld [vmem:[%s1634 + $0x8] sm:$0xff]
        %s1637 = scalar_lea.vmem [#allocation7], 360
        %v1638 = vld [vmem:[%s1637] sm:$0xff]
        %v1639 = vld [vmem:[%s1637 + $0x8] sm:$0xff]
        %1641 = vset.pattern.permute.xlu0 0
        %1642 = vperm.xlu0 %1641, %v1638
        %v1643 = vpop.permute.xlu0 %1642
        %1646 = vset.pattern.permute.xlu0 0
        %1647 = vperm.xlu0 %1646, %v1639
        %v1648 = vpop.permute.xlu0 %1647
        %v1650 = vmul.f32 %v1643, %v1616
        %v1651 = vmul.f32 %v1648, %v1618
        %1653 = vset.pattern.permute.xlu0 0
        %1654 = vperm.xlu0 %1653, %v1635
        %v1655 = vpop.permute.xlu0 %1654
        %1658 = vset.pattern.permute.xlu0 0
        %1659 = vperm.xlu0 %1658, %v1636
        %v1660 = vpop.permute.xlu0 %1659
        %v1662 = vadd.f32 %v1655, %v1650
        %v1663 = vadd.f32 %v1660, %v1651
        %s1664 = scalar_lea.vmem [#allocation7], 400
        %v1665 = vld [vmem:[%s1664] sm:$0xff]
        %v1666 = vld [vmem:[%s1664 + $0x8] sm:$0xff]
        %1668 = vset.pattern.permute.xlu0 0
        %1669 = vperm.xlu0 %1668, %v1665
        %v1670 = vpop.permute.xlu0 %1669
        %1673 = vset.pattern.permute.xlu0 0
        %1674 = vperm.xlu0 %1673, %v1666
        %v1675 = vpop.permute.xlu0 %1674
        %v1677 = vmul.f32 %v1670, %v1616
        %v1678 = vmul.f32 %v1675, %v1618
        %1681 = vrot.lane.b32.xlu0 %v1677, 64
        %v1682 = vpop.permute.xlu0 %1681
        %1683 = vrot.lane.b32.xlu0 %v1678, 64
        %v1684 = vpop.permute.xlu0 %1683
        %v1687 = vadd.f32 %v1662, %v1682
        %v1688 = vadd.f32 %v1663, %v1684
        %s1689 = scalar_lea.vmem [#allocation7], 440
        %v1690 = vld [vmem:[%s1689] sm:$0xff]
        %v1691 = vld [vmem:[%s1689 + $0x8] sm:$0xff]
        %1693 = vset.pattern.permute.xlu0 0
        %1694 = vperm.xlu0 %1693, %v1690
        %v1695 = vpop.permute.xlu0 %1694
        %1698 = vset.pattern.permute.xlu0 0
        %1699 = vperm.xlu0 %1698, %v1691
        %v1700 = vpop.permute.xlu0 %1699
        %v1702 = vmul.f32 %v1695, %v1630
        %v1703 = vmul.f32 %v1700, %v1632
        %v1704 = vadd.f32 %v1687, %v1702
        %v1705 = vadd.f32 %v1688, %v1703
        %v1706 = vmax.f32 %v1704, 0.0
        %v1707 = vmax.f32 %v1705, 0.0
        %s1708 = scalar_lea.vmem [#allocation10], 36
        %v1709 = vld [vmem:[%s1708] sm:$0xf]
        %v1710 = vld [vmem:[%s1708 + $0x4] sm:$0x3]
        %v1711 = vpack.c.bf16 %v1707, %v1706
        %s1712 = scalar_lea.vmem [#allocation12], 72
        %v1713 = vld [vmem:[%s1712] sm:$0xff]
        %v1714 = vld [vmem:[%s1712 + $0x8] sm:$0xf]
        %1716 = vset.pattern.permute.xlu0 0
        %1717 = vperm.xlu0 %1716, %v1713
        %v1718 = vpop.permute.xlu0 %1717
        %1721 = vset.pattern.permute.xlu0 0
        %1722 = vperm.xlu0 %1721, %v1714
        %v1723 = vpop.permute.xlu0 %1722
        %v1727 = vunpack.c.l.b16 %v1709
        %v1728 = vunpack.c.l.b16 %v1710
        %v1729 = vpack.c.b16 %v1728, %v1727
        %v1731 = vsel %vm1492, %v1729, 0
        %1733 = vmatpush.bf16.msra.mxu0 0
        %1734 = vmatpush.bf16.msra.mxu0 0
        %1735 = vmatpush.bf16.msra.mxu0 0
        %1736 = vmatpush.bf16.msra.mxu0 0
        %1737 = vmatpush.bf16.msra.mxu0 0
        %1738 = vmatpush.bf16.msra.mxu0 0
        %1739 = vmatpush.bf16.msra.mxu0 0
        %1740 = vmatpush.bf16.msra.mxu0 %v1711
        %1741 = vmatmul.bf16.gmra.mxu0 %v1731
        %v1742 = vpop.f32.mrf.mxu0
        %v1743 = vadd.f32 %v1718, %v1742
        %v1744 = vpop.f32.mrf.mxu0
        %v1745 = vadd.f32 %v1723, %v1744
        %1746 = vdwg.mxu0
        %s1747 = scalar_lea.vmem [#allocation4], 80
        %v1748 = vld [vmem:[%s1747] sm:$0xf]
        %v1749 = vld [vmem:[%s1747 + $0x4] sm:$0xf]
        %v1750 = vld [vmem:[%s1747 + $0x8] sm:$0xf]
        %v1751 = vpack.c.bf16 %v1745, %v1743
        %s1752 = scalar_lea.vmem [#allocation6], 160
        %v1753 = vld [vmem:[%s1752] sm:$0xff]
        %v1754 = vld [vmem:[%s1752 + $0x8] sm:$0xff]
        %v1755 = vld [vmem:[%s1752 + $0x10] sm:$0xff]
        %1757 = vset.pattern.permute.xlu0 0
        %1758 = vperm.xlu0 %1757, %v1753
        %v1759 = vpop.permute.xlu0 %1758
        %1762 = vset.pattern.permute.xlu0 0
        %1763 = vperm.xlu0 %1762, %v1754
        %v1764 = vpop.permute.xlu0 %1763
        %1767 = vset.pattern.permute.xlu0 0
        %1768 = vperm.xlu0 %1767, %v1755
        %v1769 = vpop.permute.xlu0 %1768
        %v1774 = vunpack.c.l.b16 %v1748
        %v1775 = vunpack.c.l.b16 %v1749
        %v1776 = vunpack.c.l.b16 %v1750
        %v1777 = vpack.c.b16 %v1775, %v1774
        %v1778 = vpack.c.b16 %v1776, %v1776
        %vm1779 = vcmask 97280
        %v1781 = vsel %vm1779, %v1777, 0
        %v1784 = vsel %vm1779, %v1778, 0
        %vm1786 = vcmask 1045504
        %v1788 = vsel %vm1786, %v1751, 0
        %1790 = vmatpush.bf16.msra.mxu0 0
        %1791 = vmatpush.bf16.msra.mxu0 0
        %1792 = vmatpush.bf16.msra.mxu0 0
        %1793 = vmatpush.bf16.msra.mxu0 0
        %1794 = vmatpush.bf16.msra.mxu0 0
        %1795 = vmatpush.bf16.msra.mxu0 0
        %1796 = vmatpush.bf16.msra.mxu0 0
        %1797 = vmatpush.bf16.msra.mxu0 %v1788
        %1798 = vmatmul.bf16.gmra.mxu0 %v1781
        %v1799 = vpop.f32.mrf.mxu0
        %v1800 = vadd.f32 %v1759, %v1799
        %v1801 = vpop.f32.mrf.mxu0
        %v1802 = vadd.f32 %v1764, %v1801
        %1803 = vmatmul.bf16.gmra.mxu0 %v1784
        %v1804 = vpop.f32.mrf.mxu0
        %v1805 = vadd.f32 %v1769, %v1804
        %v1806 = vpop.f32.mrf.mxu0
        %1807 = vdwg.mxu0
        %v1808 = vmax.f32 %v1800, 0.0
        %v1809 = vmax.f32 %v1802, 0.0
        %v1810 = vmax.f32 %v1805, 0.0
        %v1811 = vld [vmem:[#allocation13 + $0x2a0] sm:$0xf]
        %v1812 = vld [vmem:[#allocation13 + $0x2ac] sm:$0xf]
        %v1813 = vld [vmem:[#allocation13 + $0x2b8] sm:$0xf]
        %v1814 = vld [vmem:[#allocation13 + $0x2c4] sm:$0xf]
        %v1815 = vld [vmem:[#allocation13 + $0x2d0] sm:$0xf]
        %v1816 = vld [vmem:[#allocation13 + $0x2dc] sm:$0xf]
        %v1817 = vld [vmem:[#allocation13 + $0x2e8] sm:$0xf]
        %v1818 = vld [vmem:[#allocation13 + $0x2f4] sm:$0xf]
        %v1819 = vpack.c.bf16 %v1809, %v1808
        %v1820 = vpack.c.bf16 %v1810, %v1810
        %v1829 = vunpack.c.l.b16 %v1811
        %v1830 = vunpack.c.l.b16 %v1812
        %v1831 = vunpack.c.l.b16 %v1813
        %v1832 = vunpack.c.l.b16 %v1814
        %v1833 = vunpack.c.l.b16 %v1815
        %v1834 = vunpack.c.l.b16 %v1816
        %v1835 = vunpack.c.l.b16 %v1817
        %v1836 = vunpack.c.l.b16 %v1818
        %v1837 = vpack.c.b16 %v1830, %v1829
        %v1838 = vpack.c.b16 %v1832, %v1831
        %v1839 = vpack.c.b16 %v1834, %v1833
        %v1840 = vpack.c.b16 %v1836, %v1835
        %v1846 = vsel %vm1602, %v1819, 0
        %v1849 = vsel %vm1602, %v1820, 0
        %1851 = vmatpush.bf16.msra.mxu0 0
        %1852 = vmatpush.bf16.msra.mxu0 0
        %1853 = vmatpush.bf16.msra.mxu0 0
        %1854 = vmatpush.bf16.msra.mxu0 0
        %1855 = vmatpush.bf16.msra.mxu0 %v1840
        %1856 = vmatpush.bf16.msra.mxu0 %v1839
        %1857 = vmatpush.bf16.msra.mxu0 %v1838
        %1858 = vmatpush.bf16.msra.mxu0 %v1837
        %1859 = vmatmul.bf16.gmra.mxu0 %v1846
        %v1860 = vpop.f32.mrf.mxu0
        %v1861 = vadd.f32 0.0, %v1860
        %v1862 = vpop.f32.mrf.mxu0
        %v1863 = vadd.f32 0.0, %v1862
        %1864 = vmatmul.bf16.gmra.mxu0 %v1849
        %v1865 = vpop.f32.mrf.mxu0
        %v1866 = vadd.f32 0.0, %v1865
        %v1867 = vpop.f32.mrf.mxu0
        %1868 = vdwg.mxu0
        %s1869 = scalar_lea.vmem [#allocation9], 160
        %v1870 = vld [vmem:[%s1869] sm:$0xff]
        %v1871 = vld [vmem:[%s1869 + $0x8] sm:$0xff]
        %v1872 = vld [vmem:[%s1869 + $0x10] sm:$0xff]
        %s1873 = scalar_lea.vmem [#allocation7], 480
        %v1874 = vld [vmem:[%s1873] sm:$0xff]
        %v1875 = vld [vmem:[%s1873 + $0x8] sm:$0xff]
        %v1876 = vld [vmem:[%s1873 + $0x10] sm:$0xff]
        %1878 = vset.pattern.permute.xlu0 0
        %1879 = vperm.xlu0 %1878, %v1874
        %v1880 = vpop.permute.xlu0 %1879
        %1883 = vset.pattern.permute.xlu0 0
        %1884 = vperm.xlu0 %1883, %v1875
        %v1885 = vpop.permute.xlu0 %1884
        %1888 = vset.pattern.permute.xlu0 0
        %1889 = vperm.xlu0 %1888, %v1876
        %v1890 = vpop.permute.xlu0 %1889
        %v1892 = vmul.f32 %v1880, %v1861
        %v1893 = vmul.f32 %v1885, %v1863
        %v1894 = vmul.f32 %v1890, %v1866
        %1896 = vset.pattern.permute.xlu0 0
        %1897 = vperm.xlu0 %1896, %v1870
        %v1898 = vpop.permute.xlu0 %1897
        %1901 = vset.pattern.permute.xlu0 0
        %1902 = vperm.xlu0 %1901, %v1871
        %v1903 = vpop.permute.xlu0 %1902
        %1906 = vset.pattern.permute.xlu0 0
        %1907 = vperm.xlu0 %1906, %v1872
        %v1908 = vpop.permute.xlu0 %1907
        %v1910 = vadd.f32 %v1898, %v1892
        %v1911 = vadd.f32 %v1903, %v1893
        %v1912 = vadd.f32 %v1908, %v1894
        %s1913 = scalar_lea.vmem [#allocation7], 520
        %v1914 = vld [vmem:[%s1913] sm:$0xff]
        %v1915 = vld [vmem:[%s1913 + $0x8] sm:$0xff]
        %v1916 = vld [vmem:[%s1913 + $0x10] sm:$0xff]
        %1918 = vset.pattern.permute.xlu0 0
        %1919 = vperm.xlu0 %1918, %v1914
        %v1920 = vpop.permute.xlu0 %1919
        %1923 = vset.pattern.permute.xlu0 0
        %1924 = vperm.xlu0 %1923, %v1915
        %v1925 = vpop.permute.xlu0 %1924
        %1928 = vset.pattern.permute.xlu0 0
        %1929 = vperm.xlu0 %1928, %v1916
        %v1930 = vpop.permute.xlu0 %1929
        %v1932 = vmul.f32 %v1920, %v1861
        %v1933 = vmul.f32 %v1925, %v1863
        %v1934 = vmul.f32 %v1930, %v1866
        %1938 = vrot.lane.b32.xlu0 %v1932, 96
        %v1939 = vpop.permute.xlu0 %1938
        %1940 = vrot.lane.b32.xlu0 %v1933, 96
        %v1941 = vpop.permute.xlu0 %1940
        %1942 = vrot.lane.b32.xlu0 %v1934, 96
        %v1943 = vpop.permute.xlu0 %1942
        %v1947 = vadd.f32 %v1910, %v1939
        %v1948 = vadd.f32 %v1911, %v1941
        %v1949 = vadd.f32 %v1912, %v1943
        %s1950 = scalar_lea.vmem [#allocation7], 560
        %v1951 = vld [vmem:[%s1950] sm:$0xff]
        %v1952 = vld [vmem:[%s1950 + $0x8] sm:$0xff]
        %v1953 = vld [vmem:[%s1950 + $0x10] sm:$0xff]
        %1955 = vset.pattern.permute.xlu0 0
        %1956 = vperm.xlu0 %1955, %v1951
        %v1957 = vpop.permute.xlu0 %1956
        %1960 = vset.pattern.permute.xlu0 0
        %1961 = vperm.xlu0 %1960, %v1952
        %v1962 = vpop.permute.xlu0 %1961
        %1965 = vset.pattern.permute.xlu0 0
        %1966 = vperm.xlu0 %1965, %v1953
        %v1967 = vpop.permute.xlu0 %1966
        %v1969 = vmul.f32 %v1957, %v1861
        %v1970 = vmul.f32 %v1962, %v1863
        %v1971 = vmul.f32 %v1967, %v1866
        %1975 = vrot.lane.b32.xlu0 %v1969, 64
        %v1976 = vpop.permute.xlu0 %1975
        %1977 = vrot.lane.b32.xlu0 %v1970, 64
        %v1978 = vpop.permute.xlu0 %1977
        %1979 = vrot.lane.b32.xlu0 %v1971, 64
        %v1980 = vpop.permute.xlu0 %1979
        %v1984 = vadd.f32 %v1947, %v1976
        %v1985 = vadd.f32 %v1948, %v1978
        %v1986 = vadd.f32 %v1949, %v1980
        %v1987 = vmax.f32 %v1984, 0.0
        %v1988 = vmax.f32 %v1985, 0.0
        %v1989 = vmax.f32 %v1986, 0.0
        %s1990 = scalar_lea.vmem [#allocation10], 48
        %v1991 = vld [vmem:[%s1990] sm:$0xf]
        %v1992 = vld [vmem:[%s1990 + $0x4] sm:$0x3]
        %v1993 = vpack.c.bf16 %v1988, %v1987
        %v1994 = vpack.c.bf16 %v1989, %v1989
        %s1995 = scalar_lea.vmem [#allocation12], 96
        %v1996 = vld [vmem:[%s1995] sm:$0xff]
        %v1997 = vld [vmem:[%s1995 + $0x8] sm:$0xf]
        %1999 = vset.pattern.permute.xlu0 0
        %2000 = vperm.xlu0 %1999, %v1996
        %v2001 = vpop.permute.xlu0 %2000
        %2004 = vset.pattern.permute.xlu0 0
        %2005 = vperm.xlu0 %2004, %v1997
        %v2006 = vpop.permute.xlu0 %2005
        %v2010 = vunpack.c.l.b16 %v1991
        %v2011 = vunpack.c.l.b16 %v1992
        %v2012 = vpack.c.b16 %v2011, %v2010
        %vm2013 = vcmask 195584
        %v2015 = vsel %vm2013, %v2012, 0
        %v2018 = vsel %vm1222, %v1994, 0
        %2020 = vmatpush.bf16.msra.mxu0 0
        %2021 = vmatpush.bf16.msra.mxu0 0
        %2022 = vmatpush.bf16.msra.mxu0 0
        %2023 = vmatpush.bf16.msra.mxu0 0
        %2024 = vmatpush.bf16.msra.mxu0 0
        %2025 = vmatpush.bf16.msra.mxu0 0
        %2026 = vmatpush.bf16.msra.mxu0 %v2018
        %2027 = vmatpush.bf16.msra.mxu0 %v1993
        %2028 = vmatmul.bf16.gmra.mxu0 %v2015
        %v2029 = vpop.f32.mrf.mxu0
        %v2030 = vadd.f32 %v2001, %v2029
        %v2031 = vpop.f32.mrf.mxu0
        %v2032 = vadd.f32 %v2006, %v2031
        %2033 = vdwg.mxu0
        %s2034 = scalar_lea.vmem [#allocation4], 100
        %v2035 = vld [vmem:[%s2034] sm:$0xf]
        %v2036 = vld [vmem:[%s2034 + $0x4] sm:$0xf]
        %v2037 = vld [vmem:[%s2034 + $0x8] sm:$0xf]
        %v2038 = vpack.c.bf16 %v2032, %v2030
        %s2039 = scalar_lea.vmem [#allocation6], 200
        %v2040 = vld [vmem:[%s2039] sm:$0xff]
        %v2041 = vld [vmem:[%s2039 + $0x8] sm:$0xff]
        %v2042 = vld [vmem:[%s2039 + $0x10] sm:$0xff]
        %2044 = vset.pattern.permute.xlu0 0
        %2045 = vperm.xlu0 %2044, %v2040
        %v2046 = vpop.permute.xlu0 %2045
        %2049 = vset.pattern.permute.xlu0 0
        %2050 = vperm.xlu0 %2049, %v2041
        %v2051 = vpop.permute.xlu0 %2050
        %2054 = vset.pattern.permute.xlu0 0
        %2055 = vperm.xlu0 %2054, %v2042
        %v2056 = vpop.permute.xlu0 %2055
        %v2061 = vunpack.c.l.b16 %v2035
        %v2062 = vunpack.c.l.b16 %v2036
        %v2063 = vunpack.c.l.b16 %v2037
        %v2064 = vpack.c.b16 %v2062, %v2061
        %v2065 = vpack.c.b16 %v2063, %v2063
        %v2067 = vsel %vm1779, %v2064, 0
        %v2070 = vsel %vm1779, %v2065, 0
        %v2073 = vsel %vm1786, %v2038, 0
        %2075 = vmatpush.bf16.msra.mxu0 0
        %2076 = vmatpush.bf16.msra.mxu0 0
        %2077 = vmatpush.bf16.msra.mxu0 0
        %2078 = vmatpush.bf16.msra.mxu0 0
        %2079 = vmatpush.bf16.msra.mxu0 0
        %2080 = vmatpush.bf16.msra.mxu0 0
        %2081 = vmatpush.bf16.msra.mxu0 0
        %2082 = vmatpush.bf16.msra.mxu0 %v2073
        %2083 = vmatmul.bf16.gmra.mxu0 %v2067
        %v2084 = vpop.f32.mrf.mxu0
        %v2085 = vadd.f32 %v2046, %v2084
        %v2086 = vpop.f32.mrf.mxu0
        %v2087 = vadd.f32 %v2051, %v2086
        %2088 = vmatmul.bf16.gmra.mxu0 %v2070
        %v2089 = vpop.f32.mrf.mxu0
        %v2090 = vadd.f32 %v2056, %v2089
        %v2091 = vpop.f32.mrf.mxu0
        %2092 = vdwg.mxu0
        %v2093 = vmax.f32 %v2085, 0.0
        %v2094 = vmax.f32 %v2087, 0.0
        %v2095 = vmax.f32 %v2090, 0.0
        %v2096 = vld [vmem:[#allocation13 + $0x300] sm:$0xf]
        %v2097 = vld [vmem:[#allocation13 + $0x30c] sm:$0xf]
        %v2098 = vld [vmem:[#allocation13 + $0x318] sm:$0xf]
        %v2099 = vld [vmem:[#allocation13 + $0x324] sm:$0xf]
        %v2100 = vpack.c.bf16 %v2094, %v2093
        %v2101 = vpack.c.bf16 %v2095, %v2095
        %v2106 = vunpack.c.l.b16 %v2096
        %v2107 = vunpack.c.l.b16 %v2097
        %v2108 = vunpack.c.l.b16 %v2098
        %v2109 = vunpack.c.l.b16 %v2099
        %v2110 = vpack.c.b16 %v2107, %v2106
        %v2111 = vpack.c.b16 %v2109, %v2108
        %vm2114 = vcmask 261120
        %v2116 = vsel %vm2114, %v2100, 0
        %v2119 = vsel %vm2114, %v2101, 0
        %2121 = vmatpush.bf16.msra.mxu0 0
        %2122 = vmatpush.bf16.msra.mxu0 0
        %2123 = vmatpush.bf16.msra.mxu0 0
        %2124 = vmatpush.bf16.msra.mxu0 0
        %2125 = vmatpush.bf16.msra.mxu0 0
        %2126 = vmatpush.bf16.msra.mxu0 0
        %2127 = vmatpush.bf16.msra.mxu0 %v2111
        %2128 = vmatpush.bf16.msra.mxu0 %v2110
        %2129 = vmatmul.bf16.gmra.mxu0 %v2116
        %v2130 = vpop.f32.mrf.mxu0
        %v2131 = vadd.f32 0.0, %v2130
        %v2132 = vpop.f32.mrf.mxu0
        %v2133 = vadd.f32 0.0, %v2132
        %2134 = vmatmul.bf16.gmra.mxu0 %v2119
        %v2135 = vpop.f32.mrf.mxu0
        %v2136 = vadd.f32 0.0, %v2135
        %v2137 = vpop.f32.mrf.mxu0
        %2138 = vdwg.mxu0
        %s2139 = scalar_lea.vmem [#allocation9], 200
        %v2140 = vld [vmem:[%s2139] sm:$0xff]
        %v2141 = vld [vmem:[%s2139 + $0x8] sm:$0xff]
        %v2142 = vld [vmem:[%s2139 + $0x10] sm:$0xff]
        %s2143 = scalar_lea.vmem [#allocation7], 600
        %v2144 = vld [vmem:[%s2143] sm:$0xff]
        %v2145 = vld [vmem:[%s2143 + $0x8] sm:$0xff]
        %v2146 = vld [vmem:[%s2143 + $0x10] sm:$0xff]
        %2148 = vset.pattern.permute.xlu0 0
        %2149 = vperm.xlu0 %2148, %v2144
        %v2150 = vpop.permute.xlu0 %2149
        %2153 = vset.pattern.permute.xlu0 0
        %2154 = vperm.xlu0 %2153, %v2145
        %v2155 = vpop.permute.xlu0 %2154
        %2158 = vset.pattern.permute.xlu0 0
        %2159 = vperm.xlu0 %2158, %v2146
        %v2160 = vpop.permute.xlu0 %2159
        %v2162 = vmul.f32 %v2150, %v2131
        %v2163 = vmul.f32 %v2155, %v2133
        %v2164 = vmul.f32 %v2160, %v2136
        %2166 = vset.pattern.permute.xlu0 0
        %2167 = vperm.xlu0 %2166, %v2140
        %v2168 = vpop.permute.xlu0 %2167
        %2171 = vset.pattern.permute.xlu0 0
        %2172 = vperm.xlu0 %2171, %v2141
        %v2173 = vpop.permute.xlu0 %2172
        %2176 = vset.pattern.permute.xlu0 0
        %2177 = vperm.xlu0 %2176, %v2142
        %v2178 = vpop.permute.xlu0 %2177
        %v2180 = vadd.f32 %v2168, %v2162
        %v2181 = vadd.f32 %v2173, %v2163
        %v2182 = vadd.f32 %v2178, %v2164
        %s2183 = scalar_lea.vmem [#allocation7], 640
        %v2184 = vld [vmem:[%s2183] sm:$0xff]
        %v2185 = vld [vmem:[%s2183 + $0x8] sm:$0xff]
        %v2186 = vld [vmem:[%s2183 + $0x10] sm:$0xff]
        %2188 = vset.pattern.permute.xlu0 0
        %2189 = vperm.xlu0 %2188, %v2184
        %v2190 = vpop.permute.xlu0 %2189
        %2193 = vset.pattern.permute.xlu0 0
        %2194 = vperm.xlu0 %2193, %v2185
        %v2195 = vpop.permute.xlu0 %2194
        %2198 = vset.pattern.permute.xlu0 0
        %2199 = vperm.xlu0 %2198, %v2186
        %v2200 = vpop.permute.xlu0 %2199
        %v2202 = vmul.f32 %v2190, %v2131
        %v2203 = vmul.f32 %v2195, %v2133
        %v2204 = vmul.f32 %v2200, %v2136
        %2208 = vrot.lane.b32.xlu0 %v2202, 96
        %v2209 = vpop.permute.xlu0 %2208
        %2210 = vrot.lane.b32.xlu0 %v2203, 96
        %v2211 = vpop.permute.xlu0 %2210
        %2212 = vrot.lane.b32.xlu0 %v2204, 96
        %v2213 = vpop.permute.xlu0 %2212
        %v2217 = vadd.f32 %v2180, %v2209
        %v2218 = vadd.f32 %v2181, %v2211
        %v2219 = vadd.f32 %v2182, %v2213
        %s2220 = scalar_lea.vmem [#allocation7], 680
        %v2221 = vld [vmem:[%s2220] sm:$0xff]
        %v2222 = vld [vmem:[%s2220 + $0x8] sm:$0xff]
        %v2223 = vld [vmem:[%s2220 + $0x10] sm:$0xff]
        %2225 = vset.pattern.permute.xlu0 0
        %2226 = vperm.xlu0 %2225, %v2221
        %v2227 = vpop.permute.xlu0 %2226
        %2230 = vset.pattern.permute.xlu0 0
        %2231 = vperm.xlu0 %2230, %v2222
        %v2232 = vpop.permute.xlu0 %2231
        %2235 = vset.pattern.permute.xlu0 0
        %2236 = vperm.xlu0 %2235, %v2223
        %v2237 = vpop.permute.xlu0 %2236
        %v2239 = vmul.f32 %v2227, %v2131
        %v2240 = vmul.f32 %v2232, %v2133
        %v2241 = vmul.f32 %v2237, %v2136
        %2245 = vrot.lane.b32.xlu0 %v2239, 64
        %v2246 = vpop.permute.xlu0 %2245
        %2247 = vrot.lane.b32.xlu0 %v2240, 64
        %v2248 = vpop.permute.xlu0 %2247
        %2249 = vrot.lane.b32.xlu0 %v2241, 64
        %v2250 = vpop.permute.xlu0 %2249
        %v2254 = vadd.f32 %v2217, %v2246
        %v2255 = vadd.f32 %v2218, %v2248
        %v2256 = vadd.f32 %v2219, %v2250
        %v2257 = vmax.f32 %v2254, 0.0
        %v2258 = vmax.f32 %v2255, 0.0
        %v2259 = vmax.f32 %v2256, 0.0
        %s2260 = scalar_lea.vmem [#allocation10], 60
        %v2261 = vld [vmem:[%s2260] sm:$0xf]
        %v2262 = vld [vmem:[%s2260 + $0x4] sm:$0xf]
        %v2263 = vpack.c.bf16 %v2258, %v2257
        %v2264 = vpack.c.bf16 %v2259, %v2259
        %s2265 = scalar_lea.vmem [#allocation12], 120
        %v2266 = vld [vmem:[%s2265] sm:$0xff]
        %v2267 = vld [vmem:[%s2265 + $0x8] sm:$0xff]
        %2269 = vset.pattern.permute.xlu0 0
        %2270 = vperm.xlu0 %2269, %v2266
        %v2271 = vpop.permute.xlu0 %2270
        %2274 = vset.pattern.permute.xlu0 0
        %2275 = vperm.xlu0 %2274, %v2267
        %v2276 = vpop.permute.xlu0 %2275
        %v2280 = vunpack.c.l.b16 %v2261
        %v2281 = vunpack.c.l.b16 %v2262
        %v2282 = vpack.c.b16 %v2281, %v2280
        %v2284 = vsel %vm2013, %v2282, 0
        %v2287 = vsel %vm1222, %v2264, 0
        %2289 = vmatpush.bf16.msra.mxu0 0
        %2290 = vmatpush.bf16.msra.mxu0 0
        %2291 = vmatpush.bf16.msra.mxu0 0
        %2292 = vmatpush.bf16.msra.mxu0 0
        %2293 = vmatpush.bf16.msra.mxu0 0
        %2294 = vmatpush.bf16.msra.mxu0 0
        %2295 = vmatpush.bf16.msra.mxu0 %v2287
        %2296 = vmatpush.bf16.msra.mxu0 %v2263
        %2297 = vmatmul.bf16.gmra.mxu0 %v2284
        %v2298 = vpop.f32.mrf.mxu0
        %v2299 = vadd.f32 %v2271, %v2298
        %v2300 = vpop.f32.mrf.mxu0
        %v2301 = vadd.f32 %v2276, %v2300
        %2302 = vdwg.mxu0
        %s2303 = scalar_lea.vmem [#allocation4], 120
        %v2304 = vld [vmem:[%s2303] sm:$0xf]
        %v2305 = vld [vmem:[%s2303 + $0x4] sm:$0xf]
        %v2306 = vld [vmem:[%s2303 + $0x8] sm:$0xf]
        %v2307 = vld [vmem:[%s2303 + $0xc] sm:$0xf]
        %v2308 = vpack.c.bf16 %v2301, %v2299
        %s2309 = scalar_lea.vmem [#allocation6], 240
        %v2310 = vld [vmem:[%s2309] sm:$0xff]
        %v2311 = vld [vmem:[%s2309 + $0x8] sm:$0xff]
        %v2312 = vld [vmem:[%s2309 + $0x10] sm:$0xff]
        %v2313 = vld [vmem:[%s2309 + $0x18] sm:$0xff]
        %2315 = vset.pattern.permute.xlu0 0
        %2316 = vperm.xlu0 %2315, %v2310
        %v2317 = vpop.permute.xlu0 %2316
        %2320 = vset.pattern.permute.xlu0 0
        %2321 = vperm.xlu0 %2320, %v2311
        %v2322 = vpop.permute.xlu0 %2321
        %2325 = vset.pattern.permute.xlu0 0
        %2326 = vperm.xlu0 %2325, %v2312
        %v2327 = vpop.permute.xlu0 %2326
        %2330 = vset.pattern.permute.xlu0 0
        %2331 = vperm.xlu0 %2330, %v2313
        %v2332 = vpop.permute.xlu0 %2331
        %v2338 = vunpack.c.l.b16 %v2304
        %v2339 = vunpack.c.l.b16 %v2305
        %v2340 = vunpack.c.l.b16 %v2306
        %v2341 = vunpack.c.l.b16 %v2307
        %v2342 = vpack.c.b16 %v2339, %v2338
        %v2343 = vpack.c.b16 %v2341, %v2340
        %v2345 = vsel %vm1492, %v2342, 0
        %v2348 = vsel %vm1492, %v2343, 0
        %2350 = vmatpush.bf16.msra.mxu0 0
        %2351 = vmatpush.bf16.msra.mxu0 0
        %2352 = vmatpush.bf16.msra.mxu0 0
        %2353 = vmatpush.bf16.msra.mxu0 0
        %2354 = vmatpush.bf16.msra.mxu0 0
        %2355 = vmatpush.bf16.msra.mxu0 0
        %2356 = vmatpush.bf16.msra.mxu0 0
        %2357 = vmatpush.bf16.msra.mxu0 %v2308
        %2358 = vmatmul.bf16.gmra.mxu0 %v2345
        %v2359 = vpop.f32.mrf.mxu0
        %v2360 = vadd.f32 %v2317, %v2359
        %v2361 = vpop.f32.mrf.mxu0
        %v2362 = vadd.f32 %v2322, %v2361
        %2363 = vmatmul.bf16.gmra.mxu0 %v2348
        %v2364 = vpop.f32.mrf.mxu0
        %v2365 = vadd.f32 %v2327, %v2364
        %v2366 = vpop.f32.mrf.mxu0
        %v2367 = vadd.f32 %v2332, %v2366
        %2368 = vdwg.mxu0
        %v2369 = vmax.f32 %v2360, 0.0
        %v2370 = vmax.f32 %v2362, 0.0
        %v2371 = vmax.f32 %v2365, 0.0
        %v2372 = vmax.f32 %v2367, 0.0
        %v2373 = vld [vmem:[#allocation13 + $0x330] sm:$0xf]
        %v2374 = vld [vmem:[#allocation13 + $0x33c] sm:$0xf]
        %v2375 = vld [vmem:[#allocation13 + $0x348] sm:$0xf]
        %v2376 = vld [vmem:[#allocation13 + $0x354] sm:$0xf]
        %v2377 = vpack.c.bf16 %v2370, %v2369
        %v2378 = vpack.c.bf16 %v2372, %v2371
        %v2383 = vunpack.c.l.b16 %v2373
        %v2384 = vunpack.c.l.b16 %v2374
        %v2385 = vunpack.c.l.b16 %v2375
        %v2386 = vunpack.c.l.b16 %v2376
        %v2387 = vpack.c.b16 %v2384, %v2383
        %v2388 = vpack.c.b16 %v2386, %v2385
        %v2392 = vsel %vm2114, %v2377, 0
        %v2395 = vsel %vm2114, %v2378, 0
        %2397 = vmatpush.bf16.msra.mxu0 0
        %2398 = vmatpush.bf16.msra.mxu0 0
        %2399 = vmatpush.bf16.msra.mxu0 0
        %2400 = vmatpush.bf16.msra.mxu0 0
        %2401 = vmatpush.bf16.msra.mxu0 0
        %2402 = vmatpush.bf16.msra.mxu0 0
        %2403 = vmatpush.bf16.msra.mxu0 %v2388
        %2404 = vmatpush.bf16.msra.mxu0 %v2387
        %2405 = vmatmul.bf16.gmra.mxu0 %v2392
        %v2406 = vpop.f32.mrf.mxu0
        %v2407 = vadd.f32 0.0, %v2406
        %v2408 = vpop.f32.mrf.mxu0
        %v2409 = vadd.f32 0.0, %v2408
        %2410 = vmatmul.bf16.gmra.mxu0 %v2395
        %v2411 = vpop.f32.mrf.mxu0
        %v2412 = vadd.f32 0.0, %v2411
        %v2413 = vpop.f32.mrf.mxu0
        %v2414 = vadd.f32 0.0, %v2413
        %2415 = vdwg.mxu0
        %s2416 = scalar_lea.vmem [#allocation9], 240
        %v2417 = vld [vmem:[%s2416] sm:$0xff]
        %v2418 = vld [vmem:[%s2416 + $0x8] sm:$0xff]
        %v2419 = vld [vmem:[%s2416 + $0x10] sm:$0xff]
        %v2420 = vld [vmem:[%s2416 + $0x18] sm:$0xff]
        %s2421 = scalar_lea.vmem [#allocation7], 720
        %v2422 = vld [vmem:[%s2421] sm:$0xff]
        %v2423 = vld [vmem:[%s2421 + $0x8] sm:$0xff]
        %v2424 = vld [vmem:[%s2421 + $0x10] sm:$0xff]
        %v2425 = vld [vmem:[%s2421 + $0x18] sm:$0xff]
        %2427 = vset.pattern.permute.xlu0 0
        %2428 = vperm.xlu0 %2427, %v2422
        %v2429 = vpop.permute.xlu0 %2428
        %2432 = vset.pattern.permute.xlu0 0
        %2433 = vperm.xlu0 %2432, %v2423
        %v2434 = vpop.permute.xlu0 %2433
        %2437 = vset.pattern.permute.xlu0 0
        %2438 = vperm.xlu0 %2437, %v2424
        %v2439 = vpop.permute.xlu0 %2438
        %2442 = vset.pattern.permute.xlu0 0
        %2443 = vperm.xlu0 %2442, %v2425
        %v2444 = vpop.permute.xlu0 %2443
        %v2446 = vmul.f32 %v2429, %v2407
        %v2447 = vmul.f32 %v2434, %v2409
        %v2448 = vmul.f32 %v2439, %v2412
        %v2449 = vmul.f32 %v2444, %v2414
        %2451 = vset.pattern.permute.xlu0 0
        %2452 = vperm.xlu0 %2451, %v2417
        %v2453 = vpop.permute.xlu0 %2452
        %2456 = vset.pattern.permute.xlu0 0
        %2457 = vperm.xlu0 %2456, %v2418
        %v2458 = vpop.permute.xlu0 %2457
        %2461 = vset.pattern.permute.xlu0 0
        %2462 = vperm.xlu0 %2461, %v2419
        %v2463 = vpop.permute.xlu0 %2462
        %2466 = vset.pattern.permute.xlu0 0
        %2467 = vperm.xlu0 %2466, %v2420
        %v2468 = vpop.permute.xlu0 %2467
        %v2470 = vadd.f32 %v2453, %v2446
        %v2471 = vadd.f32 %v2458, %v2447
        %v2472 = vadd.f32 %v2463, %v2448
        %v2473 = vadd.f32 %v2468, %v2449
        %s2474 = scalar_lea.vmem [#allocation7], 760
        %v2475 = vld [vmem:[%s2474] sm:$0xff]
        %v2476 = vld [vmem:[%s2474 + $0x8] sm:$0xff]
        %v2477 = vld [vmem:[%s2474 + $0x10] sm:$0xff]
        %v2478 = vld [vmem:[%s2474 + $0x18] sm:$0xff]
        %2480 = vset.pattern.permute.xlu0 0
        %2481 = vperm.xlu0 %2480, %v2475
        %v2482 = vpop.permute.xlu0 %2481
        %2485 = vset.pattern.permute.xlu0 0
        %2486 = vperm.xlu0 %2485, %v2476
        %v2487 = vpop.permute.xlu0 %2486
        %2490 = vset.pattern.permute.xlu0 0
        %2491 = vperm.xlu0 %2490, %v2477
        %v2492 = vpop.permute.xlu0 %2491
        %2495 = vset.pattern.permute.xlu0 0
        %2496 = vperm.xlu0 %2495, %v2478
        %v2497 = vpop.permute.xlu0 %2496
        %v2499 = vmul.f32 %v2482, %v2407
        %v2500 = vmul.f32 %v2487, %v2409
        %v2501 = vmul.f32 %v2492, %v2412
        %v2502 = vmul.f32 %v2497, %v2414
        %2507 = vrot.lane.b32.xlu0 %v2499, 112
        %v2508 = vpop.permute.xlu0 %2507
        %2509 = vrot.lane.b32.xlu0 %v2500, 112
        %v2510 = vpop.permute.xlu0 %2509
        %2511 = vrot.lane.b32.xlu0 %v2501, 112
        %v2512 = vpop.permute.xlu0 %2511
        %2513 = vrot.lane.b32.xlu0 %v2502, 112
        %v2514 = vpop.permute.xlu0 %2513
        %v2519 = vadd.f32 %v2470, %v2508
        %v2520 = vadd.f32 %v2471, %v2510
        %v2521 = vadd.f32 %v2472, %v2512
        %v2522 = vadd.f32 %v2473, %v2514
        %s2523 = scalar_lea.vmem [#allocation7], 800
        %v2524 = vld [vmem:[%s2523] sm:$0xff]
        %v2525 = vld [vmem:[%s2523 + $0x8] sm:$0xff]
        %v2526 = vld [vmem:[%s2523 + $0x10] sm:$0xff]
        %v2527 = vld [vmem:[%s2523 + $0x18] sm:$0xff]
        %2529 = vset.pattern.permute.xlu0 0
        %2530 = vperm.xlu0 %2529, %v2524
        %v2531 = vpop.permute.xlu0 %2530
        %2534 = vset.pattern.permute.xlu0 0
        %2535 = vperm.xlu0 %2534, %v2525
        %v2536 = vpop.permute.xlu0 %2535
        %2539 = vset.pattern.permute.xlu0 0
        %2540 = vperm.xlu0 %2539, %v2526
        %v2541 = vpop.permute.xlu0 %2540
        %2544 = vset.pattern.permute.xlu0 0
        %2545 = vperm.xlu0 %2544, %v2527
        %v2546 = vpop.permute.xlu0 %2545
        %v2548 = vmul.f32 %v2531, %v2407
        %v2549 = vmul.f32 %v2536, %v2409
        %v2550 = vmul.f32 %v2541, %v2412
        %v2551 = vmul.f32 %v2546, %v2414
        %2556 = vrot.lane.b32.xlu0 %v2548, 96
        %v2557 = vpop.permute.xlu0 %2556
        %2558 = vrot.lane.b32.xlu0 %v2549, 96
        %v2559 = vpop.permute.xlu0 %2558
        %2560 = vrot.lane.b32.xlu0 %v2550, 96
        %v2561 = vpop.permute.xlu0 %2560
        %2562 = vrot.lane.b32.xlu0 %v2551, 96
        %v2563 = vpop.permute.xlu0 %2562
        %v2568 = vadd.f32 %v2519, %v2557
        %v2569 = vadd.f32 %v2520, %v2559
        %v2570 = vadd.f32 %v2521, %v2561
        %v2571 = vadd.f32 %v2522, %v2563
        %v2572 = vmax.f32 %v2568, 0.0
        %v2573 = vmax.f32 %v2569, 0.0
        %v2574 = vmax.f32 %v2570, 0.0
        %v2575 = vmax.f32 %v2571, 0.0
        %s2576 = scalar_lea.vmem [#allocation10], 72
        %v2577 = vld [vmem:[%s2576] sm:$0xf]
        %v2578 = vld [vmem:[%s2576 + $0x4] sm:$0xf]
        %v2579 = vld [vmem:[%s2576 + $0x8] sm:$0x3]
        %v2580 = vpack.c.bf16 %v2573, %v2572
        %v2581 = vpack.c.bf16 %v2575, %v2574
        %s2582 = scalar_lea.vmem [#allocation12], 144
        %v2583 = vld [vmem:[%s2582] sm:$0xff]
        %v2584 = vld [vmem:[%s2582 + $0x8] sm:$0xff]
        %v2585 = vld [vmem:[%s2582 + $0x10] sm:$0xf]
        %2587 = vset.pattern.permute.xlu0 0
        %2588 = vperm.xlu0 %2587, %v2583
        %v2589 = vpop.permute.xlu0 %2588
        %2592 = vset.pattern.permute.xlu0 0
        %2593 = vperm.xlu0 %2592, %v2584
        %v2594 = vpop.permute.xlu0 %2593
        %2597 = vset.pattern.permute.xlu0 0
        %2598 = vperm.xlu0 %2597, %v2585
        %v2599 = vpop.permute.xlu0 %2598
        %v2604 = vunpack.c.l.b16 %v2577
        %v2605 = vunpack.c.l.b16 %v2578
        %v2606 = vunpack.c.l.b16 %v2579
        %v2607 = vpack.c.b16 %v2605, %v2604
        %v2608 = vpack.c.b16 %v2606, %v2606
        %v2610 = vsel %vm2114, %v2607, 0
        %v2613 = vsel %vm2114, %v2608, 0
        %2615 = vmatpush.bf16.msra.mxu0 0
        %2616 = vmatpush.bf16.msra.mxu0 0
        %2617 = vmatpush.bf16.msra.mxu0 0
        %2618 = vmatpush.bf16.msra.mxu0 0
        %2619 = vmatpush.bf16.msra.mxu0 0
        %2620 = vmatpush.bf16.msra.mxu0 0
        %2621 = vmatpush.bf16.msra.mxu0 %v2581
        %2622 = vmatpush.bf16.msra.mxu0 %v2580
        %2623 = vmatmul.bf16.gmra.mxu0 %v2610
        %v2624 = vpop.f32.mrf.mxu0
        %v2625 = vadd.f32 %v2589, %v2624
        %v2626 = vpop.f32.mrf.mxu0
        %v2627 = vadd.f32 %v2594, %v2626
        %2628 = vmatmul.bf16.gmra.mxu0 %v2613
        %v2629 = vpop.f32.mrf.mxu0
        %v2630 = vadd.f32 %v2599, %v2629
        %v2631 = vpop.f32.mrf.mxu0
        %2632 = vdwg.mxu0
        %s2633 = scalar_lea.vmem [#allocation4], 140
        %v2634 = vld [vmem:[%s2633] sm:$0xf]
        %v2635 = vld [vmem:[%s2633 + $0x4] sm:$0xf]
        %v2636 = vld [vmem:[%s2633 + $0x8] sm:$0xf]
        %v2637 = vld [vmem:[%s2633 + $0xc] sm:$0xf]
        %v2638 = vld [vmem:[%s2633 + $0x10] sm:$0xf]
        %v2639 = vpack.c.bf16 %v2627, %v2625
        %v2640 = vpack.c.bf16 %v2630, %v2630
        %s2641 = scalar_lea.vmem [#allocation6], 280
        %v2642 = vld [vmem:[%s2641] sm:$0xff]
        %v2643 = vld [vmem:[%s2641 + $0x8] sm:$0xff]
        %v2644 = vld [vmem:[%s2641 + $0x10] sm:$0xff]
        %v2645 = vld [vmem:[%s2641 + $0x18] sm:$0xff]
        %v2646 = vld [vmem:[%s2641 + $0x20] sm:$0xff]
        %2648 = vset.pattern.permute.xlu0 0
        %2649 = vperm.xlu0 %2648, %v2642
        %v2650 = vpop.permute.xlu0 %2649
        %2653 = vset.pattern.permute.xlu0 0
        %2654 = vperm.xlu0 %2653, %v2643
        %v2655 = vpop.permute.xlu0 %2654
        %2658 = vset.pattern.permute.xlu0 0
        %2659 = vperm.xlu0 %2658, %v2644
        %v2660 = vpop.permute.xlu0 %2659
        %2663 = vset.pattern.permute.xlu0 0
        %2664 = vperm.xlu0 %2663, %v2645
        %v2665 = vpop.permute.xlu0 %2664
        %2668 = vset.pattern.permute.xlu0 0
        %2669 = vperm.xlu0 %2668, %v2646
        %v2670 = vpop.permute.xlu0 %2669
        %v2677 = vunpack.c.l.b16 %v2634
        %v2678 = vunpack.c.l.b16 %v2635
        %v2679 = vunpack.c.l.b16 %v2636
        %v2680 = vunpack.c.l.b16 %v2637
        %v2681 = vunpack.c.l.b16 %v2638
        %v2682 = vpack.c.b16 %v2678, %v2677
        %v2683 = vpack.c.b16 %v2680, %v2679
        %v2684 = vpack.c.b16 %v2681, %v2681
        %vm2685 = vcmask 162816
        %v2687 = vsel %vm2685, %v2682, 0
        %v2690 = vsel %vm2685, %v2683, 0
        %v2693 = vsel %vm2685, %v2684, 0
        %v2696 = vsel %vm660, %v2640, 0
        %2698 = vmatpush.bf16.msra.mxu0 0
        %2699 = vmatpush.bf16.msra.mxu0 0
        %2700 = vmatpush.bf16.msra.mxu0 0
        %2701 = vmatpush.bf16.msra.mxu0 0
        %2702 = vmatpush.bf16.msra.mxu0 0
        %2703 = vmatpush.bf16.msra.mxu0 0
        %2704 = vmatpush.bf16.msra.mxu0 %v2696
        %2705 = vmatpush.bf16.msra.mxu0 %v2639
        %2706 = vmatmul.bf16.gmra.mxu0 %v2687
        %v2707 = vpop.f32.mrf.mxu0
        %v2708 = vadd.f32 %v2650, %v2707
        %v2709 = vpop.f32.mrf.mxu0
        %v2710 = vadd.f32 %v2655, %v2709
        %2711 = vmatmul.bf16.gmra.mxu0 %v2690
        %v2712 = vpop.f32.mrf.mxu0
        %v2713 = vadd.f32 %v2660, %v2712
        %v2714 = vpop.f32.mrf.mxu0
        %v2715 = vadd.f32 %v2665, %v2714
        %2716 = vmatmul.bf16.gmra.mxu0 %v2693
        %v2717 = vpop.f32.mrf.mxu0
        %v2718 = vadd.f32 %v2670, %v2717
        %v2719 = vpop.f32.mrf.mxu0
        %2720 = vdwg.mxu0
        %v2721 = vmax.f32 %v2708, 0.0
        %v2722 = vmax.f32 %v2710, 0.0
        %v2723 = vmax.f32 %v2713, 0.0
        %v2724 = vmax.f32 %v2715, 0.0
        %v2725 = vmax.f32 %v2718, 0.0
        %v2726 = vld [vmem:[#allocation13 + $0x360] sm:$0xf]
        %v2727 = vld [vmem:[#allocation13 + $0x36c] sm:$0xf]
        %v2728 = vpack.c.bf16 %v2722, %v2721
        %v2729 = vpack.c.bf16 %v2724, %v2723
        %v2730 = vpack.c.bf16 %v2725, %v2725
        %v2733 = vunpack.c.l.b16 %v2726
        %v2734 = vunpack.c.l.b16 %v2727
        %v2735 = vpack.c.b16 %v2734, %v2733
        %v2738 = vsel %vm1492, %v2728, 0
        %v2741 = vsel %vm1492, %v2729, 0
        %v2744 = vsel %vm1492, %v2730, 0
        %2746 = vmatpush.bf16.msra.mxu0 0
        %2747 = vmatpush.bf16.msra.mxu0 0
        %2748 = vmatpush.bf16.msra.mxu0 0
        %2749 = vmatpush.bf16.msra.mxu0 0
        %2750 = vmatpush.bf16.msra.mxu0 0
        %2751 = vmatpush.bf16.msra.mxu0 0
        %2752 = vmatpush.bf16.msra.mxu0 0
        %2753 = vmatpush.bf16.msra.mxu0 %v2735
        %2754 = vmatmul.bf16.gmra.mxu0 %v2738
        %v2755 = vpop.f32.mrf.mxu0
        %v2756 = vadd.f32 0.0, %v2755
        %v2757 = vpop.f32.mrf.mxu0
        %v2758 = vadd.f32 0.0, %v2757
        %2759 = vmatmul.bf16.gmra.mxu0 %v2741
        %v2760 = vpop.f32.mrf.mxu0
        %v2761 = vadd.f32 0.0, %v2760
        %v2762 = vpop.f32.mrf.mxu0
        %v2763 = vadd.f32 0.0, %v2762
        %2764 = vmatmul.bf16.gmra.mxu0 %v2744
        %v2765 = vpop.f32.mrf.mxu0
        %v2766 = vadd.f32 0.0, %v2765
        %v2767 = vpop.f32.mrf.mxu0
        %2768 = vdwg.mxu0
        %s2769 = scalar_lea.vmem [#allocation9], 280
        %v2770 = vld [vmem:[%s2769] sm:$0xff]
        %v2771 = vld [vmem:[%s2769 + $0x8] sm:$0xff]
        %v2772 = vld [vmem:[%s2769 + $0x10] sm:$0xff]
        %v2773 = vld [vmem:[%s2769 + $0x18] sm:$0xff]
        %v2774 = vld [vmem:[%s2769 + $0x20] sm:$0xff]
        %s2775 = scalar_lea.vmem [#allocation7], 840
        %v2776 = vld [vmem:[%s2775] sm:$0xff]
        %v2777 = vld [vmem:[%s2775 + $0x8] sm:$0xff]
        %v2778 = vld [vmem:[%s2775 + $0x10] sm:$0xff]
        %v2779 = vld [vmem:[%s2775 + $0x18] sm:$0xff]
        %v2780 = vld [vmem:[%s2775 + $0x20] sm:$0xff]
        %2782 = vset.pattern.permute.xlu0 0
        %2783 = vperm.xlu0 %2782, %v2776
        %v2784 = vpop.permute.xlu0 %2783
        %2787 = vset.pattern.permute.xlu0 0
        %2788 = vperm.xlu0 %2787, %v2777
        %v2789 = vpop.permute.xlu0 %2788
        %2792 = vset.pattern.permute.xlu0 0
        %2793 = vperm.xlu0 %2792, %v2778
        %v2794 = vpop.permute.xlu0 %2793
        %2797 = vset.pattern.permute.xlu0 0
        %2798 = vperm.xlu0 %2797, %v2779
        %v2799 = vpop.permute.xlu0 %2798
        %2802 = vset.pattern.permute.xlu0 0
        %2803 = vperm.xlu0 %2802, %v2780
        %v2804 = vpop.permute.xlu0 %2803
        %v2806 = vmul.f32 %v2784, %v2756
        %v2807 = vmul.f32 %v2789, %v2758
        %v2808 = vmul.f32 %v2794, %v2761
        %v2809 = vmul.f32 %v2799, %v2763
        %v2810 = vmul.f32 %v2804, %v2766
        %2812 = vset.pattern.permute.xlu0 0
        %2813 = vperm.xlu0 %2812, %v2770
        %v2814 = vpop.permute.xlu0 %2813
        %2817 = vset.pattern.permute.xlu0 0
        %2818 = vperm.xlu0 %2817, %v2771
        %v2819 = vpop.permute.xlu0 %2818
        %2822 = vset.pattern.permute.xlu0 0
        %2823 = vperm.xlu0 %2822, %v2772
        %v2824 = vpop.permute.xlu0 %2823
        %2827 = vset.pattern.permute.xlu0 0
        %2828 = vperm.xlu0 %2827, %v2773
        %v2829 = vpop.permute.xlu0 %2828
        %2832 = vset.pattern.permute.xlu0 0
        %2833 = vperm.xlu0 %2832, %v2774
        %v2834 = vpop.permute.xlu0 %2833
        %v2836 = vadd.f32 %v2814, %v2806
        %v2837 = vadd.f32 %v2819, %v2807
        %v2838 = vadd.f32 %v2824, %v2808
        %v2839 = vadd.f32 %v2829, %v2809
        %v2840 = vadd.f32 %v2834, %v2810
        %s2841 = scalar_lea.vmem [#allocation7], 880
        %v2842 = vld [vmem:[%s2841] sm:$0xff]
        %v2843 = vld [vmem:[%s2841 + $0x8] sm:$0xff]
        %v2844 = vld [vmem:[%s2841 + $0x10] sm:$0xff]
        %v2845 = vld [vmem:[%s2841 + $0x18] sm:$0xff]
        %v2846 = vld [vmem:[%s2841 + $0x20] sm:$0xff]
        %2848 = vset.pattern.permute.xlu0 0
        %2849 = vperm.xlu0 %2848, %v2842
        %v2850 = vpop.permute.xlu0 %2849
        %2853 = vset.pattern.permute.xlu0 0
        %2854 = vperm.xlu0 %2853, %v2843
        %v2855 = vpop.permute.xlu0 %2854
        %2858 = vset.pattern.permute.xlu0 0
        %2859 = vperm.xlu0 %2858, %v2844
        %v2860 = vpop.permute.xlu0 %2859
        %2863 = vset.pattern.permute.xlu0 0
        %2864 = vperm.xlu0 %2863, %v2845
        %v2865 = vpop.permute.xlu0 %2864
        %2868 = vset.pattern.permute.xlu0 0
        %2869 = vperm.xlu0 %2868, %v2846
        %v2870 = vpop.permute.xlu0 %2869
        %v2872 = vmul.f32 %v2850, %v2756
        %v2873 = vmul.f32 %v2855, %v2758
        %v2874 = vmul.f32 %v2860, %v2761
        %v2875 = vmul.f32 %v2865, %v2763
        %v2876 = vmul.f32 %v2870, %v2766
        %2882 = vrot.lane.b32.xlu0 %v2872, 120
        %v2883 = vpop.permute.xlu0 %2882
        %2884 = vrot.lane.b32.xlu0 %v2873, 120
        %v2885 = vpop.permute.xlu0 %2884
        %2886 = vrot.lane.b32.xlu0 %v2874, 120
        %v2887 = vpop.permute.xlu0 %2886
        %2888 = vrot.lane.b32.xlu0 %v2875, 120
        %v2889 = vpop.permute.xlu0 %2888
        %2890 = vrot.lane.b32.xlu0 %v2876, 120
        %v2891 = vpop.permute.xlu0 %2890
        %v2897 = vadd.f32 %v2836, %v2883
        %v2898 = vadd.f32 %v2837, %v2885
        %v2899 = vadd.f32 %v2838, %v2887
        %v2900 = vadd.f32 %v2839, %v2889
        %v2901 = vadd.f32 %v2840, %v2891
        %s2902 = scalar_lea.vmem [#allocation7], 920
        %v2903 = vld [vmem:[%s2902] sm:$0xff]
        %v2904 = vld [vmem:[%s2902 + $0x8] sm:$0xff]
        %v2905 = vld [vmem:[%s2902 + $0x10] sm:$0xff]
        %v2906 = vld [vmem:[%s2902 + $0x18] sm:$0xff]
        %v2907 = vld [vmem:[%s2902 + $0x20] sm:$0xff]
        %2909 = vset.pattern.permute.xlu0 0
        %2910 = vperm.xlu0 %2909, %v2903
        %v2911 = vpop.permute.xlu0 %2910
        %2914 = vset.pattern.permute.xlu0 0
        %2915 = vperm.xlu0 %2914, %v2904
        %v2916 = vpop.permute.xlu0 %2915
        %2919 = vset.pattern.permute.xlu0 0
        %2920 = vperm.xlu0 %2919, %v2905
        %v2921 = vpop.permute.xlu0 %2920
        %2924 = vset.pattern.permute.xlu0 0
        %2925 = vperm.xlu0 %2924, %v2906
        %v2926 = vpop.permute.xlu0 %2925
        %2929 = vset.pattern.permute.xlu0 0
        %2930 = vperm.xlu0 %2929, %v2907
        %v2931 = vpop.permute.xlu0 %2930
        %v2933 = vmul.f32 %v2911, %v2756
        %v2934 = vmul.f32 %v2916, %v2758
        %v2935 = vmul.f32 %v2921, %v2761
        %v2936 = vmul.f32 %v2926, %v2763
        %v2937 = vmul.f32 %v2931, %v2766
        %2943 = vrot.lane.b32.xlu0 %v2933, 112
        %v2944 = vpop.permute.xlu0 %2943
        %2945 = vrot.lane.b32.xlu0 %v2934, 112
        %v2946 = vpop.permute.xlu0 %2945
        %2947 = vrot.lane.b32.xlu0 %v2935, 112
        %v2948 = vpop.permute.xlu0 %2947
        %2949 = vrot.lane.b32.xlu0 %v2936, 112
        %v2950 = vpop.permute.xlu0 %2949
        %2951 = vrot.lane.b32.xlu0 %v2937, 112
        %v2952 = vpop.permute.xlu0 %2951
        %v2958 = vadd.f32 %v2897, %v2944
        %v2959 = vadd.f32 %v2898, %v2946
        %v2960 = vadd.f32 %v2899, %v2948
        %v2961 = vadd.f32 %v2900, %v2950
        %v2962 = vadd.f32 %v2901, %v2952
        %v2963 = vmax.f32 %v2958, 0.0
        %v2964 = vmax.f32 %v2959, 0.0
        %v2965 = vmax.f32 %v2960, 0.0
        %v2966 = vmax.f32 %v2961, 0.0
        %v2967 = vmax.f32 %v2962, 0.0
        %s2968 = scalar_lea.vmem [#allocation10], 84
        %v2969 = vld [vmem:[%s2968] sm:$0xf]
        %v2970 = vld [vmem:[%s2968 + $0x4] sm:$0xf]
        %v2971 = vld [vmem:[%s2968 + $0x8] sm:$0x3]
        %v2972 = vpack.c.bf16 %v2964, %v2963
        %v2973 = vpack.c.bf16 %v2966, %v2965
        %v2974 = vpack.c.bf16 %v2967, %v2967
        %s2975 = scalar_lea.vmem [#allocation12], 168
        %v2976 = vld [vmem:[%s2975] sm:$0xff]
        %v2977 = vld [vmem:[%s2975 + $0x8] sm:$0xff]
        %v2978 = vld [vmem:[%s2975 + $0x10] sm:$0xf]
        %2980 = vset.pattern.permute.xlu0 0
        %2981 = vperm.xlu0 %2980, %v2976
        %v2982 = vpop.permute.xlu0 %2981
        %2985 = vset.pattern.permute.xlu0 0
        %2986 = vperm.xlu0 %2985, %v2977
        %v2987 = vpop.permute.xlu0 %2986
        %2990 = vset.pattern.permute.xlu0 0
        %2991 = vperm.xlu0 %2990, %v2978
        %v2992 = vpop.permute.xlu0 %2991
        %v2997 = vunpack.c.l.b16 %v2969
        %v2998 = vunpack.c.l.b16 %v2970
        %v2999 = vunpack.c.l.b16 %v2971
        %v3000 = vpack.c.b16 %v2998, %v2997
        %v3001 = vpack.c.b16 %v2999, %v2999
        %vm3002 = vcmask 326656
        %v3004 = vsel %vm3002, %v3000, 0
        %v3007 = vsel %vm3002, %v3001, 0
        %v3010 = vsel %vm1222, %v2974, 0
        %3012 = vmatpush.bf16.msra.mxu0 0
        %3013 = vmatpush.bf16.msra.mxu0 0
        %3014 = vmatpush.bf16.msra.mxu0 0
        %3015 = vmatpush.bf16.msra.mxu0 0
        %3016 = vmatpush.bf16.msra.mxu0 0
        %3017 = vmatpush.bf16.msra.mxu0 %v3010
        %3018 = vmatpush.bf16.msra.mxu0 %v2973
        %3019 = vmatpush.bf16.msra.mxu0 %v2972
        %3020 = vmatmul.bf16.gmra.mxu0 %v3004
        %v3021 = vpop.f32.mrf.mxu0
        %v3022 = vadd.f32 %v2982, %v3021
        %v3023 = vpop.f32.mrf.mxu0
        %v3024 = vadd.f32 %v2987, %v3023
        %3025 = vmatmul.bf16.gmra.mxu0 %v3007
        %v3026 = vpop.f32.mrf.mxu0
        %v3027 = vadd.f32 %v2992, %v3026
        %v3028 = vpop.f32.mrf.mxu0
        %3029 = vdwg.mxu0
        %s3030 = scalar_lea.vmem [#allocation4], 160
        %v3031 = vld [vmem:[%s3030] sm:$0xf]
        %v3032 = vld [vmem:[%s3030 + $0x4] sm:$0xf]
        %v3033 = vld [vmem:[%s3030 + $0x8] sm:$0xf]
        %v3034 = vld [vmem:[%s3030 + $0xc] sm:$0xf]
        %v3035 = vld [vmem:[%s3030 + $0x10] sm:$0xf]
        %v3036 = vpack.c.bf16 %v3024, %v3022
        %v3037 = vpack.c.bf16 %v3027, %v3027
        %s3038 = scalar_lea.vmem [#allocation6], 320
        %v3039 = vld [vmem:[%s3038] sm:$0xff]
        %v3040 = vld [vmem:[%s3038 + $0x8] sm:$0xff]
        %v3041 = vld [vmem:[%s3038 + $0x10] sm:$0xff]
        %v3042 = vld [vmem:[%s3038 + $0x18] sm:$0xff]
        %v3043 = vld [vmem:[%s3038 + $0x20] sm:$0xff]
        %3045 = vset.pattern.permute.xlu0 0
        %3046 = vperm.xlu0 %3045, %v3039
        %v3047 = vpop.permute.xlu0 %3046
        %3050 = vset.pattern.permute.xlu0 0
        %3051 = vperm.xlu0 %3050, %v3040
        %v3052 = vpop.permute.xlu0 %3051
        %3055 = vset.pattern.permute.xlu0 0
        %3056 = vperm.xlu0 %3055, %v3041
        %v3057 = vpop.permute.xlu0 %3056
        %3060 = vset.pattern.permute.xlu0 0
        %3061 = vperm.xlu0 %3060, %v3042
        %v3062 = vpop.permute.xlu0 %3061
        %3065 = vset.pattern.permute.xlu0 0
        %3066 = vperm.xlu0 %3065, %v3043
        %v3067 = vpop.permute.xlu0 %3066
        %v3074 = vunpack.c.l.b16 %v3031
        %v3075 = vunpack.c.l.b16 %v3032
        %v3076 = vunpack.c.l.b16 %v3033
        %v3077 = vunpack.c.l.b16 %v3034
        %v3078 = vunpack.c.l.b16 %v3035
        %v3079 = vpack.c.b16 %v3075, %v3074
        %v3080 = vpack.c.b16 %v3077, %v3076
        %v3081 = vpack.c.b16 %v3078, %v3078
        %v3083 = vsel %vm2685, %v3079, 0
        %v3086 = vsel %vm2685, %v3080, 0
        %v3089 = vsel %vm2685, %v3081, 0
        %v3092 = vsel %vm660, %v3037, 0
        %3094 = vmatpush.bf16.msra.mxu0 0
        %3095 = vmatpush.bf16.msra.mxu0 0
        %3096 = vmatpush.bf16.msra.mxu0 0
        %3097 = vmatpush.bf16.msra.mxu0 0
        %3098 = vmatpush.bf16.msra.mxu0 0
        %3099 = vmatpush.bf16.msra.mxu0 0
        %3100 = vmatpush.bf16.msra.mxu0 %v3092
        %3101 = vmatpush.bf16.msra.mxu0 %v3036
        %3102 = vmatmul.bf16.gmra.mxu0 %v3083
        %v3103 = vpop.f32.mrf.mxu0
        %v3104 = vadd.f32 %v3047, %v3103
        %v3105 = vpop.f32.mrf.mxu0
        %v3106 = vadd.f32 %v3052, %v3105
        %3107 = vmatmul.bf16.gmra.mxu0 %v3086
        %v3108 = vpop.f32.mrf.mxu0
        %v3109 = vadd.f32 %v3057, %v3108
        %v3110 = vpop.f32.mrf.mxu0
        %v3111 = vadd.f32 %v3062, %v3110
        %3112 = vmatmul.bf16.gmra.mxu0 %v3089
        %v3113 = vpop.f32.mrf.mxu0
        %v3114 = vadd.f32 %v3067, %v3113
        %v3115 = vpop.f32.mrf.mxu0
        %3116 = vdwg.mxu0
        %v3117 = vmax.f32 %v3104, 0.0
        %v3118 = vmax.f32 %v3106, 0.0
        %v3119 = vmax.f32 %v3109, 0.0
        %v3120 = vmax.f32 %v3111, 0.0
        %v3121 = vmax.f32 %v3114, 0.0
        %v3122 = vld [vmem:[#allocation13 + $0x378] sm:$0xf]
        %v3123 = vpack.c.bf16 %v3118, %v3117
        %v3124 = vpack.c.bf16 %v3120, %v3119
        %v3125 = vpack.c.bf16 %v3121, %v3121
        %v3127 = vsel %vm1218, %v3123, 0
        %v3130 = vsel %vm1218, %v3124, 0
        %v3133 = vsel %vm1218, %v3125, 0
        %v3136 = vsel %vm1222, %v3122, 0
        %3138 = vmatpush.bf16.msra.mxu0 0
        %3139 = vmatpush.bf16.msra.mxu0 0
        %3140 = vmatpush.bf16.msra.mxu0 0
        %3141 = vmatpush.bf16.msra.mxu0 0
        %3142 = vmatpush.bf16.msra.mxu0 0
        %3143 = vmatpush.bf16.msra.mxu0 0
        %3144 = vmatpush.bf16.msra.mxu0 0
        %3145 = vmatpush.bf16.msra.mxu0 %v3136
        %3146 = vmatmul.bf16.gmra.mxu0 %v3127
        %v3147 = vpop.f32.mrf.mxu0
        %v3148 = vadd.f32 0.0, %v3147
        %v3149 = vpop.f32.mrf.mxu0
        %v3150 = vadd.f32 0.0, %v3149
        %3151 = vmatmul.bf16.gmra.mxu0 %v3130
        %v3152 = vpop.f32.mrf.mxu0
        %v3153 = vadd.f32 0.0, %v3152
        %v3154 = vpop.f32.mrf.mxu0
        %v3155 = vadd.f32 0.0, %v3154
        %3156 = vmatmul.bf16.gmra.mxu0 %v3133
        %v3157 = vpop.f32.mrf.mxu0
        %v3158 = vadd.f32 0.0, %v3157
        %v3159 = vpop.f32.mrf.mxu0
        %3160 = vdwg.mxu0
        %s3161 = scalar_lea.vmem [#allocation9], 320
        %v3162 = vld [vmem:[%s3161] sm:$0xff]
        %v3163 = vld [vmem:[%s3161 + $0x8] sm:$0xff]
        %v3164 = vld [vmem:[%s3161 + $0x10] sm:$0xff]
        %v3165 = vld [vmem:[%s3161 + $0x18] sm:$0xff]
        %v3166 = vld [vmem:[%s3161 + $0x20] sm:$0xff]
        %s3167 = scalar_lea.vmem [#allocation7], 960
        %v3168 = vld [vmem:[%s3167] sm:$0xff]
        %v3169 = vld [vmem:[%s3167 + $0x8] sm:$0xff]
        %v3170 = vld [vmem:[%s3167 + $0x10] sm:$0xff]
        %v3171 = vld [vmem:[%s3167 + $0x18] sm:$0xff]
        %v3172 = vld [vmem:[%s3167 + $0x20] sm:$0xff]
        %3174 = vset.pattern.permute.xlu0 0
        %3175 = vperm.xlu0 %3174, %v3168
        %v3176 = vpop.permute.xlu0 %3175
        %3179 = vset.pattern.permute.xlu0 0
        %3180 = vperm.xlu0 %3179, %v3169
        %v3181 = vpop.permute.xlu0 %3180
        %3184 = vset.pattern.permute.xlu0 0
        %3185 = vperm.xlu0 %3184, %v3170
        %v3186 = vpop.permute.xlu0 %3185
        %3189 = vset.pattern.permute.xlu0 0
        %3190 = vperm.xlu0 %3189, %v3171
        %v3191 = vpop.permute.xlu0 %3190
        %3194 = vset.pattern.permute.xlu0 0
        %3195 = vperm.xlu0 %3194, %v3172
        %v3196 = vpop.permute.xlu0 %3195
        %v3198 = vmul.f32 %v3176, %v3148
        %v3199 = vmul.f32 %v3181, %v3150
        %v3200 = vmul.f32 %v3186, %v3153
        %v3201 = vmul.f32 %v3191, %v3155
        %v3202 = vmul.f32 %v3196, %v3158
        %3204 = vset.pattern.permute.xlu0 0
        %3205 = vperm.xlu0 %3204, %v3162
        %v3206 = vpop.permute.xlu0 %3205
        %3209 = vset.pattern.permute.xlu0 0
        %3210 = vperm.xlu0 %3209, %v3163
        %v3211 = vpop.permute.xlu0 %3210
        %3214 = vset.pattern.permute.xlu0 0
        %3215 = vperm.xlu0 %3214, %v3164
        %v3216 = vpop.permute.xlu0 %3215
        %3219 = vset.pattern.permute.xlu0 0
        %3220 = vperm.xlu0 %3219, %v3165
        %v3221 = vpop.permute.xlu0 %3220
        %3224 = vset.pattern.permute.xlu0 0
        %3225 = vperm.xlu0 %3224, %v3166
        %v3226 = vpop.permute.xlu0 %3225
        %v3228 = vadd.f32 %v3206, %v3198
        %v3229 = vadd.f32 %v3211, %v3199
        %v3230 = vadd.f32 %v3216, %v3200
        %v3231 = vadd.f32 %v3221, %v3201
        %v3232 = vadd.f32 %v3226, %v3202
        %s3233 = scalar_lea.vmem [#allocation7], 1000
        %v3234 = vld [vmem:[%s3233] sm:$0xff]
        %v3235 = vld [vmem:[%s3233 + $0x8] sm:$0xff]
        %v3236 = vld [vmem:[%s3233 + $0x10] sm:$0xff]
        %v3237 = vld [vmem:[%s3233 + $0x18] sm:$0xff]
        %v3238 = vld [vmem:[%s3233 + $0x20] sm:$0xff]
        %3240 = vset.pattern.permute.xlu0 0
        %3241 = vperm.xlu0 %3240, %v3234
        %v3242 = vpop.permute.xlu0 %3241
        %3245 = vset.pattern.permute.xlu0 0
        %3246 = vperm.xlu0 %3245, %v3235
        %v3247 = vpop.permute.xlu0 %3246
        %3250 = vset.pattern.permute.xlu0 0
        %3251 = vperm.xlu0 %3250, %v3236
        %v3252 = vpop.permute.xlu0 %3251
        %3255 = vset.pattern.permute.xlu0 0
        %3256 = vperm.xlu0 %3255, %v3237
        %v3257 = vpop.permute.xlu0 %3256
        %3260 = vset.pattern.permute.xlu0 0
        %3261 = vperm.xlu0 %3260, %v3238
        %v3262 = vpop.permute.xlu0 %3261
        %v3264 = vmul.f32 %v3242, %v3148
        %v3265 = vmul.f32 %v3247, %v3150
        %v3266 = vmul.f32 %v3252, %v3153
        %v3267 = vmul.f32 %v3257, %v3155
        %v3268 = vmul.f32 %v3262, %v3158
        %3274 = vrot.lane.b32.xlu0 %v3264, 124
        %v3275 = vpop.permute.xlu0 %3274
        %3276 = vrot.lane.b32.xlu0 %v3265, 124
        %v3277 = vpop.permute.xlu0 %3276
        %3278 = vrot.lane.b32.xlu0 %v3266, 124
        %v3279 = vpop.permute.xlu0 %3278
        %3280 = vrot.lane.b32.xlu0 %v3267, 124
        %v3281 = vpop.permute.xlu0 %3280
        %3282 = vrot.lane.b32.xlu0 %v3268, 124
        %v3283 = vpop.permute.xlu0 %3282
        %v3289 = vadd.f32 %v3228, %v3275
        %v3290 = vadd.f32 %v3229, %v3277
        %v3291 = vadd.f32 %v3230, %v3279
        %v3292 = vadd.f32 %v3231, %v3281
        %v3293 = vadd.f32 %v3232, %v3283
        %s3294 = scalar_lea.vmem [#allocation7], 1040
        %v3295 = vld [vmem:[%s3294] sm:$0xff]
        %v3296 = vld [vmem:[%s3294 + $0x8] sm:$0xff]
        %v3297 = vld [vmem:[%s3294 + $0x10] sm:$0xff]
        %v3298 = vld [vmem:[%s3294 + $0x18] sm:$0xff]
        %v3299 = vld [vmem:[%s3294 + $0x20] sm:$0xff]
        %3301 = vset.pattern.permute.xlu0 0
        %3302 = vperm.xlu0 %3301, %v3295
        %v3303 = vpop.permute.xlu0 %3302
        %3306 = vset.pattern.permute.xlu0 0
        %3307 = vperm.xlu0 %3306, %v3296
        %v3308 = vpop.permute.xlu0 %3307
        %3311 = vset.pattern.permute.xlu0 0
        %3312 = vperm.xlu0 %3311, %v3297
        %v3313 = vpop.permute.xlu0 %3312
        %3316 = vset.pattern.permute.xlu0 0
        %3317 = vperm.xlu0 %3316, %v3298
        %v3318 = vpop.permute.xlu0 %3317
        %3321 = vset.pattern.permute.xlu0 0
        %3322 = vperm.xlu0 %3321, %v3299
        %v3323 = vpop.permute.xlu0 %3322
        %v3325 = vmul.f32 %v3303, %v3148
        %v3326 = vmul.f32 %v3308, %v3150
        %v3327 = vmul.f32 %v3313, %v3153
        %v3328 = vmul.f32 %v3318, %v3155
        %v3329 = vmul.f32 %v3323, %v3158
        %3335 = vrot.lane.b32.xlu0 %v3325, 120
        %v3336 = vpop.permute.xlu0 %3335
        %3337 = vrot.lane.b32.xlu0 %v3326, 120
        %v3338 = vpop.permute.xlu0 %3337
        %3339 = vrot.lane.b32.xlu0 %v3327, 120
        %v3340 = vpop.permute.xlu0 %3339
        %3341 = vrot.lane.b32.xlu0 %v3328, 120
        %v3342 = vpop.permute.xlu0 %3341
        %3343 = vrot.lane.b32.xlu0 %v3329, 120
        %v3344 = vpop.permute.xlu0 %3343
        %v3350 = vadd.f32 %v3289, %v3336
        %v3351 = vadd.f32 %v3290, %v3338
        %v3352 = vadd.f32 %v3291, %v3340
        %v3353 = vadd.f32 %v3292, %v3342
        %v3354 = vadd.f32 %v3293, %v3344
        %v3355 = vmax.f32 %v3350, 0.0
        %v3356 = vmax.f32 %v3351, 0.0
        %v3357 = vmax.f32 %v3352, 0.0
        %v3358 = vmax.f32 %v3353, 0.0
        %v3359 = vmax.f32 %v3354, 0.0
        %s3360 = scalar_lea.vmem [#allocation10], 96
        %v3361 = vld [vmem:[%s3360] sm:$0xf]
        %v3362 = vld [vmem:[%s3360 + $0x4] sm:$0xf]
        %v3363 = vld [vmem:[%s3360 + $0x8] sm:$0x3]
        %v3364 = vpack.c.bf16 %v3356, %v3355
        %v3365 = vpack.c.bf16 %v3358, %v3357
        %v3366 = vpack.c.bf16 %v3359, %v3359
        %s3367 = scalar_lea.vmem [#allocation12], 192
        %v3368 = vld [vmem:[%s3367] sm:$0xff]
        %v3369 = vld [vmem:[%s3367 + $0x8] sm:$0xff]
        %v3370 = vld [vmem:[%s3367 + $0x10] sm:$0xf]
        %3372 = vset.pattern.permute.xlu0 0
        %3373 = vperm.xlu0 %3372, %v3368
        %v3374 = vpop.permute.xlu0 %3373
        %3377 = vset.pattern.permute.xlu0 0
        %3378 = vperm.xlu0 %3377, %v3369
        %v3379 = vpop.permute.xlu0 %3378
        %3382 = vset.pattern.permute.xlu0 0
        %3383 = vperm.xlu0 %3382, %v3370
        %v3384 = vpop.permute.xlu0 %3383
        %v3389 = vunpack.c.l.b16 %v3361
        %v3390 = vunpack.c.l.b16 %v3362
        %v3391 = vunpack.c.l.b16 %v3363
        %v3392 = vpack.c.b16 %v3390, %v3389
        %v3393 = vpack.c.b16 %v3391, %v3391
        %v3395 = vsel %vm3002, %v3392, 0
        %v3398 = vsel %vm3002, %v3393, 0
        %v3401 = vsel %vm1222, %v3366, 0
        %3403 = vmatpush.bf16.msra.mxu0 0
        %3404 = vmatpush.bf16.msra.mxu0 0
        %3405 = vmatpush.bf16.msra.mxu0 0
        %3406 = vmatpush.bf16.msra.mxu0 0
        %3407 = vmatpush.bf16.msra.mxu0 0
        %3408 = vmatpush.bf16.msra.mxu0 %v3401
        %3409 = vmatpush.bf16.msra.mxu0 %v3365
        %3410 = vmatpush.bf16.msra.mxu0 %v3364
        %3411 = vmatmul.bf16.gmra.mxu0 %v3395
        %v3412 = vpop.f32.mrf.mxu0
        %v3413 = vadd.f32 %v3374, %v3412
        %v3414 = vpop.f32.mrf.mxu0
        %v3415 = vadd.f32 %v3379, %v3414
        %3416 = vmatmul.bf16.gmra.mxu0 %v3398
        %v3417 = vpop.f32.mrf.mxu0
        %v3418 = vadd.f32 %v3384, %v3417
        %v3419 = vpop.f32.mrf.mxu0
        %3420 = vdwg.mxu0
        %s3421 = scalar_lea.vmem [#allocation4], 180
        %v3422 = vld [vmem:[%s3421] sm:$0xf]
        %v3423 = vld [vmem:[%s3421 + $0x4] sm:$0xf]
        %v3424 = vld [vmem:[%s3421 + $0x8] sm:$0xf]
        %v3425 = vld [vmem:[%s3421 + $0xc] sm:$0xf]
        %v3426 = vld [vmem:[%s3421 + $0x10] sm:$0xf]
        %v3427 = vpack.c.bf16 %v3415, %v3413
        %v3428 = vpack.c.bf16 %v3418, %v3418
        %s3429 = scalar_lea.vmem [#allocation6], 360
        %v3430 = vld [vmem:[%s3429] sm:$0xff]
        %v3431 = vld [vmem:[%s3429 + $0x8] sm:$0xff]
        %v3432 = vld [vmem:[%s3429 + $0x10] sm:$0xff]
        %v3433 = vld [vmem:[%s3429 + $0x18] sm:$0xff]
        %v3434 = vld [vmem:[%s3429 + $0x20] sm:$0xff]
        %3436 = vset.pattern.permute.xlu0 0
        %3437 = vperm.xlu0 %3436, %v3430
        %v3438 = vpop.permute.xlu0 %3437
        %3441 = vset.pattern.permute.xlu0 0
        %3442 = vperm.xlu0 %3441, %v3431
        %v3443 = vpop.permute.xlu0 %3442
        %3446 = vset.pattern.permute.xlu0 0
        %3447 = vperm.xlu0 %3446, %v3432
        %v3448 = vpop.permute.xlu0 %3447
        %3451 = vset.pattern.permute.xlu0 0
        %3452 = vperm.xlu0 %3451, %v3433
        %v3453 = vpop.permute.xlu0 %3452
        %3456 = vset.pattern.permute.xlu0 0
        %3457 = vperm.xlu0 %3456, %v3434
        %v3458 = vpop.permute.xlu0 %3457
        %v3465 = vunpack.c.l.b16 %v3422
        %v3466 = vunpack.c.l.b16 %v3423
        %v3467 = vunpack.c.l.b16 %v3424
        %v3468 = vunpack.c.l.b16 %v3425
        %v3469 = vunpack.c.l.b16 %v3426
        %v3470 = vpack.c.b16 %v3466, %v3465
        %v3471 = vpack.c.b16 %v3468, %v3467
        %v3472 = vpack.c.b16 %v3469, %v3469
        %v3474 = vsel %vm2685, %v3470, 0
        %v3477 = vsel %vm2685, %v3471, 0
        %v3480 = vsel %vm2685, %v3472, 0
        %v3483 = vsel %vm660, %v3428, 0
        %3485 = vmatpush.bf16.msra.mxu0 0
        %3486 = vmatpush.bf16.msra.mxu0 0
        %3487 = vmatpush.bf16.msra.mxu0 0
        %3488 = vmatpush.bf16.msra.mxu0 0
        %3489 = vmatpush.bf16.msra.mxu0 0
        %3490 = vmatpush.bf16.msra.mxu0 0
        %3491 = vmatpush.bf16.msra.mxu0 %v3483
        %3492 = vmatpush.bf16.msra.mxu0 %v3427
        %3493 = vmatmul.bf16.gmra.mxu0 %v3474
        %v3494 = vpop.f32.mrf.mxu0
        %v3495 = vadd.f32 %v3438, %v3494
        %v3496 = vpop.f32.mrf.mxu0
        %v3497 = vadd.f32 %v3443, %v3496
        %3498 = vmatmul.bf16.gmra.mxu0 %v3477
        %v3499 = vpop.f32.mrf.mxu0
        %v3500 = vadd.f32 %v3448, %v3499
        %v3501 = vpop.f32.mrf.mxu0
        %v3502 = vadd.f32 %v3453, %v3501
        %3503 = vmatmul.bf16.gmra.mxu0 %v3480
        %v3504 = vpop.f32.mrf.mxu0
        %v3505 = vadd.f32 %v3458, %v3504
        %v3506 = vpop.f32.mrf.mxu0
        %3507 = vdwg.mxu0
        %v3508 = vmax.f32 %v3495, 0.0
        %v3509 = vmax.f32 %v3497, 0.0
        %v3510 = vmax.f32 %v3500, 0.0
        %v3511 = vmax.f32 %v3502, 0.0
        %v3512 = vmax.f32 %v3505, 0.0
        %v3513 = vld [vmem:[#allocation13 + $0x390] sm:$0x3]
        %v3514 = vpack.c.bf16 %v3509, %v3508
        %v3515 = vpack.c.bf16 %v3511, %v3510
        %v3516 = vpack.c.bf16 %v3512, %v3512
        %v3518 = vsel %vm952, %v3514, 0
        %v3521 = vsel %vm952, %v3515, 0
        %v3524 = vsel %vm952, %v3516, 0
        %v3527 = vsel %vm660, %v3513, 0
        %3529 = vmatpush.bf16.msra.mxu0 0
        %3530 = vmatpush.bf16.msra.mxu0 0
        %3531 = vmatpush.bf16.msra.mxu0 0
        %3532 = vmatpush.bf16.msra.mxu0 0
        %3533 = vmatpush.bf16.msra.mxu0 0
        %3534 = vmatpush.bf16.msra.mxu0 0
        %3535 = vmatpush.bf16.msra.mxu0 0
        %3536 = vmatpush.bf16.msra.mxu0 %v3527
        %3537 = vmatmul.bf16.gmra.mxu0 %v3518
        %v3538 = vpop.f32.mrf.mxu0
        %v3539 = vadd.f32 0.0, %v3538
        %v3540 = vpop.f32.mrf.mxu0
        %v3541 = vadd.f32 0.0, %v3540
        %3542 = vmatmul.bf16.gmra.mxu0 %v3521
        %v3543 = vpop.f32.mrf.mxu0
        %v3544 = vadd.f32 0.0, %v3543
        %v3545 = vpop.f32.mrf.mxu0
        %v3546 = vadd.f32 0.0, %v3545
        %3547 = vmatmul.bf16.gmra.mxu0 %v3524
        %v3548 = vpop.f32.mrf.mxu0
        %v3549 = vadd.f32 0.0, %v3548
        %v3550 = vpop.f32.mrf.mxu0
        %3551 = vdwg.mxu0
        %s3552 = scalar_lea.vmem [#allocation9], 360
        %v3553 = vld [vmem:[%s3552] sm:$0xff]
        %v3554 = vld [vmem:[%s3552 + $0x8] sm:$0xff]
        %v3555 = vld [vmem:[%s3552 + $0x10] sm:$0xff]
        %v3556 = vld [vmem:[%s3552 + $0x18] sm:$0xff]
        %v3557 = vld [vmem:[%s3552 + $0x20] sm:$0xff]
        %s3558 = scalar_lea.vmem [#allocation7], 1080
        %v3559 = vld [vmem:[%s3558] sm:$0xff]
        %v3560 = vld [vmem:[%s3558 + $0x8] sm:$0xff]
        %v3561 = vld [vmem:[%s3558 + $0x10] sm:$0xff]
        %v3562 = vld [vmem:[%s3558 + $0x18] sm:$0xff]
        %v3563 = vld [vmem:[%s3558 + $0x20] sm:$0xff]
        %3565 = vset.pattern.permute.xlu0 0
        %3566 = vperm.xlu0 %3565, %v3559
        %v3567 = vpop.permute.xlu0 %3566
        %3570 = vset.pattern.permute.xlu0 0
        %3571 = vperm.xlu0 %3570, %v3560
        %v3572 = vpop.permute.xlu0 %3571
        %3575 = vset.pattern.permute.xlu0 0
        %3576 = vperm.xlu0 %3575, %v3561
        %v3577 = vpop.permute.xlu0 %3576
        %3580 = vset.pattern.permute.xlu0 0
        %3581 = vperm.xlu0 %3580, %v3562
        %v3582 = vpop.permute.xlu0 %3581
        %3585 = vset.pattern.permute.xlu0 0
        %3586 = vperm.xlu0 %3585, %v3563
        %v3587 = vpop.permute.xlu0 %3586
        %v3589 = vmul.f32 %v3567, %v3539
        %v3590 = vmul.f32 %v3572, %v3541
        %v3591 = vmul.f32 %v3577, %v3544
        %v3592 = vmul.f32 %v3582, %v3546
        %v3593 = vmul.f32 %v3587, %v3549
        %3595 = vset.pattern.permute.xlu0 0
        %3596 = vperm.xlu0 %3595, %v3553
        %v3597 = vpop.permute.xlu0 %3596
        %3600 = vset.pattern.permute.xlu0 0
        %3601 = vperm.xlu0 %3600, %v3554
        %v3602 = vpop.permute.xlu0 %3601
        %3605 = vset.pattern.permute.xlu0 0
        %3606 = vperm.xlu0 %3605, %v3555
        %v3607 = vpop.permute.xlu0 %3606
        %3610 = vset.pattern.permute.xlu0 0
        %3611 = vperm.xlu0 %3610, %v3556
        %v3612 = vpop.permute.xlu0 %3611
        %3615 = vset.pattern.permute.xlu0 0
        %3616 = vperm.xlu0 %3615, %v3557
        %v3617 = vpop.permute.xlu0 %3616
        %v3619 = vadd.f32 %v3597, %v3589
        %v3620 = vadd.f32 %v3602, %v3590
        %v3621 = vadd.f32 %v3607, %v3591
        %v3622 = vadd.f32 %v3612, %v3592
        %v3623 = vadd.f32 %v3617, %v3593
        %s3624 = scalar_lea.vmem [#allocation7], 1120
        %v3625 = vld [vmem:[%s3624] sm:$0xff]
        %v3626 = vld [vmem:[%s3624 + $0x8] sm:$0xff]
        %v3627 = vld [vmem:[%s3624 + $0x10] sm:$0xff]
        %v3628 = vld [vmem:[%s3624 + $0x18] sm:$0xff]
        %v3629 = vld [vmem:[%s3624 + $0x20] sm:$0xff]
        %3631 = vset.pattern.permute.xlu0 0
        %3632 = vperm.xlu0 %3631, %v3625
        %v3633 = vpop.permute.xlu0 %3632
        %3636 = vset.pattern.permute.xlu0 0
        %3637 = vperm.xlu0 %3636, %v3626
        %v3638 = vpop.permute.xlu0 %3637
        %3641 = vset.pattern.permute.xlu0 0
        %3642 = vperm.xlu0 %3641, %v3627
        %v3643 = vpop.permute.xlu0 %3642
        %3646 = vset.pattern.permute.xlu0 0
        %3647 = vperm.xlu0 %3646, %v3628
        %v3648 = vpop.permute.xlu0 %3647
        %3651 = vset.pattern.permute.xlu0 0
        %3652 = vperm.xlu0 %3651, %v3629
        %v3653 = vpop.permute.xlu0 %3652
        %v3655 = vmul.f32 %v3633, %v3539
        %v3656 = vmul.f32 %v3638, %v3541
        %v3657 = vmul.f32 %v3643, %v3544
        %v3658 = vmul.f32 %v3648, %v3546
        %v3659 = vmul.f32 %v3653, %v3549
        %3665 = vrot.lane.b32.xlu0 %v3655, 126
        %v3666 = vpop.permute.xlu0 %3665
        %3667 = vrot.lane.b32.xlu0 %v3656, 126
        %v3668 = vpop.permute.xlu0 %3667
        %3669 = vrot.lane.b32.xlu0 %v3657, 126
        %v3670 = vpop.permute.xlu0 %3669
        %3671 = vrot.lane.b32.xlu0 %v3658, 126
        %v3672 = vpop.permute.xlu0 %3671
        %3673 = vrot.lane.b32.xlu0 %v3659, 126
        %v3674 = vpop.permute.xlu0 %3673
        %v3680 = vadd.f32 %v3619, %v3666
        %v3681 = vadd.f32 %v3620, %v3668
        %v3682 = vadd.f32 %v3621, %v3670
        %v3683 = vadd.f32 %v3622, %v3672
        %v3684 = vadd.f32 %v3623, %v3674
        %s3685 = scalar_lea.vmem [#allocation7], 1160
        %v3686 = vld [vmem:[%s3685] sm:$0xff]
        %v3687 = vld [vmem:[%s3685 + $0x8] sm:$0xff]
        %v3688 = vld [vmem:[%s3685 + $0x10] sm:$0xff]
        %v3689 = vld [vmem:[%s3685 + $0x18] sm:$0xff]
        %v3690 = vld [vmem:[%s3685 + $0x20] sm:$0xff]
        %3692 = vset.pattern.permute.xlu0 0
        %3693 = vperm.xlu0 %3692, %v3686
        %v3694 = vpop.permute.xlu0 %3693
        %3697 = vset.pattern.permute.xlu0 0
        %3698 = vperm.xlu0 %3697, %v3687
        %v3699 = vpop.permute.xlu0 %3698
        %3702 = vset.pattern.permute.xlu0 0
        %3703 = vperm.xlu0 %3702, %v3688
        %v3704 = vpop.permute.xlu0 %3703
        %3707 = vset.pattern.permute.xlu0 0
        %3708 = vperm.xlu0 %3707, %v3689
        %v3709 = vpop.permute.xlu0 %3708
        %3712 = vset.pattern.permute.xlu0 0
        %3713 = vperm.xlu0 %3712, %v3690
        %v3714 = vpop.permute.xlu0 %3713
        %v3716 = vmul.f32 %v3694, %v3539
        %v3717 = vmul.f32 %v3699, %v3541
        %v3718 = vmul.f32 %v3704, %v3544
        %v3719 = vmul.f32 %v3709, %v3546
        %v3720 = vmul.f32 %v3714, %v3549
        %3726 = vrot.lane.b32.xlu0 %v3716, 124
        %v3727 = vpop.permute.xlu0 %3726
        %3728 = vrot.lane.b32.xlu0 %v3717, 124
        %v3729 = vpop.permute.xlu0 %3728
        %3730 = vrot.lane.b32.xlu0 %v3718, 124
        %v3731 = vpop.permute.xlu0 %3730
        %3732 = vrot.lane.b32.xlu0 %v3719, 124
        %v3733 = vpop.permute.xlu0 %3732
        %3734 = vrot.lane.b32.xlu0 %v3720, 124
        %v3735 = vpop.permute.xlu0 %3734
        %v3741 = vadd.f32 %v3680, %v3727
        %v3742 = vadd.f32 %v3681, %v3729
        %v3743 = vadd.f32 %v3682, %v3731
        %v3744 = vadd.f32 %v3683, %v3733
        %v3745 = vadd.f32 %v3684, %v3735
        %v3746 = vmax.f32 %v3741, 0.0
        %v3747 = vmax.f32 %v3742, 0.0
        %v3748 = vmax.f32 %v3743, 0.0
        %v3749 = vmax.f32 %v3744, 0.0
        %v3750 = vmax.f32 %v3745, 0.0
        %s3751 = scalar_lea.vmem [#allocation10], 108
        %v3752 = vld [vmem:[%s3751] sm:$0xf]
        %v3753 = vld [vmem:[%s3751 + $0x4] sm:$0xf]
        %v3754 = vld [vmem:[%s3751 + $0x8] sm:$0x3]
        %v3755 = vpack.c.bf16 %v3747, %v3746
        %v3756 = vpack.c.bf16 %v3749, %v3748
        %v3757 = vpack.c.bf16 %v3750, %v3750
        %s3758 = scalar_lea.vmem [#allocation12], 216
        %v3759 = vld [vmem:[%s3758] sm:$0xff]
        %v3760 = vld [vmem:[%s3758 + $0x8] sm:$0xff]
        %v3761 = vld [vmem:[%s3758 + $0x10] sm:$0xf]
        %3763 = vset.pattern.permute.xlu0 0
        %3764 = vperm.xlu0 %3763, %v3759
        %v3765 = vpop.permute.xlu0 %3764
        %3768 = vset.pattern.permute.xlu0 0
        %3769 = vperm.xlu0 %3768, %v3760
        %v3770 = vpop.permute.xlu0 %3769
        %3773 = vset.pattern.permute.xlu0 0
        %3774 = vperm.xlu0 %3773, %v3761
        %v3775 = vpop.permute.xlu0 %3774
        %v3780 = vunpack.c.l.b16 %v3752
        %v3781 = vunpack.c.l.b16 %v3753
        %v3782 = vunpack.c.l.b16 %v3754
        %v3783 = vpack.c.b16 %v3781, %v3780
        %v3784 = vpack.c.b16 %v3782, %v3782
        %v3786 = vsel %vm3002, %v3783, 0
        %v3789 = vsel %vm3002, %v3784, 0
        %v3792 = vsel %vm1222, %v3757, 0
        %3794 = vmatpush.bf16.msra.mxu0 0
        %3795 = vmatpush.bf16.msra.mxu0 0
        %3796 = vmatpush.bf16.msra.mxu0 0
        %3797 = vmatpush.bf16.msra.mxu0 0
        %3798 = vmatpush.bf16.msra.mxu0 0
        %3799 = vmatpush.bf16.msra.mxu0 %v3792
        %3800 = vmatpush.bf16.msra.mxu0 %v3756
        %3801 = vmatpush.bf16.msra.mxu0 %v3755
        %3802 = vmatmul.bf16.gmra.mxu0 %v3786
        %v3803 = vpop.f32.mrf.mxu0
        %v3804 = vadd.f32 %v3765, %v3803
        %v3805 = vpop.f32.mrf.mxu0
        %v3806 = vadd.f32 %v3770, %v3805
        %3807 = vmatmul.bf16.gmra.mxu0 %v3789
        %v3808 = vpop.f32.mrf.mxu0
        %v3809 = vadd.f32 %v3775, %v3808
        %v3810 = vpop.f32.mrf.mxu0
        %3811 = vdwg.mxu0
        %v3812 = vld [vmem:[#allocation15] sm:$0x3]
        %vm3813 = vcmask 15360
        %v3815 = vsel %vm3813, %v3804, 0
        %v3818 = vsel %vm3813, %v3806, 0
        %v3821 = vsel %vm3813, %v3809, 0
        %v3824 = vsel %vm660, %v3812, 0
        %3826 = vmatpush.msra.mxu0 0.0
        %3827 = vmatpush.msra.mxu0 0.0
        %3828 = vmatpush.msra.mxu0 0.0
        %3829 = vmatpush.msra.mxu0 0.0
        %3830 = vmatpush.msra.mxu0 0.0
        %3831 = vmatpush.msra.mxu0 0.0
        %3832 = vmatpush.msra.mxu0 0.0
        %3833 = vmatpush.msra.mxu0 0.0
        %3834 = vmatpush.msra.mxu0 0.0
        %3835 = vmatpush.msra.mxu0 0.0
        %3836 = vmatpush.msra.mxu0 0.0
        %3837 = vmatpush.msra.mxu0 0.0
        %3838 = vmatpush.msra.mxu0 0.0
        %3839 = vmatpush.msra.mxu0 0.0
        %3840 = vmatpush.msra.mxu0 0.0
        %3841 = vmatpush.msra.mxu0 %v3824
        %3842 = vmatmul.f32.gmra.mxu0 %v3815
        %v3843 = vpop.f32.mrf.mxu0
        %v3844 = vadd.f32 0.0, %v3843
        %3845 = vmatmul.f32.gmra.mxu0 %v3818
        %v3846 = vpop.f32.mrf.mxu0
        %v3847 = vadd.f32 0.0, %v3846
        %3848 = vmatmul.f32.gmra.mxu0 %v3821
        %v3849 = vpop.f32.mrf.mxu0
        %v3850 = vadd.f32 0.0, %v3849
        %3851 = vdwg.mxu0
        %v3852 = vld [vmem:[#allocation18] sm:$0xff]
        %v3853 = vld [vmem:[#allocation18 + $0x8] sm:$0xff]
        %v3854 = vld [vmem:[#allocation18 + $0x10] sm:$0xf]
        %v3855 = vld [vmem:[#allocation16] sm:$0xff]
        %v3856 = vld [vmem:[#allocation16 + $0x8] sm:$0xff]
        %v3857 = vld [vmem:[#allocation16 + $0x10] sm:$0xf]
        %v3859 = vsel %vm2685, %v3855, 0
        %v3862 = vsel %vm2685, %v3856, 0
        %v3865 = vsel %vm2685, %v3857, 0
        %v3868 = vsel %vm1222, %v3850, 0
        %3870 = vmatpush.msra.mxu0 0.0
        %3871 = vmatpush.msra.mxu0 0.0
        %3872 = vmatpush.msra.mxu0 0.0
        %3873 = vmatpush.msra.mxu0 0.0
        %3874 = vmatpush.msra.mxu0 0.0
        %3875 = vmatpush.msra.mxu0 0.0
        %3876 = vmatpush.msra.mxu0 0.0
        %3877 = vmatpush.msra.mxu0 0.0
        %3878 = vmatpush.msra.mxu0 0.0
        %3879 = vmatpush.msra.mxu0 0.0
        %3880 = vmatpush.msra.mxu0 0.0
        %3881 = vmatpush.msra.mxu0 0.0
        %3882 = vmatpush.msra.mxu0 0.0
        %3883 = vmatpush.msra.mxu0 %v3868
        %3884 = vmatpush.msra.mxu0 %v3847
        %3885 = vmatpush.msra.mxu0 %v3844
        %3886 = vmatmul.f32.gmra.mxu0 %v3859
        %v3887 = vpop.f32.mrf.mxu0
        %v3888 = vadd.f32 0.0, %v3887
        %3889 = vmatmul.f32.gmra.mxu0 %v3862
        %v3890 = vpop.f32.mrf.mxu0
        %v3891 = vadd.f32 0.0, %v3890
        %3892 = vmatmul.f32.gmra.mxu0 %v3865
        %v3893 = vpop.f32.mrf.mxu0
        %v3894 = vadd.f32 0.0, %v3893
        %3895 = vdwg.mxu0
        %3897 = vset.pattern.permute.xlu0 0
        %3898 = vperm.xlu0 %3897, %v3852
        %v3899 = vpop.permute.xlu0 %3898
        %3902 = vset.pattern.permute.xlu0 0
        %3903 = vperm.xlu0 %3902, %v3853
        %v3904 = vpop.permute.xlu0 %3903
        %3907 = vset.pattern.permute.xlu0 0
        %3908 = vperm.xlu0 %3907, %v3854
        %v3909 = vpop.permute.xlu0 %3908
        %v3911 = vadd.f32 %v3899, %v3888
        %v3912 = vadd.f32 %v3904, %v3891
        %v3913 = vadd.f32 %v3909, %v3894
        %s3914 = scalar_lea.vmem [#allocation16], 24
        %v3915 = vld [vmem:[%s3914] sm:$0xff]
        %v3916 = vld [vmem:[%s3914 + $0x8] sm:$0xff]
        %v3917 = vld [vmem:[%s3914 + $0x10] sm:$0xf]
        %3920 = vrot.lane.b32.xlu0 %v3844, 124
        %v3921 = vpop.permute.xlu0 %3920
        %3922 = vrot.lane.b32.xlu0 %v3847, 124
        %v3923 = vpop.permute.xlu0 %3922
        %3924 = vrot.lane.b32.xlu0 %v3850, 124
        %v3925 = vpop.permute.xlu0 %3924
        %v3929 = vsel %vm2685, %v3915, 0
        %v3932 = vsel %vm2685, %v3916, 0
        %v3935 = vsel %vm2685, %v3917, 0
        %v3937 = vsel %vm1222, %v3925, 0
        %3939 = vmatpush.msra.mxu0 0.0
        %3940 = vmatpush.msra.mxu0 0.0
        %3941 = vmatpush.msra.mxu0 0.0
        %3942 = vmatpush.msra.mxu0 0.0
        %3943 = vmatpush.msra.mxu0 0.0
        %3944 = vmatpush.msra.mxu0 0.0
        %3945 = vmatpush.msra.mxu0 0.0
        %3946 = vmatpush.msra.mxu0 0.0
        %3947 = vmatpush.msra.mxu0 0.0
        %3948 = vmatpush.msra.mxu0 0.0
        %3949 = vmatpush.msra.mxu0 0.0
        %3950 = vmatpush.msra.mxu0 0.0
        %3951 = vmatpush.msra.mxu0 0.0
        %3952 = vmatpush.msra.mxu0 %v3937
        %3953 = vmatpush.msra.mxu0 %v3923
        %3954 = vmatpush.msra.mxu0 %v3921
        %3955 = vmatmul.f32.gmra.mxu0 %v3929
        %v3956 = vpop.f32.mrf.mxu0
        %v3957 = vadd.f32 0.0, %v3956
        %3958 = vmatmul.f32.gmra.mxu0 %v3932
        %v3959 = vpop.f32.mrf.mxu0
        %v3960 = vadd.f32 0.0, %v3959
        %3961 = vmatmul.f32.gmra.mxu0 %v3935
        %v3962 = vpop.f32.mrf.mxu0
        %v3963 = vadd.f32 0.0, %v3962
        %3964 = vdwg.mxu0
        %v3965 = vadd.f32 %v3911, %v3957
        %v3966 = vadd.f32 %v3912, %v3960
        %v3967 = vadd.f32 %v3913, %v3963
        %s3968 = scalar_lea.vmem [#allocation16], 48
        %v3969 = vld [vmem:[%s3968] sm:$0xff]
        %v3970 = vld [vmem:[%s3968 + $0x8] sm:$0xff]
        %v3971 = vld [vmem:[%s3968 + $0x10] sm:$0xf]
        %3972 = vrot.lane.b32.xlu0 %v3844, 120
        %v3973 = vpop.permute.xlu0 %3972
        %3974 = vrot.lane.b32.xlu0 %v3847, 120
        %v3975 = vpop.permute.xlu0 %3974
        %3976 = vrot.lane.b32.xlu0 %v3850, 120
        %v3977 = vpop.permute.xlu0 %3976
        %v3981 = vsel %vm2685, %v3969, 0
        %v3984 = vsel %vm2685, %v3970, 0
        %v3987 = vsel %vm2685, %v3971, 0
        %v3989 = vsel %vm1222, %v3977, 0
        %3991 = vmatpush.msra.mxu0 0.0
        %3992 = vmatpush.msra.mxu0 0.0
        %3993 = vmatpush.msra.mxu0 0.0
        %3994 = vmatpush.msra.mxu0 0.0
        %3995 = vmatpush.msra.mxu0 0.0
        %3996 = vmatpush.msra.mxu0 0.0
        %3997 = vmatpush.msra.mxu0 0.0
        %3998 = vmatpush.msra.mxu0 0.0
        %3999 = vmatpush.msra.mxu0 0.0
        %4000 = vmatpush.msra.mxu0 0.0
        %4001 = vmatpush.msra.mxu0 0.0
        %4002 = vmatpush.msra.mxu0 0.0
        %4003 = vmatpush.msra.mxu0 0.0
        %4004 = vmatpush.msra.mxu0 %v3989
        %4005 = vmatpush.msra.mxu0 %v3975
        %4006 = vmatpush.msra.mxu0 %v3973
        %4007 = vmatmul.f32.gmra.mxu0 %v3981
        %v4008 = vpop.f32.mrf.mxu0
        %v4009 = vadd.f32 0.0, %v4008
        %4010 = vmatmul.f32.gmra.mxu0 %v3984
        %v4011 = vpop.f32.mrf.mxu0
        %v4012 = vadd.f32 0.0, %v4011
        %4013 = vmatmul.f32.gmra.mxu0 %v3987
        %v4014 = vpop.f32.mrf.mxu0
        %v4015 = vadd.f32 0.0, %v4014
        %4016 = vdwg.mxu0
        %v4017 = vadd.f32 %v3965, %v4009
        %v4018 = vadd.f32 %v3966, %v4012
        %v4019 = vadd.f32 %v3967, %v4015
        %s4020 = scalar_lea.vmem [#allocation16], 72
        %v4021 = vld [vmem:[%s4020] sm:$0xff]
        %v4022 = vld [vmem:[%s4020 + $0x8] sm:$0xff]
        %v4023 = vld [vmem:[%s4020 + $0x10] sm:$0xf]
        %4024 = vrot.lane.b32.xlu0 %v3844, 116
        %v4025 = vpop.permute.xlu0 %4024
        %4026 = vrot.lane.b32.xlu0 %v3847, 116
        %v4027 = vpop.permute.xlu0 %4026
        %4028 = vrot.lane.b32.xlu0 %v3850, 116
        %v4029 = vpop.permute.xlu0 %4028
        %v4033 = vsel %vm2685, %v4021, 0
        %v4036 = vsel %vm2685, %v4022, 0
        %v4039 = vsel %vm2685, %v4023, 0
        %v4041 = vsel %vm1222, %v4029, 0
        %4043 = vmatpush.msra.mxu0 0.0
        %4044 = vmatpush.msra.mxu0 0.0
        %4045 = vmatpush.msra.mxu0 0.0
        %4046 = vmatpush.msra.mxu0 0.0
        %4047 = vmatpush.msra.mxu0 0.0
        %4048 = vmatpush.msra.mxu0 0.0
        %4049 = vmatpush.msra.mxu0 0.0
        %4050 = vmatpush.msra.mxu0 0.0
        %4051 = vmatpush.msra.mxu0 0.0
        %4052 = vmatpush.msra.mxu0 0.0
        %4053 = vmatpush.msra.mxu0 0.0
        %4054 = vmatpush.msra.mxu0 0.0
        %4055 = vmatpush.msra.mxu0 0.0
        %4056 = vmatpush.msra.mxu0 %v4041
        %4057 = vmatpush.msra.mxu0 %v4027
        %4058 = vmatpush.msra.mxu0 %v4025
        %4059 = vmatmul.f32.gmra.mxu0 %v4033
        %v4060 = vpop.f32.mrf.mxu0
        %v4061 = vadd.f32 0.0, %v4060
        %4062 = vmatmul.f32.gmra.mxu0 %v4036
        %v4063 = vpop.f32.mrf.mxu0
        %v4064 = vadd.f32 0.0, %v4063
        %4065 = vmatmul.f32.gmra.mxu0 %v4039
        %v4066 = vpop.f32.mrf.mxu0
        %v4067 = vadd.f32 0.0, %v4066
        %4068 = vdwg.mxu0
        %v4069 = vadd.f32 %v4017, %v4061
        %v4070 = vadd.f32 %v4018, %v4064
        %v4071 = vadd.f32 %v4019, %v4067
        %s4072 = scalar_lea.vmem [#allocation16], 96
        %v4073 = vld [vmem:[%s4072] sm:$0xff]
        %v4074 = vld [vmem:[%s4072 + $0x8] sm:$0xff]
        %v4075 = vld [vmem:[%s4072 + $0x10] sm:$0xf]
        %4076 = vrot.lane.b32.xlu0 %v3844, 112
        %v4077 = vpop.permute.xlu0 %4076
        %4078 = vrot.lane.b32.xlu0 %v3847, 112
        %v4079 = vpop.permute.xlu0 %4078
        %4080 = vrot.lane.b32.xlu0 %v3850, 112
        %v4081 = vpop.permute.xlu0 %4080
        %v4085 = vsel %vm2685, %v4073, 0
        %v4088 = vsel %vm2685, %v4074, 0
        %v4091 = vsel %vm2685, %v4075, 0
        %v4093 = vsel %vm1222, %v4081, 0
        %4095 = vmatpush.msra.mxu0 0.0
        %4096 = vmatpush.msra.mxu0 0.0
        %4097 = vmatpush.msra.mxu0 0.0
        %4098 = vmatpush.msra.mxu0 0.0
        %4099 = vmatpush.msra.mxu0 0.0
        %4100 = vmatpush.msra.mxu0 0.0
        %4101 = vmatpush.msra.mxu0 0.0
        %4102 = vmatpush.msra.mxu0 0.0
        %4103 = vmatpush.msra.mxu0 0.0
        %4104 = vmatpush.msra.mxu0 0.0
        %4105 = vmatpush.msra.mxu0 0.0
        %4106 = vmatpush.msra.mxu0 0.0
        %4107 = vmatpush.msra.mxu0 0.0
        %4108 = vmatpush.msra.mxu0 %v4093
        %4109 = vmatpush.msra.mxu0 %v4079
        %4110 = vmatpush.msra.mxu0 %v4077
        %4111 = vmatmul.f32.gmra.mxu0 %v4085
        %v4112 = vpop.f32.mrf.mxu0
        %v4113 = vadd.f32 0.0, %v4112
        %4114 = vmatmul.f32.gmra.mxu0 %v4088
        %v4115 = vpop.f32.mrf.mxu0
        %v4116 = vadd.f32 0.0, %v4115
        %4117 = vmatmul.f32.gmra.mxu0 %v4091
        %v4118 = vpop.f32.mrf.mxu0
        %v4119 = vadd.f32 0.0, %v4118
        %4120 = vdwg.mxu0
        %v4121 = vadd.f32 %v4069, %v4113
        %v4122 = vadd.f32 %v4070, %v4116
        %v4123 = vadd.f32 %v4071, %v4119
        %v4124 = vmax.f32 %v4121, 0.0
        %v4125 = vmax.f32 %v4122, 0.0
        %v4126 = vmax.f32 %v4123, 0.0
        %v4127 = vld [vmem:[#allocation15 + $0x10] sm:$0xf]
        %v4129 = vsel %vm952, %v4124, 0
        %v4132 = vsel %vm952, %v4125, 0
        %v4135 = vsel %vm952, %v4126, 0
        %v4138 = vsel %vm1222, %v4127, 0
        %4140 = vmatpush.msra.mxu0 0.0
        %4141 = vmatpush.msra.mxu0 0.0
        %4142 = vmatpush.msra.mxu0 0.0
        %4143 = vmatpush.msra.mxu0 0.0
        %4144 = vmatpush.msra.mxu0 0.0
        %4145 = vmatpush.msra.mxu0 0.0
        %4146 = vmatpush.msra.mxu0 0.0
        %4147 = vmatpush.msra.mxu0 0.0
        %4148 = vmatpush.msra.mxu0 0.0
        %4149 = vmatpush.msra.mxu0 0.0
        %4150 = vmatpush.msra.mxu0 0.0
        %4151 = vmatpush.msra.mxu0 0.0
        %4152 = vmatpush.msra.mxu0 0.0
        %4153 = vmatpush.msra.mxu0 0.0
        %4154 = vmatpush.msra.mxu0 0.0
        %4155 = vmatpush.msra.mxu0 %v4138
        %4156 = vmatmul.f32.gmra.mxu0 %v4129
        %v4157 = vpop.f32.mrf.mxu0
        %v4158 = vadd.f32 0.0, %v4157
        %4159 = vmatmul.f32.gmra.mxu0 %v4132
        %v4160 = vpop.f32.mrf.mxu0
        %v4161 = vadd.f32 0.0, %v4160
        %4162 = vmatmul.f32.gmra.mxu0 %v4135
        %v4163 = vpop.f32.mrf.mxu0
        %v4164 = vadd.f32 0.0, %v4163
        %4165 = vdwg.mxu0
        %s4166 = scalar_lea.vmem [#allocation18], 24
        %v4167 = vld [vmem:[%s4166] sm:$0xff]
        %v4168 = vld [vmem:[%s4166 + $0x8] sm:$0xff]
        %v4169 = vld [vmem:[%s4166 + $0x10] sm:$0xf]
        %s4170 = scalar_lea.vmem [#allocation16], 120
        %v4171 = vld [vmem:[%s4170] sm:$0xff]
        %v4172 = vld [vmem:[%s4170 + $0x8] sm:$0xff]
        %v4173 = vld [vmem:[%s4170 + $0x10] sm:$0xf]
        %v4175 = vsel %vm2685, %v4171, 0
        %v4178 = vsel %vm2685, %v4172, 0
        %v4181 = vsel %vm2685, %v4173, 0
        %v4184 = vsel %vm1222, %v4164, 0
        %4186 = vmatpush.msra.mxu0 0.0
        %4187 = vmatpush.msra.mxu0 0.0
        %4188 = vmatpush.msra.mxu0 0.0
        %4189 = vmatpush.msra.mxu0 0.0
        %4190 = vmatpush.msra.mxu0 0.0
        %4191 = vmatpush.msra.mxu0 0.0
        %4192 = vmatpush.msra.mxu0 0.0
        %4193 = vmatpush.msra.mxu0 0.0
        %4194 = vmatpush.msra.mxu0 0.0
        %4195 = vmatpush.msra.mxu0 0.0
        %4196 = vmatpush.msra.mxu0 0.0
        %4197 = vmatpush.msra.mxu0 0.0
        %4198 = vmatpush.msra.mxu0 0.0
        %4199 = vmatpush.msra.mxu0 %v4184
        %4200 = vmatpush.msra.mxu0 %v4161
        %4201 = vmatpush.msra.mxu0 %v4158
        %4202 = vmatmul.f32.gmra.mxu0 %v4175
        %v4203 = vpop.f32.mrf.mxu0
        %v4204 = vadd.f32 0.0, %v4203
        %4205 = vmatmul.f32.gmra.mxu0 %v4178
        %v4206 = vpop.f32.mrf.mxu0
        %v4207 = vadd.f32 0.0, %v4206
        %4208 = vmatmul.f32.gmra.mxu0 %v4181
        %v4209 = vpop.f32.mrf.mxu0
        %v4210 = vadd.f32 0.0, %v4209
        %4211 = vdwg.mxu0
        %4213 = vset.pattern.permute.xlu0 0
        %4214 = vperm.xlu0 %4213, %v4167
        %v4215 = vpop.permute.xlu0 %4214
        %4218 = vset.pattern.permute.xlu0 0
        %4219 = vperm.xlu0 %4218, %v4168
        %v4220 = vpop.permute.xlu0 %4219
        %4223 = vset.pattern.permute.xlu0 0
        %4224 = vperm.xlu0 %4223, %v4169
        %v4225 = vpop.permute.xlu0 %4224
        %v4227 = vadd.f32 %v4215, %v4204
        %v4228 = vadd.f32 %v4220, %v4207
        %v4229 = vadd.f32 %v4225, %v4210
        %s4230 = scalar_lea.vmem [#allocation16], 144
        %v4231 = vld [vmem:[%s4230] sm:$0xff]
        %v4232 = vld [vmem:[%s4230 + $0x8] sm:$0xff]
        %v4233 = vld [vmem:[%s4230 + $0x10] sm:$0xf]
        %4236 = vrot.lane.b32.xlu0 %v4158, 120
        %v4237 = vpop.permute.xlu0 %4236
        %4238 = vrot.lane.b32.xlu0 %v4161, 120
        %v4239 = vpop.permute.xlu0 %4238
        %4240 = vrot.lane.b32.xlu0 %v4164, 120
        %v4241 = vpop.permute.xlu0 %4240
        %v4245 = vsel %vm2685, %v4231, 0
        %v4248 = vsel %vm2685, %v4232, 0
        %v4251 = vsel %vm2685, %v4233, 0
        %v4253 = vsel %vm1222, %v4241, 0
        %4255 = vmatpush.msra.mxu0 0.0
        %4256 = vmatpush.msra.mxu0 0.0
        %4257 = vmatpush.msra.mxu0 0.0
        %4258 = vmatpush.msra.mxu0 0.0
        %4259 = vmatpush.msra.mxu0 0.0
        %4260 = vmatpush.msra.mxu0 0.0
        %4261 = vmatpush.msra.mxu0 0.0
        %4262 = vmatpush.msra.mxu0 0.0
        %4263 = vmatpush.msra.mxu0 0.0
        %4264 = vmatpush.msra.mxu0 0.0
        %4265 = vmatpush.msra.mxu0 0.0
        %4266 = vmatpush.msra.mxu0 0.0
        %4267 = vmatpush.msra.mxu0 0.0
        %4268 = vmatpush.msra.mxu0 %v4253
        %4269 = vmatpush.msra.mxu0 %v4239
        %4270 = vmatpush.msra.mxu0 %v4237
        %4271 = vmatmul.f32.gmra.mxu0 %v4245
        %v4272 = vpop.f32.mrf.mxu0
        %v4273 = vadd.f32 0.0, %v4272
        %4274 = vmatmul.f32.gmra.mxu0 %v4248
        %v4275 = vpop.f32.mrf.mxu0
        %v4276 = vadd.f32 0.0, %v4275
        %4277 = vmatmul.f32.gmra.mxu0 %v4251
        %v4278 = vpop.f32.mrf.mxu0
        %v4279 = vadd.f32 0.0, %v4278
        %4280 = vdwg.mxu0
        %v4281 = vadd.f32 %v4227, %v4273
        %v4282 = vadd.f32 %v4228, %v4276
        %v4283 = vadd.f32 %v4229, %v4279
        %s4284 = scalar_lea.vmem [#allocation16], 168
        %v4285 = vld [vmem:[%s4284] sm:$0xff]
        %v4286 = vld [vmem:[%s4284 + $0x8] sm:$0xff]
        %v4287 = vld [vmem:[%s4284 + $0x10] sm:$0xf]
        %4288 = vrot.lane.b32.xlu0 %v4158, 112
        %v4289 = vpop.permute.xlu0 %4288
        %4290 = vrot.lane.b32.xlu0 %v4161, 112
        %v4291 = vpop.permute.xlu0 %4290
        %4292 = vrot.lane.b32.xlu0 %v4164, 112
        %v4293 = vpop.permute.xlu0 %4292
        %v4297 = vsel %vm2685, %v4285, 0
        %v4300 = vsel %vm2685, %v4286, 0
        %v4303 = vsel %vm2685, %v4287, 0
        %v4305 = vsel %vm1222, %v4293, 0
        %4307 = vmatpush.msra.mxu0 0.0
        %4308 = vmatpush.msra.mxu0 0.0
        %4309 = vmatpush.msra.mxu0 0.0
        %4310 = vmatpush.msra.mxu0 0.0
        %4311 = vmatpush.msra.mxu0 0.0
        %4312 = vmatpush.msra.mxu0 0.0
        %4313 = vmatpush.msra.mxu0 0.0
        %4314 = vmatpush.msra.mxu0 0.0
        %4315 = vmatpush.msra.mxu0 0.0
        %4316 = vmatpush.msra.mxu0 0.0
        %4317 = vmatpush.msra.mxu0 0.0
        %4318 = vmatpush.msra.mxu0 0.0
        %4319 = vmatpush.msra.mxu0 0.0
        %4320 = vmatpush.msra.mxu0 %v4305
        %4321 = vmatpush.msra.mxu0 %v4291
        %4322 = vmatpush.msra.mxu0 %v4289
        %4323 = vmatmul.f32.gmra.mxu0 %v4297
        %v4324 = vpop.f32.mrf.mxu0
        %v4325 = vadd.f32 0.0, %v4324
        %4326 = vmatmul.f32.gmra.mxu0 %v4300
        %v4327 = vpop.f32.mrf.mxu0
        %v4328 = vadd.f32 0.0, %v4327
        %4329 = vmatmul.f32.gmra.mxu0 %v4303
        %v4330 = vpop.f32.mrf.mxu0
        %v4331 = vadd.f32 0.0, %v4330
        %4332 = vdwg.mxu0
        %v4333 = vadd.f32 %v4281, %v4325
        %v4334 = vadd.f32 %v4282, %v4328
        %v4335 = vadd.f32 %v4283, %v4331
        %s4336 = scalar_lea.vmem [#allocation16], 192
        %v4337 = vld [vmem:[%s4336] sm:$0xff]
        %v4338 = vld [vmem:[%s4336 + $0x8] sm:$0xff]
        %v4339 = vld [vmem:[%s4336 + $0x10] sm:$0xf]
        %4340 = vrot.lane.b32.xlu0 %v4158, 104
        %v4341 = vpop.permute.xlu0 %4340
        %4342 = vrot.lane.b32.xlu0 %v4161, 104
        %v4343 = vpop.permute.xlu0 %4342
        %4344 = vrot.lane.b32.xlu0 %v4164, 104
        %v4345 = vpop.permute.xlu0 %4344
        %v4349 = vsel %vm2685, %v4337, 0
        %v4352 = vsel %vm2685, %v4338, 0
        %v4355 = vsel %vm2685, %v4339, 0
        %v4357 = vsel %vm1222, %v4345, 0
        %4359 = vmatpush.msra.mxu0 0.0
        %4360 = vmatpush.msra.mxu0 0.0
        %4361 = vmatpush.msra.mxu0 0.0
        %4362 = vmatpush.msra.mxu0 0.0
        %4363 = vmatpush.msra.mxu0 0.0
        %4364 = vmatpush.msra.mxu0 0.0
        %4365 = vmatpush.msra.mxu0 0.0
        %4366 = vmatpush.msra.mxu0 0.0
        %4367 = vmatpush.msra.mxu0 0.0
        %4368 = vmatpush.msra.mxu0 0.0
        %4369 = vmatpush.msra.mxu0 0.0
        %4370 = vmatpush.msra.mxu0 0.0
        %4371 = vmatpush.msra.mxu0 0.0
        %4372 = vmatpush.msra.mxu0 %v4357
        %4373 = vmatpush.msra.mxu0 %v4343
        %4374 = vmatpush.msra.mxu0 %v4341
        %4375 = vmatmul.f32.gmra.mxu0 %v4349
        %v4376 = vpop.f32.mrf.mxu0
        %v4377 = vadd.f32 0.0, %v4376
        %4378 = vmatmul.f32.gmra.mxu0 %v4352
        %v4379 = vpop.f32.mrf.mxu0
        %v4380 = vadd.f32 0.0, %v4379
        %4381 = vmatmul.f32.gmra.mxu0 %v4355
        %v4382 = vpop.f32.mrf.mxu0
        %v4383 = vadd.f32 0.0, %v4382
        %4384 = vdwg.mxu0
        %v4385 = vadd.f32 %v4333, %v4377
        %v4386 = vadd.f32 %v4334, %v4380
        %v4387 = vadd.f32 %v4335, %v4383
        %s4388 = scalar_lea.vmem [#allocation16], 216
        %v4389 = vld [vmem:[%s4388] sm:$0xff]
        %v4390 = vld [vmem:[%s4388 + $0x8] sm:$0xff]
        %v4391 = vld [vmem:[%s4388 + $0x10] sm:$0xf]
        %4392 = vrot.lane.b32.xlu0 %v4158, 96
        %v4393 = vpop.permute.xlu0 %4392
        %4394 = vrot.lane.b32.xlu0 %v4161, 96
        %v4395 = vpop.permute.xlu0 %4394
        %4396 = vrot.lane.b32.xlu0 %v4164, 96
        %v4397 = vpop.permute.xlu0 %4396
        %v4401 = vsel %vm2685, %v4389, 0
        %v4404 = vsel %vm2685, %v4390, 0
        %v4407 = vsel %vm2685, %v4391, 0
        %v4409 = vsel %vm1222, %v4397, 0
        %4411 = vmatpush.msra.mxu0 0.0
        %4412 = vmatpush.msra.mxu0 0.0
        %4413 = vmatpush.msra.mxu0 0.0
        %4414 = vmatpush.msra.mxu0 0.0
        %4415 = vmatpush.msra.mxu0 0.0
        %4416 = vmatpush.msra.mxu0 0.0
        %4417 = vmatpush.msra.mxu0 0.0
        %4418 = vmatpush.msra.mxu0 0.0
        %4419 = vmatpush.msra.mxu0 0.0
        %4420 = vmatpush.msra.mxu0 0.0
        %4421 = vmatpush.msra.mxu0 0.0
        %4422 = vmatpush.msra.mxu0 0.0
        %4423 = vmatpush.msra.mxu0 0.0
        %4424 = vmatpush.msra.mxu0 %v4409
        %4425 = vmatpush.msra.mxu0 %v4395
        %4426 = vmatpush.msra.mxu0 %v4393
        %4427 = vmatmul.f32.gmra.mxu0 %v4401
        %v4428 = vpop.f32.mrf.mxu0
        %v4429 = vadd.f32 0.0, %v4428
        %4430 = vmatmul.f32.gmra.mxu0 %v4404
        %v4431 = vpop.f32.mrf.mxu0
        %v4432 = vadd.f32 0.0, %v4431
        %4433 = vmatmul.f32.gmra.mxu0 %v4407
        %v4434 = vpop.f32.mrf.mxu0
        %v4435 = vadd.f32 0.0, %v4434
        %4436 = vdwg.mxu0
        %v4437 = vadd.f32 %v4385, %v4429
        %v4438 = vadd.f32 %v4386, %v4432
        %v4439 = vadd.f32 %v4387, %v4435
        %v4440 = vmax.f32 %v4437, 0.0
        %v4441 = vmax.f32 %v4438, 0.0
        %v4442 = vmax.f32 %v4439, 0.0
        %v4443 = vld [vmem:[#allocation15 + $0x20] sm:$0xff]
        %v4445 = vsel %vm1218, %v4440, 0
        %v4448 = vsel %vm1218, %v4441, 0
        %v4451 = vsel %vm1218, %v4442, 0
        %4453 = vmatpush.msra.mxu0 0.0
        %4454 = vmatpush.msra.mxu0 0.0
        %4455 = vmatpush.msra.mxu0 0.0
        %4456 = vmatpush.msra.mxu0 0.0
        %4457 = vmatpush.msra.mxu0 0.0
        %4458 = vmatpush.msra.mxu0 0.0
        %4459 = vmatpush.msra.mxu0 0.0
        %4460 = vmatpush.msra.mxu0 0.0
        %4461 = vmatpush.msra.mxu0 0.0
        %4462 = vmatpush.msra.mxu0 0.0
        %4463 = vmatpush.msra.mxu0 0.0
        %4464 = vmatpush.msra.mxu0 0.0
        %4465 = vmatpush.msra.mxu0 0.0
        %4466 = vmatpush.msra.mxu0 0.0
        %4467 = vmatpush.msra.mxu0 0.0
        %4468 = vmatpush.msra.mxu0 %v4443
        %4469 = vmatmul.f32.gmra.mxu0 %v4445
        %v4470 = vpop.f32.mrf.mxu0
        %v4471 = vadd.f32 0.0, %v4470
        %4472 = vmatmul.f32.gmra.mxu0 %v4448
        %v4473 = vpop.f32.mrf.mxu0
        %v4474 = vadd.f32 0.0, %v4473
        %4475 = vmatmul.f32.gmra.mxu0 %v4451
        %v4476 = vpop.f32.mrf.mxu0
        %v4477 = vadd.f32 0.0, %v4476
        %4478 = vdwg.mxu0
        %s4479 = scalar_lea.vmem [#allocation18], 48
        %v4480 = vld [vmem:[%s4479] sm:$0xff]
        %v4481 = vld [vmem:[%s4479 + $0x8] sm:$0xff]
        %v4482 = vld [vmem:[%s4479 + $0x10] sm:$0xf]
        %s4483 = scalar_lea.vmem [#allocation16], 240
        %v4484 = vld [vmem:[%s4483] sm:$0xff]
        %v4485 = vld [vmem:[%s4483 + $0x8] sm:$0xff]
        %v4486 = vld [vmem:[%s4483 + $0x10] sm:$0xf]
        %v4488 = vsel %vm2685, %v4484, 0
        %v4491 = vsel %vm2685, %v4485, 0
        %v4494 = vsel %vm2685, %v4486, 0
        %v4497 = vsel %vm1222, %v4477, 0
        %4499 = vmatpush.msra.mxu0 0.0
        %4500 = vmatpush.msra.mxu0 0.0
        %4501 = vmatpush.msra.mxu0 0.0
        %4502 = vmatpush.msra.mxu0 0.0
        %4503 = vmatpush.msra.mxu0 0.0
        %4504 = vmatpush.msra.mxu0 0.0
        %4505 = vmatpush.msra.mxu0 0.0
        %4506 = vmatpush.msra.mxu0 0.0
        %4507 = vmatpush.msra.mxu0 0.0
        %4508 = vmatpush.msra.mxu0 0.0
        %4509 = vmatpush.msra.mxu0 0.0
        %4510 = vmatpush.msra.mxu0 0.0
        %4511 = vmatpush.msra.mxu0 0.0
        %4512 = vmatpush.msra.mxu0 %v4497
        %4513 = vmatpush.msra.mxu0 %v4474
        %4514 = vmatpush.msra.mxu0 %v4471
        %4515 = vmatmul.f32.gmra.mxu0 %v4488
        %v4516 = vpop.f32.mrf.mxu0
        %v4517 = vadd.f32 0.0, %v4516
        %4518 = vmatmul.f32.gmra.mxu0 %v4491
        %v4519 = vpop.f32.mrf.mxu0
        %v4520 = vadd.f32 0.0, %v4519
        %4521 = vmatmul.f32.gmra.mxu0 %v4494
        %v4522 = vpop.f32.mrf.mxu0
        %v4523 = vadd.f32 0.0, %v4522
        %4524 = vdwg.mxu0
        %4526 = vset.pattern.permute.xlu0 0
        %4527 = vperm.xlu0 %4526, %v4480
        %v4528 = vpop.permute.xlu0 %4527
        %4531 = vset.pattern.permute.xlu0 0
        %4532 = vperm.xlu0 %4531, %v4481
        %v4533 = vpop.permute.xlu0 %4532
        %4536 = vset.pattern.permute.xlu0 0
        %4537 = vperm.xlu0 %4536, %v4482
        %v4538 = vpop.permute.xlu0 %4537
        %v4540 = vadd.f32 %v4528, %v4517
        %v4541 = vadd.f32 %v4533, %v4520
        %v4542 = vadd.f32 %v4538, %v4523
        %s4543 = scalar_lea.vmem [#allocation16], 264
        %v4544 = vld [vmem:[%s4543] sm:$0xff]
        %v4545 = vld [vmem:[%s4543 + $0x8] sm:$0xff]
        %v4546 = vld [vmem:[%s4543 + $0x10] sm:$0xf]
        %4549 = vrot.lane.b32.xlu0 %v4471, 112
        %v4550 = vpop.permute.xlu0 %4549
        %4551 = vrot.lane.b32.xlu0 %v4474, 112
        %v4552 = vpop.permute.xlu0 %4551
        %4553 = vrot.lane.b32.xlu0 %v4477, 112
        %v4554 = vpop.permute.xlu0 %4553
        %v4558 = vsel %vm2685, %v4544, 0
        %v4561 = vsel %vm2685, %v4545, 0
        %v4564 = vsel %vm2685, %v4546, 0
        %v4566 = vsel %vm1222, %v4554, 0
        %4568 = vmatpush.msra.mxu0 0.0
        %4569 = vmatpush.msra.mxu0 0.0
        %4570 = vmatpush.msra.mxu0 0.0
        %4571 = vmatpush.msra.mxu0 0.0
        %4572 = vmatpush.msra.mxu0 0.0
        %4573 = vmatpush.msra.mxu0 0.0
        %4574 = vmatpush.msra.mxu0 0.0
        %4575 = vmatpush.msra.mxu0 0.0
        %4576 = vmatpush.msra.mxu0 0.0
        %4577 = vmatpush.msra.mxu0 0.0
        %4578 = vmatpush.msra.mxu0 0.0
        %4579 = vmatpush.msra.mxu0 0.0
        %4580 = vmatpush.msra.mxu0 0.0
        %4581 = vmatpush.msra.mxu0 %v4566
        %4582 = vmatpush.msra.mxu0 %v4552
        %4583 = vmatpush.msra.mxu0 %v4550
        %4584 = vmatmul.f32.gmra.mxu0 %v4558
        %v4585 = vpop.f32.mrf.mxu0
        %v4586 = vadd.f32 0.0, %v4585
        %4587 = vmatmul.f32.gmra.mxu0 %v4561
        %v4588 = vpop.f32.mrf.mxu0
        %v4589 = vadd.f32 0.0, %v4588
        %4590 = vmatmul.f32.gmra.mxu0 %v4564
        %v4591 = vpop.f32.mrf.mxu0
        %v4592 = vadd.f32 0.0, %v4591
        %4593 = vdwg.mxu0
        %v4594 = vadd.f32 %v4540, %v4586
        %v4595 = vadd.f32 %v4541, %v4589
        %v4596 = vadd.f32 %v4542, %v4592
        %s4597 = scalar_lea.vmem [#allocation16], 288
        %v4598 = vld [vmem:[%s4597] sm:$0xff]
        %v4599 = vld [vmem:[%s4597 + $0x8] sm:$0xff]
        %v4600 = vld [vmem:[%s4597 + $0x10] sm:$0xf]
        %4601 = vrot.lane.b32.xlu0 %v4471, 96
        %v4602 = vpop.permute.xlu0 %4601
        %4603 = vrot.lane.b32.xlu0 %v4474, 96
        %v4604 = vpop.permute.xlu0 %4603
        %4605 = vrot.lane.b32.xlu0 %v4477, 96
        %v4606 = vpop.permute.xlu0 %4605
        %v4610 = vsel %vm2685, %v4598, 0
        %v4613 = vsel %vm2685, %v4599, 0
        %v4616 = vsel %vm2685, %v4600, 0
        %v4618 = vsel %vm1222, %v4606, 0
        %4620 = vmatpush.msra.mxu0 0.0
        %4621 = vmatpush.msra.mxu0 0.0
        %4622 = vmatpush.msra.mxu0 0.0
        %4623 = vmatpush.msra.mxu0 0.0
        %4624 = vmatpush.msra.mxu0 0.0
        %4625 = vmatpush.msra.mxu0 0.0
        %4626 = vmatpush.msra.mxu0 0.0
        %4627 = vmatpush.msra.mxu0 0.0
        %4628 = vmatpush.msra.mxu0 0.0
        %4629 = vmatpush.msra.mxu0 0.0
        %4630 = vmatpush.msra.mxu0 0.0
        %4631 = vmatpush.msra.mxu0 0.0
        %4632 = vmatpush.msra.mxu0 0.0
        %4633 = vmatpush.msra.mxu0 %v4618
        %4634 = vmatpush.msra.mxu0 %v4604
        %4635 = vmatpush.msra.mxu0 %v4602
        %4636 = vmatmul.f32.gmra.mxu0 %v4610
        %v4637 = vpop.f32.mrf.mxu0
        %v4638 = vadd.f32 0.0, %v4637
        %4639 = vmatmul.f32.gmra.mxu0 %v4613
        %v4640 = vpop.f32.mrf.mxu0
        %v4641 = vadd.f32 0.0, %v4640
        %4642 = vmatmul.f32.gmra.mxu0 %v4616
        %v4643 = vpop.f32.mrf.mxu0
        %v4644 = vadd.f32 0.0, %v4643
        %4645 = vdwg.mxu0
        %v4646 = vadd.f32 %v4594, %v4638
        %v4647 = vadd.f32 %v4595, %v4641
        %v4648 = vadd.f32 %v4596, %v4644
        %s4649 = scalar_lea.vmem [#allocation16], 312
        %v4650 = vld [vmem:[%s4649] sm:$0xff]
        %v4651 = vld [vmem:[%s4649 + $0x8] sm:$0xff]
        %v4652 = vld [vmem:[%s4649 + $0x10] sm:$0xf]
        %4653 = vrot.lane.b32.xlu0 %v4471, 80
        %v4654 = vpop.permute.xlu0 %4653
        %4655 = vrot.lane.b32.xlu0 %v4474, 80
        %v4656 = vpop.permute.xlu0 %4655
        %4657 = vrot.lane.b32.xlu0 %v4477, 80
        %v4658 = vpop.permute.xlu0 %4657
        %v4662 = vsel %vm2685, %v4650, 0
        %v4665 = vsel %vm2685, %v4651, 0
        %v4668 = vsel %vm2685, %v4652, 0
        %v4670 = vsel %vm1222, %v4658, 0
        %4672 = vmatpush.msra.mxu0 0.0
        %4673 = vmatpush.msra.mxu0 0.0
        %4674 = vmatpush.msra.mxu0 0.0
        %4675 = vmatpush.msra.mxu0 0.0
        %4676 = vmatpush.msra.mxu0 0.0
        %4677 = vmatpush.msra.mxu0 0.0
        %4678 = vmatpush.msra.mxu0 0.0
        %4679 = vmatpush.msra.mxu0 0.0
        %4680 = vmatpush.msra.mxu0 0.0
        %4681 = vmatpush.msra.mxu0 0.0
        %4682 = vmatpush.msra.mxu0 0.0
        %4683 = vmatpush.msra.mxu0 0.0
        %4684 = vmatpush.msra.mxu0 0.0
        %4685 = vmatpush.msra.mxu0 %v4670
        %4686 = vmatpush.msra.mxu0 %v4656
        %4687 = vmatpush.msra.mxu0 %v4654
        %4688 = vmatmul.f32.gmra.mxu0 %v4662
        %v4689 = vpop.f32.mrf.mxu0
        %v4690 = vadd.f32 0.0, %v4689
        %4691 = vmatmul.f32.gmra.mxu0 %v4665
        %v4692 = vpop.f32.mrf.mxu0
        %v4693 = vadd.f32 0.0, %v4692
        %4694 = vmatmul.f32.gmra.mxu0 %v4668
        %v4695 = vpop.f32.mrf.mxu0
        %v4696 = vadd.f32 0.0, %v4695
        %4697 = vdwg.mxu0
        %v4698 = vadd.f32 %v4646, %v4690
        %v4699 = vadd.f32 %v4647, %v4693
        %v4700 = vadd.f32 %v4648, %v4696
        %s4701 = scalar_lea.vmem [#allocation16], 336
        %v4702 = vld [vmem:[%s4701] sm:$0xff]
        %v4703 = vld [vmem:[%s4701 + $0x8] sm:$0xff]
        %v4704 = vld [vmem:[%s4701 + $0x10] sm:$0xf]
        %4705 = vrot.lane.b32.xlu0 %v4471, 64
        %v4706 = vpop.permute.xlu0 %4705
        %4707 = vrot.lane.b32.xlu0 %v4474, 64
        %v4708 = vpop.permute.xlu0 %4707
        %4709 = vrot.lane.b32.xlu0 %v4477, 64
        %v4710 = vpop.permute.xlu0 %4709
        %v4714 = vsel %vm2685, %v4702, 0
        %v4717 = vsel %vm2685, %v4703, 0
        %v4720 = vsel %vm2685, %v4704, 0
        %v4722 = vsel %vm1222, %v4710, 0
        %4724 = vmatpush.msra.mxu0 0.0
        %4725 = vmatpush.msra.mxu0 0.0
        %4726 = vmatpush.msra.mxu0 0.0
        %4727 = vmatpush.msra.mxu0 0.0
        %4728 = vmatpush.msra.mxu0 0.0
        %4729 = vmatpush.msra.mxu0 0.0
        %4730 = vmatpush.msra.mxu0 0.0
        %4731 = vmatpush.msra.mxu0 0.0
        %4732 = vmatpush.msra.mxu0 0.0
        %4733 = vmatpush.msra.mxu0 0.0
        %4734 = vmatpush.msra.mxu0 0.0
        %4735 = vmatpush.msra.mxu0 0.0
        %4736 = vmatpush.msra.mxu0 0.0
        %4737 = vmatpush.msra.mxu0 %v4722
        %4738 = vmatpush.msra.mxu0 %v4708
        %4739 = vmatpush.msra.mxu0 %v4706
        %4740 = vmatmul.f32.gmra.mxu0 %v4714
        %v4741 = vpop.f32.mrf.mxu0
        %v4742 = vadd.f32 0.0, %v4741
        %4743 = vmatmul.f32.gmra.mxu0 %v4717
        %v4744 = vpop.f32.mrf.mxu0
        %v4745 = vadd.f32 0.0, %v4744
        %4746 = vmatmul.f32.gmra.mxu0 %v4720
        %v4747 = vpop.f32.mrf.mxu0
        %v4748 = vadd.f32 0.0, %v4747
        %4749 = vdwg.mxu0
        %v4750 = vadd.f32 %v4698, %v4742
        %v4751 = vadd.f32 %v4699, %v4745
        %v4752 = vadd.f32 %v4700, %v4748
        %v4753 = vmax.f32 %v4750, 0.0
        %v4754 = vmax.f32 %v4751, 0.0
        %v4755 = vmax.f32 %v4752, 0.0
        %v4756 = vld [vmem:[%s12] sm:$0xf]
        %s4757 = scalar_lea.vmem %s12, 4
        %v4758 = vld [vmem:[%s4757] sm:$0xf]
        %v4760 = vsel %vm2685, %v4758, 0
        %v4763 = vsel %vm1222, %v4755, 0
        %4765 = vmatpush.msra.mxu0 0.0
        %4766 = vmatpush.msra.mxu0 0.0
        %4767 = vmatpush.msra.mxu0 0.0
        %4768 = vmatpush.msra.mxu0 0.0
        %4769 = vmatpush.msra.mxu0 0.0
        %4770 = vmatpush.msra.mxu0 0.0
        %4771 = vmatpush.msra.mxu0 0.0
        %4772 = vmatpush.msra.mxu0 0.0
        %4773 = vmatpush.msra.mxu0 0.0
        %4774 = vmatpush.msra.mxu0 0.0
        %4775 = vmatpush.msra.mxu0 0.0
        %4776 = vmatpush.msra.mxu0 0.0
        %4777 = vmatpush.msra.mxu0 0.0
        %4778 = vmatpush.msra.mxu0 %v4763
        %4779 = vmatpush.msra.mxu0 %v4754
        %4780 = vmatpush.msra.mxu0 %v4753
        %4781 = vmatmul.f32.gmra.mxu0 %v4760
        %v4782 = vpop.f32.mrf.mxu0
        %v4783 = vadd.f32 0.0, %v4782
        %4784 = vdwg.mxu0
        %v4786 = vsel %vm2685, %v4756, 0
        %v4789 = vsel %vm1222, %v2630, 0
        %4791 = vmatpush.msra.mxu0 0.0
        %4792 = vmatpush.msra.mxu0 0.0
        %4793 = vmatpush.msra.mxu0 0.0
        %4794 = vmatpush.msra.mxu0 0.0
        %4795 = vmatpush.msra.mxu0 0.0
        %4796 = vmatpush.msra.mxu0 0.0
        %4797 = vmatpush.msra.mxu0 0.0
        %4798 = vmatpush.msra.mxu0 0.0
        %4799 = vmatpush.msra.mxu0 0.0
        %4800 = vmatpush.msra.mxu0 0.0
        %4801 = vmatpush.msra.mxu0 0.0
        %4802 = vmatpush.msra.mxu0 0.0
        %4803 = vmatpush.msra.mxu0 0.0
        %4804 = vmatpush.msra.mxu0 %v4789
        %4805 = vmatpush.msra.mxu0 %v2627
        %4806 = vmatpush.msra.mxu0 %v2625
        %4807 = vmatmul.f32.gmra.mxu0 %v4786
        %v4808 = vpop.f32.mrf.mxu0
        %v4809 = vadd.f32 %v4783, %v4808
        %4810 = vdwg.mxu0
        %v4811 = vld [vmem:[%s13] sm:$0xf]
        %4813 = vset.pattern.permute.xlu0 0
        %4814 = vperm.xlu0 %4813, %v4811
        %v4815 = vpop.permute.xlu0 %4814
        %v4817 = vadd.f32 %v4809, %v4815
        %vm4818 = vcmask 124928
        %v4819 = vsel %vm4818, %v4817, -inf
        %v4820 = vrot.slane %v4819, 4
        %v4821 = vmax.f32 %v4819, %v4820
        %v4822 = vrot.slane %v4821, 2
        %v4823 = vmax.f32 %v4821, %v4822
        %v4824 = vrot.slane %v4823, 1
        %v4825 = vmax.f32 %v4823, %v4824
        %v4826 = vsub.f32 %v4817, %v4825
        %v4827 = vmul.f32 %v4826, 1.442695
        %v4828 = vpow.pop %v4827
        %v4829 = vsel %vm4818, %v4828, 0.0
        %v4830 = vrot.slane %v4829, 4
        %v4831 = vadd.f32 %v4829, %v4830
        %v4832 = vrot.slane %v4831, 2
        %v4833 = vadd.f32 %v4831, %v4832
        %v4834 = vrot.slane %v4833, 1
        %v4835 = vadd.f32 %v4833, %v4834
        %v4836 = vrcp.pop %v4835
        %v4837 = vmul.f32 %v4835, %v4836
        %v4838 = vsub.f32 1.0, %v4837
        %v4839 = vmul.f32 %v4836, %v4838
        %v4840 = vadd.f32 %v4836, %v4839
        %vm4841 = vweird.f32 %v4835
        %vm4842 = vweird.f32 %v4836
        %vm4843 = vmor %vm4841, %vm4842
        %v4844 = vsel %vm4843, %v4836, %v4840
        %v4845 = vand.u32 2147483647, %v4835
        %vm4846 = vcmp.eq.f32.partialorder %v4845, 8.507059e+37
        %v4847 = vand.u32 %v4835, 2147483648
        %v4848 = vor.u32 1.1754944e-38, %v4847
        %v4849 = vsel %vm4846, %v4848, %v4844
        %v4850 = vmul.f32 %v4828, %v4849
        %4851 = vst.msk [vmem:[%s642] sm:$0x7] %vm4818, %v4850
        %v4852 = vmul.f32 %v4817, 8.0
        %vm4853 = vcmask 125955
        %4854 = vst.msk [vmem:[%s642] sm:$0x8] %vm4853, %v4852
        %p4855 = scmp.lt.s32.totalorder %s31, 1
        %s4856 = scalar_select %p4855, %s31, 1
        %s4857 = smul.addr %s4856, 4
        %s4858 = scalar_lea.vmem %s14, %s4857
        // Predicated region
        $region121: #{forward.1} parent=75 // pred_check
          %p4859 = pneg %p348
        $region122: #{forward.1} parent=75 // pred_check_branch
          %4861 = sbr.rel (%p4859) target = $region124
        $region123: #{forward.1} parent=75 // pred_region
          _
        $region124: #{forward.1} parent=75 // pred_fallthru
          _
      $region76: #{forward.1} parent=5 // pred_fallthru
        _
      %p4862 = scmp.le.s32.totalorder 2, %s26
      // Predicated region
      $region125: #{forward.1} parent=5 // pred_check
        %p4863 = pneg %p4862
      $region126: #{forward.1} parent=5 // pred_check_branch
        %4865 = sbr.rel (%p4863) target = $region128
      $region127: #{forward.1} parent=5 // pred_region
        %s4866 = ssub.s32 %s26, 2
        // Predicated region
        $region129: #{forward.1} parent=127 // pred_check
          %p4867 = pneg %p354
        $region130: #{forward.1} parent=127 // pred_check_branch
          %4869 = sbr.rel (%p4867) target = $region132
        $region131: #{forward.1} parent=127 // pred_region
          %p4870 = scmp.lt.s32.totalorder %s32, 1
          %s4871 = scalar_select %p4870, %s32, 1
          %s4872 = smul.addr %s4871, 4
          %s4873 = scalar_lea.vmem %s14, %s4872
        $region132: #{forward.1} parent=127 // pred_fallthru
          _
      $region128: #{forward.1} parent=5 // pred_fallthru
        _
    $region6: #{forward.1} parent=1 // loop_footer
      %s30 = sadd.s32 1, %s26
    $region7: #{forward.1} parent=1 // loop_footer_branch
      %25 = sbr.rel target = $region3
    $region8: #{forward.1} parent=1 // loop_exit
      _
    %4874 = vsyncpa [#allocation3], 1
    %s4875 = scalar_lea.sflag [#allocation3], 1
    %4876 = vsyncpa %s4875, 1
    %4877 = vsyncpa [#allocation5], 1
    %4878 = vsyncpa [#allocation8], 1
    %4879 = vsyncpa [#allocation11], 1
    %4880 = vsyncpa [#allocation14], 1
    %4881 = vsyncpa [#allocation17], 1

</llo_original>
